<compile_context>
chip_gen: v6e
topology: v6e:2x2x1
jax: 0.10.0
libtpu: 0.0.40
codegen_flags: <defaults>
</compile_context>

<pallas_src>
import jax
import jax.numpy as jnp
from jax.experimental import pallas as pl
from jax.experimental.pallas import tpu as pltpu

_HIDDEN = 128


def _ae_kernel(x_ref,
               w1_ref, b1_ref,
               w2_ref, b2_ref,
               w3_ref, b3_ref,
               w4_ref, b4_ref,
               out_ref):
    # Hoist bias reads (f32) once; they broadcast over the batch tile below.
    b1 = b1_ref[...]
    b2 = b2_ref[...]
    b3 = b3_ref[...]
    b4 = b4_ref[...]

    # MXU inputs in bf16, f32 accumulation, all post-matmul math in f32.
    # (If x is already bf16 this cast is a no-op.)
    x = x_ref[...].astype(jnp.bfloat16)

    # encoder: Linear(input_dim, 128) + ReLU
    h1 = jnp.dot(x, w1_ref[...], preferred_element_type=jnp.float32) + b1
    h1 = jnp.maximum(h1, 0.0)

    # encoder: Linear(128, latent_dim[padded]) + ReLU
    z = jnp.dot(h1.astype(jnp.bfloat16), w2_ref[...],
                preferred_element_type=jnp.float32) + b2
    z = jnp.maximum(z, 0.0)

    # decoder: Linear(latent_dim[padded], 128) + ReLU
    h2 = jnp.dot(z.astype(jnp.bfloat16), w3_ref[...],
                 preferred_element_type=jnp.float32) + b3
    h2 = jnp.maximum(h2, 0.0)

    # decoder: Linear(128, input_dim[padded]) + Sigmoid
    logits = jnp.dot(h2.astype(jnp.bfloat16), w4_ref[...],
                     preferred_element_type=jnp.float32) + b4
    out_ref[...] = jax.nn.sigmoid(logits).astype(out_ref.dtype)


def _round_up(v, m):
    return ((v + m - 1) // m) * m


def _cdiv(a, b):
    return -(-a // b)


def _tpu_generation():
    """Best-effort (tensorcores sharing the grid, VMEM bytes to request)."""
    kind = ""
    try:
        kind = jax.devices()[0].device_kind.lower()
    except Exception:
        pass
    if "v7" in kind:
        return 2, 48 * 1024 * 1024   # 2 TCs/chip, 64 MiB physical VMEM per TC
    if "v6" in kind:
        return 1, 96 * 1024 * 1024   # 1 TC, 128 MiB physical VMEM
    return 1, 64 * 1024 * 1024       # v5e & fallback (16 MiB scoped default)


def _pick_batch_tile(batch, requested, num_cores, max_tile_rows):
    """Sublane-aligned (x8) tile, clamped by VMEM budget. On multi-TC parts
    the grid step count is rounded to a multiple of the core count so both
    TensorCores get equal work; on single-TC parts one big tile is kept."""
    t = max(8, min(requested, max(8, max_tile_rows), _round_up(batch, 8)))
    t = max(8, (t // 8) * 8)
    if num_cores > 1 and batch > 8:
        steps = _cdiv(batch, t)
        steps = _round_up(max(steps, num_cores), num_cores)
        t = max(8, _round_up(_cdiv(batch, steps), 8))
    return t


def _prepare_params(params, input_dim):
    """Cast weights to bf16 (half the DMA bytes, native MXU path); pad the
    latent dim and input dim to multiples of 128 (exact, see module header).
    Biases stay f32 and are accepted as (out,) or (1, out)."""
    def as_bias(b):
        return jnp.asarray(b, jnp.float32).reshape(1, -1)

    w1 = jnp.asarray(params["w1"], jnp.float32)
    w2 = jnp.asarray(params["w2"], jnp.float32)
    w3 = jnp.asarray(params["w3"], jnp.float32)
    w4 = jnp.asarray(params["w4"], jnp.float32)
    b1, b2, b3, b4 = (as_bias(params[k]) for k in ("b1", "b2", "b3", "b4"))

    latent = w2.shape[1]
    latent_p = _round_up(latent, 128)
    din_p = _round_up(input_dim, 128)

    if latent_p != latent:
        pad = latent_p - latent
        w2 = jnp.pad(w2, ((0, 0), (0, pad)))
        b2 = jnp.pad(b2, ((0, 0), (0, pad)))
        w3 = jnp.pad(w3, ((0, pad), (0, 0)))
    if din_p != input_dim:
        pad = din_p - input_dim
        w1 = jnp.pad(w1, ((0, pad), (0, 0)))    # zero rows: padded x cols add 0
        w4 = jnp.pad(w4, ((0, 0), (0, pad)))    # padded logit cols -> sliced off
        b4 = jnp.pad(b4, ((0, 0), (0, pad)))

    weights = (w1.astype(jnp.bfloat16), b1,
               w2.astype(jnp.bfloat16), b2,
               w3.astype(jnp.bfloat16), b3,
               w4.astype(jnp.bfloat16), b4)
    return weights, latent_p, din_p


def autoencoder_forward(x, params, *, batch_tile=512, out_dtype=None):
    """x: (B, input_dim), f32 or bf16. params: dict with w1..w4 (in,out) and
    b1..b4 ((out,) or (1,out)). Returns (B, input_dim) in out_dtype
    (defaults to x.dtype)."""
    B, input_dim = x.shape
    out_dtype = x.dtype if out_dtype is None else out_dtype
    (w1, b1, w2, b2, w3, b3, w4, b4), latent_p, din_p = _prepare_params(
        params, input_dim)

    num_cores, vmem_cap = _tpu_generation()

    x_bytes = jnp.dtype(x.dtype).itemsize
    o_bytes = jnp.dtype(out_dtype).itemsize
    weight_bytes = sum(int(a.size) * a.dtype.itemsize
                       for a in (w1, b1, w2, b2, w3, b3, w4, b4))

    # Per-row VMEM footprint: double-buffered x/out tiles + f32 intermediates.
    per_row = 2 * din_p * x_bytes + 2 * din_p * o_bytes \
        + 4 * max(_HIDDEN, latent_p) * 4
    budget = int(0.7 * vmem_cap) - 2 * weight_bytes
    max_tile_rows = (budget // per_row) // 8 * 8 if budget > per_row * 8 else 8

    t = _pick_batch_tile(B, batch_tile, num_cores, max_tile_rows)
    Bp = _round_up(B, t)

    pad_rows, pad_cols = Bp - B, din_p - input_dim
    xp = x if (pad_rows == 0 and pad_cols == 0) else \
        jnp.pad(x, ((0, pad_rows), (0, pad_cols)))

    def rep_spec(arr):
        # Full-array block, same block every grid step (DMA'd once by the
        # pipeline since the block index never changes).
        # Note: at these weight sizes the dead second buffer is trivial; for
        # very large input_dim consider pipeline_mode=pl.Buffered(1) here.
        return pl.BlockSpec(arr.shape, lambda i: (0, 0))

    grid = (Bp // t,)
    flops = 2 * Bp * (din_p * _HIDDEN + _HIDDEN * latent_p
                      + latent_p * _HIDDEN + _HIDDEN * din_p)
    cost = pl.CostEstimate(
        flops=flops,
        transcendentals=Bp * din_p,
        bytes_accessed=Bp * din_p * (x_bytes + o_bytes) + weight_bytes,
    )

    out = pl.pallas_call(
        _ae_kernel,
        out_shape=jax.ShapeDtypeStruct((Bp, din_p), out_dtype),
        grid_spec=pltpu.PrefetchScalarGridSpec(
            num_scalar_prefetch=0,
            grid=grid,
            in_specs=[
                pl.BlockSpec((t, din_p), lambda i: (i, 0)),
                rep_spec(w1), rep_spec(b1),
                rep_spec(w2), rep_spec(b2),
                rep_spec(w3), rep_spec(b3),
                rep_spec(w4), rep_spec(b4),
            ],
            out_specs=pl.BlockSpec((t, din_p), lambda i: (i, 0)),
        ),
        compiler_params=pltpu.CompilerParams(
            dimension_semantics=("parallel",),
            vmem_limit_bytes=vmem_cap),
        cost_estimate=cost,
    )(xp, w1, b1, w2, b2, w3, b3, w4, b4)

    if Bp != B or din_p != input_dim:
        out = out[:B, :input_dim]
    return out


def init_params(key, input_dim, latent_dim, hidden=_HIDDEN):
    """PyTorch-style init: U(-1/sqrt(fan_in), 1/sqrt(fan_in))."""
    def linear(k, fan_in, fan_out):
        kw, kb = jax.random.split(k)
        bound = 1.0 / jnp.sqrt(fan_in)
        w = jax.random.uniform(kw, (fan_in, fan_out), jnp.float32, -bound, bound)
        b = jax.random.uniform(kb, (1, fan_out), jnp.float32, -bound, bound)
        return w, b

    k1, k2, k3, k4 = jax.random.split(key, 4)
    w1, b1 = linear(k1, input_dim, hidden)
    w2, b2 = linear(k2, hidden, latent_dim)
    w3, b3 = linear(k3, latent_dim, hidden)
    w4, b4 = linear(k4, hidden, input_dim)
    return dict(w1=w1, b1=b1, w2=w2, b2=b2, w3=w3, b3=b3, w4=w4, b4=b4)


def autoencoder_ref(x, p):
    h1 = jnp.maximum(x @ p["w1"] + p["b1"], 0.0)
    z = jnp.maximum(h1 @ p["w2"] + p["b2"], 0.0)
    h2 = jnp.maximum(z @ p["w3"] + p["b3"], 0.0)
    return jax.nn.sigmoid(h2 @ p["w4"] + p["b4"])


if __name__ == "__main__":
    key = jax.random.PRNGKey(0)
    kx, kp = jax.random.split(key)

    # MNIST-like input_dim (784, not 128-aligned) exercises the lane-padding
    # path; latent_dim=32 exercises the latent padding path.
    batch, input_dim, latent_dim = 256, 784, 32
    x = jax.random.uniform(kx, (batch, input_dim), jnp.float32)  # sigmoid domain
    params = init_params(kp, input_dim, latent_dim)

    out = autoencoder_forward(x, params, batch_tile=512)
    out = jax.block_until_ready(out)

    ref = autoencoder_ref(x, params)  # f32 reference
    assert out.shape == (batch, input_dim)
    # bf16 MXU inputs with f32 accumulation -> small numerical difference.
    err = float(jnp.max(jnp.abs(out - ref)))
    assert err < 2e-2, f"mismatch vs reference: {err}"

    print("KERNEL_OK")
</pallas_src>

<mosaic_0001>
module attributes {stable_mosaic.version = 11 : i64} {
  func.func @_ae_kernel(%arg0: i32, %arg1: memref<256x896xf32, #tpu.memory_space<vmem>>, %arg2: memref<896x128xbf16, #tpu.memory_space<vmem>>, %arg3: memref<1x128xf32, #tpu.memory_space<vmem>>, %arg4: memref<128x128xbf16, #tpu.memory_space<vmem>>, %arg5: memref<1x128xf32, #tpu.memory_space<vmem>>, %arg6: memref<128x128xbf16, #tpu.memory_space<vmem>>, %arg7: memref<1x128xf32, #tpu.memory_space<vmem>>, %arg8: memref<128x896xbf16, #tpu.memory_space<vmem>>, %arg9: memref<1x896xf32, #tpu.memory_space<vmem>>, %arg10: memref<256x896xf32, #tpu.memory_space<vmem>>) attributes {dimension_semantics = [#tpu.dimension_semantics<parallel>], iteration_bounds = array<i64: 1>, scalar_prefetch = 0 : i64, scratch_operands = 0 : i64, tpu.core_type = #tpu.core_type<tc>, window_params = [{transform_indices = @transform_0, window_bounds = array<i64: 256, 896>}, {pipeline_mode = #tpu.pipeline_mode<synchronous>, transform_indices = @transform_1, window_bounds = array<i64: 896, 128>}, {pipeline_mode = #tpu.pipeline_mode<synchronous>, transform_indices = @transform_2, window_bounds = array<i64: 1, 128>}, {pipeline_mode = #tpu.pipeline_mode<synchronous>, transform_indices = @transform_3, window_bounds = array<i64: 128, 128>}, {pipeline_mode = #tpu.pipeline_mode<synchronous>, transform_indices = @transform_4, window_bounds = array<i64: 1, 128>}, {pipeline_mode = #tpu.pipeline_mode<synchronous>, transform_indices = @transform_5, window_bounds = array<i64: 128, 128>}, {pipeline_mode = #tpu.pipeline_mode<synchronous>, transform_indices = @transform_6, window_bounds = array<i64: 1, 128>}, {pipeline_mode = #tpu.pipeline_mode<synchronous>, transform_indices = @transform_7, window_bounds = array<i64: 128, 896>}, {pipeline_mode = #tpu.pipeline_mode<synchronous>, transform_indices = @transform_8, window_bounds = array<i64: 1, 896>}, {transform_indices = @transform_9, window_bounds = array<i64: 256, 896>}]} {
    %c0 = arith.constant 0 : index
    %c0_0 = arith.constant 0 : index
    %0 = vector.load %arg3[%c0, %c0_0] : memref<1x128xf32, #tpu.memory_space<vmem>>, vector<1x128xf32>
    %c0_1 = arith.constant 0 : index
    %c0_2 = arith.constant 0 : index
    %1 = vector.load %arg5[%c0_1, %c0_2] : memref<1x128xf32, #tpu.memory_space<vmem>>, vector<1x128xf32>
    %c0_3 = arith.constant 0 : index
    %c0_4 = arith.constant 0 : index
    %2 = vector.load %arg7[%c0_3, %c0_4] : memref<1x128xf32, #tpu.memory_space<vmem>>, vector<1x128xf32>
    %c0_5 = arith.constant 0 : index
    %c0_6 = arith.constant 0 : index
    %3 = vector.load %arg9[%c0_5, %c0_6] : memref<1x896xf32, #tpu.memory_space<vmem>>, vector<1x896xf32>
    %c0_7 = arith.constant 0 : index
    %c0_8 = arith.constant 0 : index
    %4 = vector.load %arg1[%c0_7, %c0_8] : memref<256x896xf32, #tpu.memory_space<vmem>>, vector<256x896xf32>
    %5 = arith.truncf %4 : vector<256x896xf32> to vector<256x896xbf16>
    %c0_9 = arith.constant 0 : index
    %c0_10 = arith.constant 0 : index
    %6 = vector.load %arg2[%c0_9, %c0_10] : memref<896x128xbf16, #tpu.memory_space<vmem>>, vector<896x128xbf16>
    %cst = arith.constant dense<0.000000e+00> : vector<256x128xf32>
    %7 = tpu.matmul %5, %6, %cst {dimension_numbers = #tpu.dot_dimension_numbers<[1], [0], [0], [1], [0, 0, 1, 1], [], []>} : vector<256x896xbf16>, vector<896x128xbf16>, vector<256x128xf32> -> vector<256x128xf32>
    %8 = vector.broadcast %0 : vector<1x128xf32> to vector<256x128xf32>
    %9 = arith.addf %7, %8 : vector<256x128xf32>
    %cst_11 = arith.constant 0.000000e+00 : f32
    %10 = vector.broadcast %cst_11 : f32 to vector<256x128xf32>
    %11 = arith.maximumf %9, %10 : vector<256x128xf32>
    %12 = arith.truncf %11 : vector<256x128xf32> to vector<256x128xbf16>
    %c0_12 = arith.constant 0 : index
    %c0_13 = arith.constant 0 : index
    %13 = vector.load %arg4[%c0_12, %c0_13] : memref<128x128xbf16, #tpu.memory_space<vmem>>, vector<128x128xbf16>
    %cst_14 = arith.constant dense<0.000000e+00> : vector<256x128xf32>
    %14 = tpu.matmul %12, %13, %cst_14 {dimension_numbers = #tpu.dot_dimension_numbers<[1], [0], [0], [1], [0, 0, 1, 1], [], []>} : vector<256x128xbf16>, vector<128x128xbf16>, vector<256x128xf32> -> vector<256x128xf32>
    %15 = vector.broadcast %1 : vector<1x128xf32> to vector<256x128xf32>
    %16 = arith.addf %14, %15 : vector<256x128xf32>
    %cst_15 = arith.constant 0.000000e+00 : f32
    %17 = vector.broadcast %cst_15 : f32 to vector<256x128xf32>
    %18 = arith.maximumf %16, %17 : vector<256x128xf32>
    %19 = arith.truncf %18 : vector<256x128xf32> to vector<256x128xbf16>
    %c0_16 = arith.constant 0 : index
    %c0_17 = arith.constant 0 : index
    %20 = vector.load %arg6[%c0_16, %c0_17] : memref<128x128xbf16, #tpu.memory_space<vmem>>, vector<128x128xbf16>
    %cst_18 = arith.constant dense<0.000000e+00> : vector<256x128xf32>
    %21 = tpu.matmul %19, %20, %cst_18 {dimension_numbers = #tpu.dot_dimension_numbers<[1], [0], [0], [1], [0, 0, 1, 1], [], []>} : vector<256x128xbf16>, vector<128x128xbf16>, vector<256x128xf32> -> vector<256x128xf32>
    %22 = vector.broadcast %2 : vector<1x128xf32> to vector<256x128xf32>
    %23 = arith.addf %21, %22 : vector<256x128xf32>
    %cst_19 = arith.constant 0.000000e+00 : f32
    %24 = vector.broadcast %cst_19 : f32 to vector<256x128xf32>
    %25 = arith.maximumf %23, %24 : vector<256x128xf32>
    %26 = arith.truncf %25 : vector<256x128xf32> to vector<256x128xbf16>
    %c0_20 = arith.constant 0 : index
    %c0_21 = arith.constant 0 : index
    %27 = vector.load %arg8[%c0_20, %c0_21] : memref<128x896xbf16, #tpu.memory_space<vmem>>, vector<128x896xbf16>
    %cst_22 = arith.constant dense<0.000000e+00> : vector<256x896xf32>
    %28 = tpu.matmul %26, %27, %cst_22 {dimension_numbers = #tpu.dot_dimension_numbers<[1], [0], [0], [1], [0, 0, 1, 1], [], []>} : vector<256x128xbf16>, vector<128x896xbf16>, vector<256x896xf32> -> vector<256x896xf32>
    %29 = vector.broadcast %3 : vector<1x896xf32> to vector<256x896xf32>
    %30 = arith.addf %28, %29 : vector<256x896xf32>
    %31 = arith.negf %30 : vector<256x896xf32>
    %32 = math.exp %31 : vector<256x896xf32>
    %cst_23 = arith.constant 1.000000e+00 : f32
    %33 = vector.broadcast %cst_23 : f32 to vector<256x896xf32>
    %34 = arith.addf %33, %32 : vector<256x896xf32>
    %35 = arith.divf %33, %34 : vector<256x896xf32>
    %c0_24 = arith.constant 0 : index
    %c0_25 = arith.constant 0 : index
    %36 = vector.load %arg10[%c0_24, %c0_25] : memref<256x896xf32, #tpu.memory_space<vmem>>, vector<256x896xf32>
    tpu.vector_store %arg10[%c0_24, %c0_25], %35 {strides = array<i32>} : memref<256x896xf32, #tpu.memory_space<vmem>>, vector<256x896xf32>,
    return
  }
  func.func @transform_0(%arg0: i32) -> (i32, i32) {
    %c0_i32 = arith.constant 0 : i32
    %c0_i32_0 = arith.constant 0 : i32
    return %arg0, %c0_i32 : i32, i32
  }
  func.func @transform_1(%arg0: i32) -> (i32, i32) {
    %c0_i32 = arith.constant 0 : i32
    %c0_i32_0 = arith.constant 0 : i32
    %c0_i32_1 = arith.constant 0 : i32
    return %c0_i32, %c0_i32_0 : i32, i32
  }
  func.func @transform_2(%arg0: i32) -> (i32, i32) {
    %c0_i32 = arith.constant 0 : i32
    %c0_i32_0 = arith.constant 0 : i32
    %c0_i32_1 = arith.constant 0 : i32
    return %c0_i32, %c0_i32_0 : i32, i32
  }
  func.func @transform_3(%arg0: i32) -> (i32, i32) {
    %c0_i32 = arith.constant 0 : i32
    %c0_i32_0 = arith.constant 0 : i32
    %c0_i32_1 = arith.constant 0 : i32
    return %c0_i32, %c0_i32_0 : i32, i32
  }
  func.func @transform_4(%arg0: i32) -> (i32, i32) {
    %c0_i32 = arith.constant 0 : i32
    %c0_i32_0 = arith.constant 0 : i32
    %c0_i32_1 = arith.constant 0 : i32
    return %c0_i32, %c0_i32_0 : i32, i32
  }
  func.func @transform_5(%arg0: i32) -> (i32, i32) {
    %c0_i32 = arith.constant 0 : i32
    %c0_i32_0 = arith.constant 0 : i32
    %c0_i32_1 = arith.constant 0 : i32
    return %c0_i32, %c0_i32_0 : i32, i32
  }
  func.func @transform_6(%arg0: i32) -> (i32, i32) {
    %c0_i32 = arith.constant 0 : i32
    %c0_i32_0 = arith.constant 0 : i32
    %c0_i32_1 = arith.constant 0 : i32
    return %c0_i32, %c0_i32_0 : i32, i32
  }
  func.func @transform_7(%arg0: i32) -> (i32, i32) {
    %c0_i32 = arith.constant 0 : i32
    %c0_i32_0 = arith.constant 0 : i32
    %c0_i32_1 = arith.constant 0 : i32
    return %c0_i32, %c0_i32_0 : i32, i32
  }
  func.func @transform_8(%arg0: i32) -> (i32, i32) {
    %c0_i32 = arith.constant 0 : i32
    %c0_i32_0 = arith.constant 0 : i32
    %c0_i32_1 = arith.constant 0 : i32
    return %c0_i32, %c0_i32_0 : i32, i32
  }
  func.func @transform_9(%arg0: i32) -> (i32, i32) {
    %c0_i32 = arith.constant 0 : i32
    %c0_i32_0 = arith.constant 0 : i32
    return %arg0, %c0_i32 : i32, i32
  }
}

</mosaic_0001>

<llo_original>
// kernel: tpu_custom_call.1
$region0: #{tpu_custom_call.1}
  #allocation0 [shape = 'u32[]', space=smem, size = 0x4, offset = 0x4, fixed_abs, tag = 'smem constant byte address 0x4 - core index']
  #allocation1 [shape = 'u32[144,128]{1,0:T(1,128)}', space=vmem, size = 0x12000, scoped, tag = 'internal scratch']
  %s0 = inlined_call_operand.hbm [shape: f32[256,896], index: 0, kind: input, shape index: {}]
  %s1 = inlined_call_operand.hbm [shape: bf16[896,128], index: 1, kind: input, shape index: {}]
  %s2 = inlined_call_operand.vmem [shape: f32[1,128], index: 2, kind: input, shape index: {}]
  %s3 = inlined_call_operand.hbm [shape: bf16[128,128], index: 3, kind: input, shape index: {}]
  %s4 = inlined_call_operand.vmem [shape: f32[1,128], index: 4, kind: input, shape index: {}]
  %s5 = inlined_call_operand.hbm [shape: bf16[128,128], index: 5, kind: input, shape index: {}]
  %s6 = inlined_call_operand.vmem [shape: f32[1,128], index: 6, kind: input, shape index: {}]
  %s7 = inlined_call_operand.hbm [shape: bf16[128,896], index: 7, kind: input, shape index: {}]
  %s8 = inlined_call_operand.vmem [shape: f32[1,896], index: 8, kind: input, shape index: {}]
  %s9 = inlined_call_operand.hbm [shape: f32[256,896], index: 9, kind: output, shape index: {}]
  %s10 = sld [smem:[#allocation0]]
  $region66: #{tpu_custom_call.1} parent=0
    _
  %s12 = ssub.s32 1, %s10
  %s13 = scalar_select 0, %s12, %s10
  $region1: #{tpu_custom_call.1} parent=0
    #allocation2 [shape = 'u8[917504]{0}', space=vmem, size = 0xe0000, scoped, tag = 'input window, operand 0, single buffered']
    #allocation3 [shape = 's32[1]{0}', space=sflag, size = 0x4, scoped, tag = 'scoped memory for tpu_custom_call.1']
    #allocation4 [shape = 's32[1]{0}', space=sflag, size = 0x4, scoped, tag = 'scoped memory for tpu_custom_call.1']
    #allocation5 [shape = 'u8[229376]{0}', space=vmem, size = 0x38000, scoped, tag = 'input window, operand 1, single buffered']
    #allocation6 [shape = 's32[1]{0}', space=sflag, size = 0x4, scoped, tag = 'scoped memory for tpu_custom_call.1']
    #allocation7 [shape = 'u8[32768]{0}', space=vmem, size = 0x8000, scoped, tag = 'input window, operand 3, single buffered']
    #allocation8 [shape = 'u8[32768]{0}', space=vmem, size = 0x8000, scoped, tag = 'input window, operand 5, single buffered']
    #allocation9 [shape = 's32[1]{0}', space=sflag, size = 0x4, scoped, tag = 'scoped memory for tpu_custom_call.1']
    #allocation10 [shape = 'u8[229376]{0}', space=vmem, size = 0x38000, scoped, tag = 'input window, operand 7, single buffered']
    #allocation11 [shape = 'u8[917504]{0}', space=vmem, size = 0xe0000, scoped, tag = 'output window, operand 0, single buffered']
    %14 = vsyncpa [#allocation3], 0
    %15 = vsyncpa [#allocation6], 0
    %16 = vsyncpa [#allocation9], 0
    %17 = vsyncpa [#allocation4], 0
    // Predicated region
    $region2: #{tpu_custom_call.1} parent=1 // pred_check
      _
    $region3: #{tpu_custom_call.1} parent=1 // pred_check_branch
      %19 = sbr.rel (0) target = $region5
    $region4: #{tpu_custom_call.1} parent=1 // pred_region
      %s21 = ssub.s32 28672, 28672
      %22 = vsyncadd [#allocation3], %s21
      %s23 = sshll.u32 [#allocation2], 4
      %s24 = int_to_ptr.vmem [resolvable:$true] %s23
      %29 = dma.hbm_to_vmem [thread:$0]  %s0, 28672, %s24, [#allocation3], 896, 896, 56
    $region5: #{tpu_custom_call.1} parent=1 // pred_fallthru
      _
    // Predicated region
    $region6: #{tpu_custom_call.1} parent=1 // pred_check
      _
    $region7: #{tpu_custom_call.1} parent=1 // pred_check_branch
      %31 = sbr.rel (0) target = $region9
    $region8: #{tpu_custom_call.1} parent=1 // pred_region
      %s33 = ssub.s32 7168, 7168
      %34 = vsyncadd [#allocation6], %s33
      %s35 = sshll.u32 [#allocation5], 4
      %s36 = int_to_ptr.vmem [resolvable:$true] %s35
      %41 = dma.hbm_to_vmem [thread:$0]  %s1, 7168, %s36, [#allocation6], 64, 64, 4
    $region9: #{tpu_custom_call.1} parent=1 // pred_fallthru
      _
    // Predicated region
    $region10: #{tpu_custom_call.1} parent=1 // pred_check
      _
    $region11: #{tpu_custom_call.1} parent=1 // pred_check_branch
      %43 = sbr.rel (0) target = $region13
    $region12: #{tpu_custom_call.1} parent=1 // pred_region
      _
    $region13: #{tpu_custom_call.1} parent=1 // pred_fallthru
      _
    // Predicated region
    $region14: #{tpu_custom_call.1} parent=1 // pred_check
      _
    $region15: #{tpu_custom_call.1} parent=1 // pred_check_branch
      %45 = sbr.rel (0) target = $region17
    $region16: #{tpu_custom_call.1} parent=1 // pred_region
      %s47 = ssub.s32 1024, 1024
      %48 = vsyncadd [#allocation6], %s47
      %s49 = sshll.u32 [#allocation7], 4
      %s50 = int_to_ptr.vmem [resolvable:$true] %s49
      %55 = dma.hbm_to_vmem [thread:$0]  %s3, 1024, %s50, [#allocation6], 64, 64, 4
    $region17: #{tpu_custom_call.1} parent=1 // pred_fallthru
      _
    // Predicated region
    $region18: #{tpu_custom_call.1} parent=1 // pred_check
      _
    $region19: #{tpu_custom_call.1} parent=1 // pred_check_branch
      %57 = sbr.rel (0) target = $region21
    $region20: #{tpu_custom_call.1} parent=1 // pred_region
      _
    $region21: #{tpu_custom_call.1} parent=1 // pred_fallthru
      _
    // Predicated region
    $region22: #{tpu_custom_call.1} parent=1 // pred_check
      _
    $region23: #{tpu_custom_call.1} parent=1 // pred_check_branch
      %59 = sbr.rel (0) target = $region25
    $region24: #{tpu_custom_call.1} parent=1 // pred_region
      %s61 = ssub.s32 1024, 1024
      %62 = vsyncadd [#allocation9], %s61
      %s63 = sshll.u32 [#allocation8], 4
      %s64 = int_to_ptr.vmem [resolvable:$true] %s63
      %69 = dma.hbm_to_vmem [thread:$0]  %s5, 1024, %s64, [#allocation9], 64, 64, 4
    $region25: #{tpu_custom_call.1} parent=1 // pred_fallthru
      _
    // Predicated region
    $region26: #{tpu_custom_call.1} parent=1 // pred_check
      _
    $region27: #{tpu_custom_call.1} parent=1 // pred_check_branch
      %71 = sbr.rel (0) target = $region29
    $region28: #{tpu_custom_call.1} parent=1 // pred_region
      _
    $region29: #{tpu_custom_call.1} parent=1 // pred_fallthru
      _
    // Predicated region
    $region30: #{tpu_custom_call.1} parent=1 // pred_check
      _
    $region31: #{tpu_custom_call.1} parent=1 // pred_check_branch
      %73 = sbr.rel (0) target = $region33
    $region32: #{tpu_custom_call.1} parent=1 // pred_region
      %s75 = ssub.s32 7168, 7168
      %76 = vsyncadd [#allocation9], %s75
      %s77 = sshll.u32 [#allocation10], 4
      %s78 = int_to_ptr.vmem [resolvable:$true] %s77
      %83 = dma.hbm_to_vmem [thread:$0]  %s7, 7168, %s78, [#allocation9], 448, 448, 28
    $region33: #{tpu_custom_call.1} parent=1 // pred_fallthru
      _
    // Predicated region
    $region34: #{tpu_custom_call.1} parent=1 // pred_check
      _
    $region35: #{tpu_custom_call.1} parent=1 // pred_check_branch
      %85 = sbr.rel (0) target = $region37
    $region36: #{tpu_custom_call.1} parent=1 // pred_region
      _
    $region37: #{tpu_custom_call.1} parent=1 // pred_fallthru
      _
    // Predicated region
    $region38: #{tpu_custom_call.1} parent=1 // pred_check
      _
    $region39: #{tpu_custom_call.1} parent=1 // pred_check_branch
      %87 = sbr.rel (0) target = $region41
    $region40: #{tpu_custom_call.1} parent=1 // pred_region
      %88 = dma.done [#allocation3], 28672
    $region41: #{tpu_custom_call.1} parent=1 // pred_fallthru
      _
    // Predicated region
    $region42: #{tpu_custom_call.1} parent=1 // pred_check
      _
    $region43: #{tpu_custom_call.1} parent=1 // pred_check_branch
      %90 = sbr.rel (0) target = $region45
    $region44: #{tpu_custom_call.1} parent=1 // pred_region
      %91 = dma.done [#allocation6], 7168
    $region45: #{tpu_custom_call.1} parent=1 // pred_fallthru
      _
    // Predicated region
    $region46: #{tpu_custom_call.1} parent=1 // pred_check
      _
    $region47: #{tpu_custom_call.1} parent=1 // pred_check_branch
      %93 = sbr.rel (0) target = $region49
    $region48: #{tpu_custom_call.1} parent=1 // pred_region
      %94 = dma.done [#allocation6], 1024
    $region49: #{tpu_custom_call.1} parent=1 // pred_fallthru
      _
    // Predicated region
    $region50: #{tpu_custom_call.1} parent=1 // pred_check
      _
    $region51: #{tpu_custom_call.1} parent=1 // pred_check_branch
      %96 = sbr.rel (0) target = $region53
    $region52: #{tpu_custom_call.1} parent=1 // pred_region
      %97 = dma.done [#allocation9], 1024
    $region53: #{tpu_custom_call.1} parent=1 // pred_fallthru
      _
    // Predicated region
    $region54: #{tpu_custom_call.1} parent=1 // pred_check
      _
    $region55: #{tpu_custom_call.1} parent=1 // pred_check_branch
      %99 = sbr.rel (0) target = $region57
    $region56: #{tpu_custom_call.1} parent=1 // pred_region
      %100 = dma.done [#allocation9], 7168
    $region57: #{tpu_custom_call.1} parent=1 // pred_fallthru
      _
    %v102 = vld [vmem:[%s2] sm:$0x1]
    %v103 = vld [vmem:[%s4] sm:$0x1]
    %v104 = vld [vmem:[%s6] sm:$0x1]
    %v105 = vld [vmem:[%s8] sm:$0xff]
    %v106 = vld [vmem:[#allocation2] sm:$0xff]
    %v107 = vld [vmem:[#allocation2 + $0x8] sm:$0xff]
    %v108 = vld [vmem:[#allocation2 + $0x10] sm:$0xff]
    %v109 = vld [vmem:[#allocation2 + $0x18] sm:$0xff]
    %v110 = vld [vmem:[#allocation2 + $0x20] sm:$0xff]
    %v111 = vld [vmem:[#allocation2 + $0x28] sm:$0xff]
    %v112 = vld [vmem:[#allocation2 + $0x30] sm:$0xff]
    %v113 = vld [vmem:[#allocation2 + $0x38] sm:$0xff]
    %v114 = vld [vmem:[#allocation2 + $0x40] sm:$0xff]
    %v115 = vld [vmem:[#allocation2 + $0x48] sm:$0xff]
    %v116 = vld [vmem:[#allocation2 + $0x50] sm:$0xff]
    %v117 = vld [vmem:[#allocation2 + $0x58] sm:$0xff]
    %v118 = vld [vmem:[#allocation2 + $0x60] sm:$0xff]
    %v119 = vld [vmem:[#allocation2 + $0x68] sm:$0xff]
    %v120 = vld [vmem:[#allocation2 + $0x70] sm:$0xff]
    %v121 = vld [vmem:[#allocation2 + $0x78] sm:$0xff]
    %v122 = vld [vmem:[#allocation2 + $0x80] sm:$0xff]
    %v123 = vld [vmem:[#allocation2 + $0x88] sm:$0xff]
    %v124 = vld [vmem:[#allocation2 + $0x90] sm:$0xff]
    %v125 = vld [vmem:[#allocation2 + $0x98] sm:$0xff]
    %v126 = vld [vmem:[#allocation2 + $0xa0] sm:$0xff]
    %v127 = vld [vmem:[#allocation2 + $0xa8] sm:$0xff]
    %v128 = vld [vmem:[#allocation2 + $0xb0] sm:$0xff]
    %v129 = vld [vmem:[#allocation2 + $0xb8] sm:$0xff]
    %v130 = vld [vmem:[#allocation2 + $0xc0] sm:$0xff]
    %v131 = vld [vmem:[#allocation2 + $0xc8] sm:$0xff]
    %v132 = vld [vmem:[#allocation2 + $0xd0] sm:$0xff]
    %v133 = vld [vmem:[#allocation2 + $0xd8] sm:$0xff]
    %v134 = vld [vmem:[#allocation2 + $0xe0] sm:$0xff]
    %v135 = vld [vmem:[#allocation2 + $0xe8] sm:$0xff]
    %v136 = vld [vmem:[#allocation2 + $0xf0] sm:$0xff]
    %v137 = vld [vmem:[#allocation2 + $0xf8] sm:$0xff]
    %v138 = vld [vmem:[#allocation2 + $0x100] sm:$0xff]
    %v139 = vld [vmem:[#allocation2 + $0x108] sm:$0xff]
    %v140 = vld [vmem:[#allocation2 + $0x110] sm:$0xff]
    %v141 = vld [vmem:[#allocation2 + $0x118] sm:$0xff]
    %v142 = vld [vmem:[#allocation2 + $0x120] sm:$0xff]
    %v143 = vld [vmem:[#allocation2 + $0x128] sm:$0xff]
    %v144 = vld [vmem:[#allocation2 + $0x130] sm:$0xff]
    %v145 = vld [vmem:[#allocation2 + $0x138] sm:$0xff]
    %v146 = vld [vmem:[#allocation2 + $0x140] sm:$0xff]
    %v147 = vld [vmem:[#allocation2 + $0x148] sm:$0xff]
    %v148 = vld [vmem:[#allocation2 + $0x150] sm:$0xff]
    %v149 = vld [vmem:[#allocation2 + $0x158] sm:$0xff]
    %v150 = vld [vmem:[#allocation2 + $0x160] sm:$0xff]
    %v151 = vld [vmem:[#allocation2 + $0x168] sm:$0xff]
    %v152 = vld [vmem:[#allocation2 + $0x170] sm:$0xff]
    %v153 = vld [vmem:[#allocation2 + $0x178] sm:$0xff]
    %v154 = vld [vmem:[#allocation2 + $0x180] sm:$0xff]
    %v155 = vld [vmem:[#allocation2 + $0x188] sm:$0xff]
    %v156 = vld [vmem:[#allocation2 + $0x190] sm:$0xff]
    %v157 = vld [vmem:[#allocation2 + $0x198] sm:$0xff]
    %v158 = vld [vmem:[#allocation2 + $0x1a0] sm:$0xff]
    %v159 = vld [vmem:[#allocation2 + $0x1a8] sm:$0xff]
    %v160 = vld [vmem:[#allocation2 + $0x1b0] sm:$0xff]
    %v161 = vld [vmem:[#allocation2 + $0x1b8] sm:$0xff]
    %v162 = vld [vmem:[#allocation2 + $0x1c0] sm:$0xff]
    %v163 = vld [vmem:[#allocation2 + $0x1c8] sm:$0xff]
    %v164 = vld [vmem:[#allocation2 + $0x1d0] sm:$0xff]
    %v165 = vld [vmem:[#allocation2 + $0x1d8] sm:$0xff]
    %v166 = vld [vmem:[#allocation2 + $0x1e0] sm:$0xff]
    %v167 = vld [vmem:[#allocation2 + $0x1e8] sm:$0xff]
    %v168 = vld [vmem:[#allocation2 + $0x1f0] sm:$0xff]
    %v169 = vld [vmem:[#allocation2 + $0x1f8] sm:$0xff]
    %v170 = vld [vmem:[#allocation2 + $0x200] sm:$0xff]
    %v171 = vld [vmem:[#allocation2 + $0x208] sm:$0xff]
    %v172 = vld [vmem:[#allocation2 + $0x210] sm:$0xff]
    %v173 = vld [vmem:[#allocation2 + $0x218] sm:$0xff]
    %v174 = vld [vmem:[#allocation2 + $0x220] sm:$0xff]
    %v175 = vld [vmem:[#allocation2 + $0x228] sm:$0xff]
    %v176 = vld [vmem:[#allocation2 + $0x230] sm:$0xff]
    %v177 = vld [vmem:[#allocation2 + $0x238] sm:$0xff]
    %v178 = vld [vmem:[#allocation2 + $0x240] sm:$0xff]
    %v179 = vld [vmem:[#allocation2 + $0x248] sm:$0xff]
    %v180 = vld [vmem:[#allocation2 + $0x250] sm:$0xff]
    %v181 = vld [vmem:[#allocation2 + $0x258] sm:$0xff]
    %v182 = vld [vmem:[#allocation2 + $0x260] sm:$0xff]
    %v183 = vld [vmem:[#allocation2 + $0x268] sm:$0xff]
    %v184 = vld [vmem:[#allocation2 + $0x270] sm:$0xff]
    %v185 = vld [vmem:[#allocation2 + $0x278] sm:$0xff]
    %v186 = vld [vmem:[#allocation2 + $0x280] sm:$0xff]
    %v187 = vld [vmem:[#allocation2 + $0x288] sm:$0xff]
    %v188 = vld [vmem:[#allocation2 + $0x290] sm:$0xff]
    %v189 = vld [vmem:[#allocation2 + $0x298] sm:$0xff]
    %v190 = vld [vmem:[#allocation2 + $0x2a0] sm:$0xff]
    %v191 = vld [vmem:[#allocation2 + $0x2a8] sm:$0xff]
    %v192 = vld [vmem:[#allocation2 + $0x2b0] sm:$0xff]
    %v193 = vld [vmem:[#allocation2 + $0x2b8] sm:$0xff]
    %v194 = vld [vmem:[#allocation2 + $0x2c0] sm:$0xff]
    %v195 = vld [vmem:[#allocation2 + $0x2c8] sm:$0xff]
    %v196 = vld [vmem:[#allocation2 + $0x2d0] sm:$0xff]
    %v197 = vld [vmem:[#allocation2 + $0x2d8] sm:$0xff]
    %v198 = vld [vmem:[#allocation2 + $0x2e0] sm:$0xff]
    %v199 = vld [vmem:[#allocation2 + $0x2e8] sm:$0xff]
    %v200 = vld [vmem:[#allocation2 + $0x2f0] sm:$0xff]
    %v201 = vld [vmem:[#allocation2 + $0x2f8] sm:$0xff]
    %v202 = vld [vmem:[#allocation2 + $0x300] sm:$0xff]
    %v203 = vld [vmem:[#allocation2 + $0x308] sm:$0xff]
    %v204 = vld [vmem:[#allocation2 + $0x310] sm:$0xff]
    %v205 = vld [vmem:[#allocation2 + $0x318] sm:$0xff]
    %v206 = vld [vmem:[#allocation2 + $0x320] sm:$0xff]
    %v207 = vld [vmem:[#allocation2 + $0x328] sm:$0xff]
    %v208 = vld [vmem:[#allocation2 + $0x330] sm:$0xff]
    %v209 = vld [vmem:[#allocation2 + $0x338] sm:$0xff]
    %v210 = vld [vmem:[#allocation2 + $0x340] sm:$0xff]
    %v211 = vld [vmem:[#allocation2 + $0x348] sm:$0xff]
    %v212 = vld [vmem:[#allocation2 + $0x350] sm:$0xff]
    %v213 = vld [vmem:[#allocation2 + $0x358] sm:$0xff]
    %v214 = vld [vmem:[#allocation2 + $0x360] sm:$0xff]
    %v215 = vld [vmem:[#allocation2 + $0x368] sm:$0xff]
    %v216 = vld [vmem:[#allocation2 + $0x370] sm:$0xff]
    %v217 = vld [vmem:[#allocation2 + $0x378] sm:$0xff]
    %v218 = vld [vmem:[#allocation2 + $0x380] sm:$0xff]
    %v219 = vld [vmem:[#allocation2 + $0x388] sm:$0xff]
    %v220 = vld [vmem:[#allocation2 + $0x390] sm:$0xff]
    %v221 = vld [vmem:[#allocation2 + $0x398] sm:$0xff]
    %v222 = vld [vmem:[#allocation2 + $0x3a0] sm:$0xff]
    %v223 = vld [vmem:[#allocation2 + $0x3a8] sm:$0xff]
    %v224 = vld [vmem:[#allocation2 + $0x3b0] sm:$0xff]
    %v225 = vld [vmem:[#allocation2 + $0x3b8] sm:$0xff]
    %v226 = vld [vmem:[#allocation2 + $0x3c0] sm:$0xff]
    %v227 = vld [vmem:[#allocation2 + $0x3c8] sm:$0xff]
    %v228 = vld [vmem:[#allocation2 + $0x3d0] sm:$0xff]
    %v229 = vld [vmem:[#allocation2 + $0x3d8] sm:$0xff]
    %v230 = vld [vmem:[#allocation2 + $0x3e0] sm:$0xff]
    %v231 = vld [vmem:[#allocation2 + $0x3e8] sm:$0xff]
    %v232 = vld [vmem:[#allocation2 + $0x3f0] sm:$0xff]
    %v233 = vld [vmem:[#allocation2 + $0x3f8] sm:$0xff]
    %v234 = vld [vmem:[#allocation2 + $0x400] sm:$0xff]
    %v235 = vld [vmem:[#allocation2 + $0x408] sm:$0xff]
    %v236 = vld [vmem:[#allocation2 + $0x410] sm:$0xff]
    %v237 = vld [vmem:[#allocation2 + $0x418] sm:$0xff]
    %v238 = vld [vmem:[#allocation2 + $0x420] sm:$0xff]
    %v239 = vld [vmem:[#allocation2 + $0x428] sm:$0xff]
    %v240 = vld [vmem:[#allocation2 + $0x430] sm:$0xff]
    %v241 = vld [vmem:[#allocation2 + $0x438] sm:$0xff]
    %v242 = vld [vmem:[#allocation2 + $0x440] sm:$0xff]
    %v243 = vld [vmem:[#allocation2 + $0x448] sm:$0xff]
    %v244 = vld [vmem:[#allocation2 + $0x450] sm:$0xff]
    %v245 = vld [vmem:[#allocation2 + $0x458] sm:$0xff]
    %v246 = vld [vmem:[#allocation2 + $0x460] sm:$0xff]
    %v247 = vld [vmem:[#allocation2 + $0x468] sm:$0xff]
    %v248 = vld [vmem:[#allocation2 + $0x470] sm:$0xff]
    %v249 = vld [vmem:[#allocation2 + $0x478] sm:$0xff]
    %v250 = vld [vmem:[#allocation2 + $0x480] sm:$0xff]
    %v251 = vld [vmem:[#allocation2 + $0x488] sm:$0xff]
    %v252 = vld [vmem:[#allocation2 + $0x490] sm:$0xff]
    %v253 = vld [vmem:[#allocation2 + $0x498] sm:$0xff]
    %v254 = vld [vmem:[#allocation2 + $0x4a0] sm:$0xff]
    %v255 = vld [vmem:[#allocation2 + $0x4a8] sm:$0xff]
    %v256 = vld [vmem:[#allocation2 + $0x4b0] sm:$0xff]
    %v257 = vld [vmem:[#allocation2 + $0x4b8] sm:$0xff]
    %v258 = vld [vmem:[#allocation2 + $0x4c0] sm:$0xff]
    %v259 = vld [vmem:[#allocation2 + $0x4c8] sm:$0xff]
    %v260 = vld [vmem:[#allocation2 + $0x4d0] sm:$0xff]
    %v261 = vld [vmem:[#allocation2 + $0x4d8] sm:$0xff]
    %v262 = vld [vmem:[#allocation2 + $0x4e0] sm:$0xff]
    %v263 = vld [vmem:[#allocation2 + $0x4e8] sm:$0xff]
    %v264 = vld [vmem:[#allocation2 + $0x4f0] sm:$0xff]
    %v265 = vld [vmem:[#allocation2 + $0x4f8] sm:$0xff]
    %v266 = vld [vmem:[#allocation2 + $0x500] sm:$0xff]
    %v267 = vld [vmem:[#allocation2 + $0x508] sm:$0xff]
    %v268 = vld [vmem:[#allocation2 + $0x510] sm:$0xff]
    %v269 = vld [vmem:[#allocation2 + $0x518] sm:$0xff]
    %v270 = vld [vmem:[#allocation2 + $0x520] sm:$0xff]
    %v271 = vld [vmem:[#allocation2 + $0x528] sm:$0xff]
    %v272 = vld [vmem:[#allocation2 + $0x530] sm:$0xff]
    %v273 = vld [vmem:[#allocation2 + $0x538] sm:$0xff]
    %v274 = vld [vmem:[#allocation2 + $0x540] sm:$0xff]
    %v275 = vld [vmem:[#allocation2 + $0x548] sm:$0xff]
    %v276 = vld [vmem:[#allocation2 + $0x550] sm:$0xff]
    %v277 = vld [vmem:[#allocation2 + $0x558] sm:$0xff]
    %v278 = vld [vmem:[#allocation2 + $0x560] sm:$0xff]
    %v279 = vld [vmem:[#allocation2 + $0x568] sm:$0xff]
    %v280 = vld [vmem:[#allocation2 + $0x570] sm:$0xff]
    %v281 = vld [vmem:[#allocation2 + $0x578] sm:$0xff]
    %v282 = vld [vmem:[#allocation2 + $0x580] sm:$0xff]
    %v283 = vld [vmem:[#allocation2 + $0x588] sm:$0xff]
    %v284 = vld [vmem:[#allocation2 + $0x590] sm:$0xff]
    %v285 = vld [vmem:[#allocation2 + $0x598] sm:$0xff]
    %v286 = vld [vmem:[#allocation2 + $0x5a0] sm:$0xff]
    %v287 = vld [vmem:[#allocation2 + $0x5a8] sm:$0xff]
    %v288 = vld [vmem:[#allocation2 + $0x5b0] sm:$0xff]
    %v289 = vld [vmem:[#allocation2 + $0x5b8] sm:$0xff]
    %v290 = vld [vmem:[#allocation2 + $0x5c0] sm:$0xff]
    %v291 = vld [vmem:[#allocation2 + $0x5c8] sm:$0xff]
    %v292 = vld [vmem:[#allocation2 + $0x5d0] sm:$0xff]
    %v293 = vld [vmem:[#allocation2 + $0x5d8] sm:$0xff]
    %v294 = vld [vmem:[#allocation2 + $0x5e0] sm:$0xff]
    %v295 = vld [vmem:[#allocation2 + $0x5e8] sm:$0xff]
    %v296 = vld [vmem:[#allocation2 + $0x5f0] sm:$0xff]
    %v297 = vld [vmem:[#allocation2 + $0x5f8] sm:$0xff]
    %v298 = vld [vmem:[#allocation2 + $0x600] sm:$0xff]
    %v299 = vld [vmem:[#allocation2 + $0x608] sm:$0xff]
    %v300 = vld [vmem:[#allocation2 + $0x610] sm:$0xff]
    %v301 = vld [vmem:[#allocation2 + $0x618] sm:$0xff]
    %v302 = vld [vmem:[#allocation2 + $0x620] sm:$0xff]
    %v303 = vld [vmem:[#allocation2 + $0x628] sm:$0xff]
    %v304 = vld [vmem:[#allocation2 + $0x630] sm:$0xff]
    %v305 = vld [vmem:[#allocation2 + $0x638] sm:$0xff]
    %v306 = vld [vmem:[#allocation2 + $0x640] sm:$0xff]
    %v307 = vld [vmem:[#allocation2 + $0x648] sm:$0xff]
    %v308 = vld [vmem:[#allocation2 + $0x650] sm:$0xff]
    %v309 = vld [vmem:[#allocation2 + $0x658] sm:$0xff]
    %v310 = vld [vmem:[#allocation2 + $0x660] sm:$0xff]
    %v311 = vld [vmem:[#allocation2 + $0x668] sm:$0xff]
    %v312 = vld [vmem:[#allocation2 + $0x670] sm:$0xff]
    %v313 = vld [vmem:[#allocation2 + $0x678] sm:$0xff]
    %v314 = vld [vmem:[#allocation2 + $0x680] sm:$0xff]
    %v315 = vld [vmem:[#allocation2 + $0x688] sm:$0xff]
    %v316 = vld [vmem:[#allocation2 + $0x690] sm:$0xff]
    %v317 = vld [vmem:[#allocation2 + $0x698] sm:$0xff]
    %v318 = vld [vmem:[#allocation2 + $0x6a0] sm:$0xff]
    %v319 = vld [vmem:[#allocation2 + $0x6a8] sm:$0xff]
    %v320 = vld [vmem:[#allocation2 + $0x6b0] sm:$0xff]
    %v321 = vld [vmem:[#allocation2 + $0x6b8] sm:$0xff]
    %v322 = vld [vmem:[#allocation2 + $0x6c0] sm:$0xff]
    %v323 = vld [vmem:[#allocation2 + $0x6c8] sm:$0xff]
    %v324 = vld [vmem:[#allocation2 + $0x6d0] sm:$0xff]
    %v325 = vld [vmem:[#allocation2 + $0x6d8] sm:$0xff]
    %v326 = vld [vmem:[#allocation2 + $0x6e0] sm:$0xff]
    %v327 = vld [vmem:[#allocation2 + $0x6e8] sm:$0xff]
    %v328 = vld [vmem:[#allocation2 + $0x6f0] sm:$0xff]
    %v329 = vld [vmem:[#allocation2 + $0x6f8] sm:$0xff]
    %v330 = vpack.c.bf16 %v113, %v106
    %v331 = vpack.c.bf16 %v114, %v107
    %v332 = vpack.c.bf16 %v115, %v108
    %v333 = vpack.c.bf16 %v116, %v109
    %v334 = vpack.c.bf16 %v117, %v110
    %v335 = vpack.c.bf16 %v118, %v111
    %v336 = vpack.c.bf16 %v119, %v112
    %v337 = vpack.c.bf16 %v127, %v120
    %v338 = vpack.c.bf16 %v128, %v121
    %v339 = vpack.c.bf16 %v129, %v122
    %v340 = vpack.c.bf16 %v130, %v123
    %v341 = vpack.c.bf16 %v131, %v124
    %v342 = vpack.c.bf16 %v132, %v125
    %v343 = vpack.c.bf16 %v133, %v126
    %v344 = vpack.c.bf16 %v141, %v134
    %v345 = vpack.c.bf16 %v142, %v135
    %v346 = vpack.c.bf16 %v143, %v136
    %v347 = vpack.c.bf16 %v144, %v137
    %v348 = vpack.c.bf16 %v145, %v138
    %v349 = vpack.c.bf16 %v146, %v139
    %v350 = vpack.c.bf16 %v147, %v140
    %v351 = vpack.c.bf16 %v155, %v148
    %v352 = vpack.c.bf16 %v156, %v149
    %v353 = vpack.c.bf16 %v157, %v150
    %v354 = vpack.c.bf16 %v158, %v151
    %v355 = vpack.c.bf16 %v159, %v152
    %v356 = vpack.c.bf16 %v160, %v153
    %v357 = vpack.c.bf16 %v161, %v154
    %v358 = vpack.c.bf16 %v169, %v162
    %v359 = vpack.c.bf16 %v170, %v163
    %v360 = vpack.c.bf16 %v171, %v164
    %v361 = vpack.c.bf16 %v172, %v165
    %v362 = vpack.c.bf16 %v173, %v166
    %v363 = vpack.c.bf16 %v174, %v167
    %v364 = vpack.c.bf16 %v175, %v168
    %v365 = vpack.c.bf16 %v183, %v176
    %v366 = vpack.c.bf16 %v184, %v177
    %v367 = vpack.c.bf16 %v185, %v178
    %v368 = vpack.c.bf16 %v186, %v179
    %v369 = vpack.c.bf16 %v187, %v180
    %v370 = vpack.c.bf16 %v188, %v181
    %v371 = vpack.c.bf16 %v189, %v182
    %v372 = vpack.c.bf16 %v197, %v190
    %v373 = vpack.c.bf16 %v198, %v191
    %v374 = vpack.c.bf16 %v199, %v192
    %v375 = vpack.c.bf16 %v200, %v193
    %v376 = vpack.c.bf16 %v201, %v194
    %v377 = vpack.c.bf16 %v202, %v195
    %v378 = vpack.c.bf16 %v203, %v196
    %v379 = vpack.c.bf16 %v211, %v204
    %v380 = vpack.c.bf16 %v212, %v205
    %v381 = vpack.c.bf16 %v213, %v206
    %v382 = vpack.c.bf16 %v214, %v207
    %v383 = vpack.c.bf16 %v215, %v208
    %v384 = vpack.c.bf16 %v216, %v209
    %v385 = vpack.c.bf16 %v217, %v210
    %v386 = vpack.c.bf16 %v225, %v218
    %v387 = vpack.c.bf16 %v226, %v219
    %v388 = vpack.c.bf16 %v227, %v220
    %v389 = vpack.c.bf16 %v228, %v221
    %v390 = vpack.c.bf16 %v229, %v222
    %v391 = vpack.c.bf16 %v230, %v223
    %v392 = vpack.c.bf16 %v231, %v224
    %v393 = vpack.c.bf16 %v239, %v232
    %v394 = vpack.c.bf16 %v240, %v233
    %v395 = vpack.c.bf16 %v241, %v234
    %v396 = vpack.c.bf16 %v242, %v235
    %v397 = vpack.c.bf16 %v243, %v236
    %v398 = vpack.c.bf16 %v244, %v237
    %v399 = vpack.c.bf16 %v245, %v238
    %v400 = vpack.c.bf16 %v253, %v246
    %v401 = vpack.c.bf16 %v254, %v247
    %v402 = vpack.c.bf16 %v255, %v248
    %v403 = vpack.c.bf16 %v256, %v249
    %v404 = vpack.c.bf16 %v257, %v250
    %v405 = vpack.c.bf16 %v258, %v251
    %v406 = vpack.c.bf16 %v259, %v252
    %v407 = vpack.c.bf16 %v267, %v260
    %v408 = vpack.c.bf16 %v268, %v261
    %v409 = vpack.c.bf16 %v269, %v262
    %v410 = vpack.c.bf16 %v270, %v263
    %v411 = vpack.c.bf16 %v271, %v264
    %v412 = vpack.c.bf16 %v272, %v265
    %v413 = vpack.c.bf16 %v273, %v266
    %v414 = vpack.c.bf16 %v281, %v274
    %v415 = vpack.c.bf16 %v282, %v275
    %v416 = vpack.c.bf16 %v283, %v276
    %v417 = vpack.c.bf16 %v284, %v277
    %v418 = vpack.c.bf16 %v285, %v278
    %v419 = vpack.c.bf16 %v286, %v279
    %v420 = vpack.c.bf16 %v287, %v280
    %v421 = vpack.c.bf16 %v295, %v288
    %v422 = vpack.c.bf16 %v296, %v289
    %v423 = vpack.c.bf16 %v297, %v290
    %v424 = vpack.c.bf16 %v298, %v291
    %v425 = vpack.c.bf16 %v299, %v292
    %v426 = vpack.c.bf16 %v300, %v293
    %v427 = vpack.c.bf16 %v301, %v294
    %v428 = vpack.c.bf16 %v309, %v302
    %v429 = vpack.c.bf16 %v310, %v303
    %v430 = vpack.c.bf16 %v311, %v304
    %v431 = vpack.c.bf16 %v312, %v305
    %v432 = vpack.c.bf16 %v313, %v306
    %v433 = vpack.c.bf16 %v314, %v307
    %v434 = vpack.c.bf16 %v315, %v308
    %v435 = vpack.c.bf16 %v323, %v316
    %v436 = vpack.c.bf16 %v324, %v317
    %v437 = vpack.c.bf16 %v325, %v318
    %v438 = vpack.c.bf16 %v326, %v319
    %v439 = vpack.c.bf16 %v327, %v320
    %v440 = vpack.c.bf16 %v328, %v321
    %v441 = vpack.c.bf16 %v329, %v322
    %v442 = vld [vmem:[#allocation5] sm:$0xf]
    %v443 = vld [vmem:[#allocation5 + $0x4] sm:$0xf]
    %v444 = vld [vmem:[#allocation5 + $0x8] sm:$0xf]
    %v445 = vld [vmem:[#allocation5 + $0xc] sm:$0xf]
    %v446 = vld [vmem:[#allocation5 + $0x10] sm:$0xf]
    %v447 = vld [vmem:[#allocation5 + $0x14] sm:$0xf]
    %v448 = vld [vmem:[#allocation5 + $0x18] sm:$0xf]
    %v449 = vld [vmem:[#allocation5 + $0x1c] sm:$0xf]
    %v450 = vld [vmem:[#allocation5 + $0x20] sm:$0xf]
    %v451 = vld [vmem:[#allocation5 + $0x24] sm:$0xf]
    %v452 = vld [vmem:[#allocation5 + $0x28] sm:$0xf]
    %v453 = vld [vmem:[#allocation5 + $0x2c] sm:$0xf]
    %v454 = vld [vmem:[#allocation5 + $0x30] sm:$0xf]
    %v455 = vld [vmem:[#allocation5 + $0x34] sm:$0xf]
    %v456 = vld [vmem:[#allocation5 + $0x38] sm:$0xf]
    %v457 = vld [vmem:[#allocation5 + $0x3c] sm:$0xf]
    %v458 = vld [vmem:[#allocation5 + $0x40] sm:$0xf]
    %v459 = vld [vmem:[#allocation5 + $0x44] sm:$0xf]
    %v460 = vld [vmem:[#allocation5 + $0x48] sm:$0xf]
    %v461 = vld [vmem:[#allocation5 + $0x4c] sm:$0xf]
    %v462 = vld [vmem:[#allocation5 + $0x50] sm:$0xf]
    %v463 = vld [vmem:[#allocation5 + $0x54] sm:$0xf]
    %v464 = vld [vmem:[#allocation5 + $0x58] sm:$0xf]
    %v465 = vld [vmem:[#allocation5 + $0x5c] sm:$0xf]
    %v466 = vld [vmem:[#allocation5 + $0x60] sm:$0xf]
    %v467 = vld [vmem:[#allocation5 + $0x64] sm:$0xf]
    %v468 = vld [vmem:[#allocation5 + $0x68] sm:$0xf]
    %v469 = vld [vmem:[#allocation5 + $0x6c] sm:$0xf]
    %v470 = vld [vmem:[#allocation5 + $0x70] sm:$0xf]
    %v471 = vld [vmem:[#allocation5 + $0x74] sm:$0xf]
    %v472 = vld [vmem:[#allocation5 + $0x78] sm:$0xf]
    %v473 = vld [vmem:[#allocation5 + $0x7c] sm:$0xf]
    %v474 = vld [vmem:[#allocation5 + $0x80] sm:$0xf]
    %v475 = vld [vmem:[#allocation5 + $0x84] sm:$0xf]
    %v476 = vld [vmem:[#allocation5 + $0x88] sm:$0xf]
    %v477 = vld [vmem:[#allocation5 + $0x8c] sm:$0xf]
    %v478 = vld [vmem:[#allocation5 + $0x90] sm:$0xf]
    %v479 = vld [vmem:[#allocation5 + $0x94] sm:$0xf]
    %v480 = vld [vmem:[#allocation5 + $0x98] sm:$0xf]
    %v481 = vld [vmem:[#allocation5 + $0x9c] sm:$0xf]
    %v482 = vld [vmem:[#allocation5 + $0xa0] sm:$0xf]
    %v483 = vld [vmem:[#allocation5 + $0xa4] sm:$0xf]
    %v484 = vld [vmem:[#allocation5 + $0xa8] sm:$0xf]
    %v485 = vld [vmem:[#allocation5 + $0xac] sm:$0xf]
    %v486 = vld [vmem:[#allocation5 + $0xb0] sm:$0xf]
    %v487 = vld [vmem:[#allocation5 + $0xb4] sm:$0xf]
    %v488 = vld [vmem:[#allocation5 + $0xb8] sm:$0xf]
    %v489 = vld [vmem:[#allocation5 + $0xbc] sm:$0xf]
    %v490 = vld [vmem:[#allocation5 + $0xc0] sm:$0xf]
    %v491 = vld [vmem:[#allocation5 + $0xc4] sm:$0xf]
    %v492 = vld [vmem:[#allocation5 + $0xc8] sm:$0xf]
    %v493 = vld [vmem:[#allocation5 + $0xcc] sm:$0xf]
    %v494 = vld [vmem:[#allocation5 + $0xd0] sm:$0xf]
    %v495 = vld [vmem:[#allocation5 + $0xd4] sm:$0xf]
    %v496 = vld [vmem:[#allocation5 + $0xd8] sm:$0xf]
    %v497 = vld [vmem:[#allocation5 + $0xdc] sm:$0xf]
    %v498 = vld [vmem:[#allocation5 + $0xe0] sm:$0xf]
    %v499 = vld [vmem:[#allocation5 + $0xe4] sm:$0xf]
    %v500 = vld [vmem:[#allocation5 + $0xe8] sm:$0xf]
    %v501 = vld [vmem:[#allocation5 + $0xec] sm:$0xf]
    %v502 = vld [vmem:[#allocation5 + $0xf0] sm:$0xf]
    %v503 = vld [vmem:[#allocation5 + $0xf4] sm:$0xf]
    %v504 = vld [vmem:[#allocation5 + $0xf8] sm:$0xf]
    %v505 = vld [vmem:[#allocation5 + $0xfc] sm:$0xf]
    %v506 = vld [vmem:[#allocation5 + $0x100] sm:$0xf]
    %v507 = vld [vmem:[#allocation5 + $0x104] sm:$0xf]
    %v508 = vld [vmem:[#allocation5 + $0x108] sm:$0xf]
    %v509 = vld [vmem:[#allocation5 + $0x10c] sm:$0xf]
    %v510 = vld [vmem:[#allocation5 + $0x110] sm:$0xf]
    %v511 = vld [vmem:[#allocation5 + $0x114] sm:$0xf]
    %v512 = vld [vmem:[#allocation5 + $0x118] sm:$0xf]
    %v513 = vld [vmem:[#allocation5 + $0x11c] sm:$0xf]
    %v514 = vld [vmem:[#allocation5 + $0x120] sm:$0xf]
    %v515 = vld [vmem:[#allocation5 + $0x124] sm:$0xf]
    %v516 = vld [vmem:[#allocation5 + $0x128] sm:$0xf]
    %v517 = vld [vmem:[#allocation5 + $0x12c] sm:$0xf]
    %v518 = vld [vmem:[#allocation5 + $0x130] sm:$0xf]
    %v519 = vld [vmem:[#allocation5 + $0x134] sm:$0xf]
    %v520 = vld [vmem:[#allocation5 + $0x138] sm:$0xf]
    %v521 = vld [vmem:[#allocation5 + $0x13c] sm:$0xf]
    %v522 = vld [vmem:[#allocation5 + $0x140] sm:$0xf]
    %v523 = vld [vmem:[#allocation5 + $0x144] sm:$0xf]
    %v524 = vld [vmem:[#allocation5 + $0x148] sm:$0xf]
    %v525 = vld [vmem:[#allocation5 + $0x14c] sm:$0xf]
    %v526 = vld [vmem:[#allocation5 + $0x150] sm:$0xf]
    %v527 = vld [vmem:[#allocation5 + $0x154] sm:$0xf]
    %v528 = vld [vmem:[#allocation5 + $0x158] sm:$0xf]
    %v529 = vld [vmem:[#allocation5 + $0x15c] sm:$0xf]
    %v530 = vld [vmem:[#allocation5 + $0x160] sm:$0xf]
    %v531 = vld [vmem:[#allocation5 + $0x164] sm:$0xf]
    %v532 = vld [vmem:[#allocation5 + $0x168] sm:$0xf]
    %v533 = vld [vmem:[#allocation5 + $0x16c] sm:$0xf]
    %v534 = vld [vmem:[#allocation5 + $0x170] sm:$0xf]
    %v535 = vld [vmem:[#allocation5 + $0x174] sm:$0xf]
    %v536 = vld [vmem:[#allocation5 + $0x178] sm:$0xf]
    %v537 = vld [vmem:[#allocation5 + $0x17c] sm:$0xf]
    %v538 = vld [vmem:[#allocation5 + $0x180] sm:$0xf]
    %v539 = vld [vmem:[#allocation5 + $0x184] sm:$0xf]
    %v540 = vld [vmem:[#allocation5 + $0x188] sm:$0xf]
    %v541 = vld [vmem:[#allocation5 + $0x18c] sm:$0xf]
    %v542 = vld [vmem:[#allocation5 + $0x190] sm:$0xf]
    %v543 = vld [vmem:[#allocation5 + $0x194] sm:$0xf]
    %v544 = vld [vmem:[#allocation5 + $0x198] sm:$0xf]
    %v545 = vld [vmem:[#allocation5 + $0x19c] sm:$0xf]
    %v546 = vld [vmem:[#allocation5 + $0x1a0] sm:$0xf]
    %v547 = vld [vmem:[#allocation5 + $0x1a4] sm:$0xf]
    %v548 = vld [vmem:[#allocation5 + $0x1a8] sm:$0xf]
    %v549 = vld [vmem:[#allocation5 + $0x1ac] sm:$0xf]
    %v550 = vld [vmem:[#allocation5 + $0x1b0] sm:$0xf]
    %v551 = vld [vmem:[#allocation5 + $0x1b4] sm:$0xf]
    %v552 = vld [vmem:[#allocation5 + $0x1b8] sm:$0xf]
    %v553 = vld [vmem:[#allocation5 + $0x1bc] sm:$0xf]
    %v555 = vlaneseq
    %v556 = vshrl.u32 %v555, 7
    %v557 = vsub.s32 0, %v556
    %v558 = vrot.slane %v102, %v557
    %v672 = vunpack.c.l.b16 %v442
    %v673 = vunpack.c.l.b16 %v443
    %v674 = vunpack.c.l.b16 %v444
    %v675 = vunpack.c.l.b16 %v445
    %v676 = vunpack.c.l.b16 %v446
    %v677 = vunpack.c.l.b16 %v447
    %v678 = vunpack.c.l.b16 %v448
    %v679 = vunpack.c.l.b16 %v449
    %v680 = vunpack.c.l.b16 %v450
    %v681 = vunpack.c.l.b16 %v451
    %v682 = vunpack.c.l.b16 %v452
    %v683 = vunpack.c.l.b16 %v453
    %v684 = vunpack.c.l.b16 %v454
    %v685 = vunpack.c.l.b16 %v455
    %v686 = vunpack.c.l.b16 %v456
    %v687 = vunpack.c.l.b16 %v457
    %v688 = vunpack.c.l.b16 %v458
    %v689 = vunpack.c.l.b16 %v459
    %v690 = vunpack.c.l.b16 %v460
    %v691 = vunpack.c.l.b16 %v461
    %v692 = vunpack.c.l.b16 %v462
    %v693 = vunpack.c.l.b16 %v463
    %v694 = vunpack.c.l.b16 %v464
    %v695 = vunpack.c.l.b16 %v465
    %v696 = vunpack.c.l.b16 %v466
    %v697 = vunpack.c.l.b16 %v467
    %v698 = vunpack.c.l.b16 %v468
    %v699 = vunpack.c.l.b16 %v469
    %v700 = vunpack.c.l.b16 %v470
    %v701 = vunpack.c.l.b16 %v471
    %v702 = vunpack.c.l.b16 %v472
    %v703 = vunpack.c.l.b16 %v473
    %v704 = vunpack.c.l.b16 %v474
    %v705 = vunpack.c.l.b16 %v475
    %v706 = vunpack.c.l.b16 %v476
    %v707 = vunpack.c.l.b16 %v477
    %v708 = vunpack.c.l.b16 %v478
    %v709 = vunpack.c.l.b16 %v479
    %v710 = vunpack.c.l.b16 %v480
    %v711 = vunpack.c.l.b16 %v481
    %v712 = vunpack.c.l.b16 %v482
    %v713 = vunpack.c.l.b16 %v483
    %v714 = vunpack.c.l.b16 %v484
    %v715 = vunpack.c.l.b16 %v485
    %v716 = vunpack.c.l.b16 %v486
    %v717 = vunpack.c.l.b16 %v487
    %v718 = vunpack.c.l.b16 %v488
    %v719 = vunpack.c.l.b16 %v489
    %v720 = vunpack.c.l.b16 %v490
    %v721 = vunpack.c.l.b16 %v491
    %v722 = vunpack.c.l.b16 %v492
    %v723 = vunpack.c.l.b16 %v493
    %v724 = vunpack.c.l.b16 %v494
    %v725 = vunpack.c.l.b16 %v495
    %v726 = vunpack.c.l.b16 %v496
    %v727 = vunpack.c.l.b16 %v497
    %v728 = vunpack.c.l.b16 %v498
    %v729 = vunpack.c.l.b16 %v499
    %v730 = vunpack.c.l.b16 %v500
    %v731 = vunpack.c.l.b16 %v501
    %v732 = vunpack.c.l.b16 %v502
    %v733 = vunpack.c.l.b16 %v503
    %v734 = vunpack.c.l.b16 %v504
    %v735 = vunpack.c.l.b16 %v505
    %v736 = vunpack.c.l.b16 %v506
    %v737 = vunpack.c.l.b16 %v507
    %v738 = vunpack.c.l.b16 %v508
    %v739 = vunpack.c.l.b16 %v509
    %v740 = vunpack.c.l.b16 %v510
    %v741 = vunpack.c.l.b16 %v511
    %v742 = vunpack.c.l.b16 %v512
    %v743 = vunpack.c.l.b16 %v513
    %v744 = vunpack.c.l.b16 %v514
    %v745 = vunpack.c.l.b16 %v515
    %v746 = vunpack.c.l.b16 %v516
    %v747 = vunpack.c.l.b16 %v517
    %v748 = vunpack.c.l.b16 %v518
    %v749 = vunpack.c.l.b16 %v519
    %v750 = vunpack.c.l.b16 %v520
    %v751 = vunpack.c.l.b16 %v521
    %v752 = vunpack.c.l.b16 %v522
    %v753 = vunpack.c.l.b16 %v523
    %v754 = vunpack.c.l.b16 %v524
    %v755 = vunpack.c.l.b16 %v525
    %v756 = vunpack.c.l.b16 %v526
    %v757 = vunpack.c.l.b16 %v527
    %v758 = vunpack.c.l.b16 %v528
    %v759 = vunpack.c.l.b16 %v529
    %v760 = vunpack.c.l.b16 %v530
    %v761 = vunpack.c.l.b16 %v531
    %v762 = vunpack.c.l.b16 %v532
    %v763 = vunpack.c.l.b16 %v533
    %v764 = vunpack.c.l.b16 %v534
    %v765 = vunpack.c.l.b16 %v535
    %v766 = vunpack.c.l.b16 %v536
    %v767 = vunpack.c.l.b16 %v537
    %v768 = vunpack.c.l.b16 %v538
    %v769 = vunpack.c.l.b16 %v539
    %v770 = vunpack.c.l.b16 %v540
    %v771 = vunpack.c.l.b16 %v541
    %v772 = vunpack.c.l.b16 %v542
    %v773 = vunpack.c.l.b16 %v543
    %v774 = vunpack.c.l.b16 %v544
    %v775 = vunpack.c.l.b16 %v545
    %v776 = vunpack.c.l.b16 %v546
    %v777 = vunpack.c.l.b16 %v547
    %v778 = vunpack.c.l.b16 %v548
    %v779 = vunpack.c.l.b16 %v549
    %v780 = vunpack.c.l.b16 %v550
    %v781 = vunpack.c.l.b16 %v551
    %v782 = vunpack.c.l.b16 %v552
    %v783 = vunpack.c.l.b16 %v553
    %v784 = vpack.c.b16 %v673, %v672
    %v785 = vpack.c.b16 %v675, %v674
    %v786 = vpack.c.b16 %v677, %v676
    %v787 = vpack.c.b16 %v679, %v678
    %v788 = vpack.c.b16 %v681, %v680
    %v789 = vpack.c.b16 %v683, %v682
    %v790 = vpack.c.b16 %v685, %v684
    %v791 = vpack.c.b16 %v687, %v686
    %v792 = vpack.c.b16 %v689, %v688
    %v793 = vpack.c.b16 %v691, %v690
    %v794 = vpack.c.b16 %v693, %v692
    %v795 = vpack.c.b16 %v695, %v694
    %v796 = vpack.c.b16 %v697, %v696
    %v797 = vpack.c.b16 %v699, %v698
    %v798 = vpack.c.b16 %v701, %v700
    %v799 = vpack.c.b16 %v703, %v702
    %v800 = vpack.c.b16 %v705, %v704
    %v801 = vpack.c.b16 %v707, %v706
    %v802 = vpack.c.b16 %v709, %v708
    %v803 = vpack.c.b16 %v711, %v710
    %v804 = vpack.c.b16 %v713, %v712
    %v805 = vpack.c.b16 %v715, %v714
    %v806 = vpack.c.b16 %v717, %v716
    %v807 = vpack.c.b16 %v719, %v718
    %v808 = vpack.c.b16 %v721, %v720
    %v809 = vpack.c.b16 %v723, %v722
    %v810 = vpack.c.b16 %v725, %v724
    %v811 = vpack.c.b16 %v727, %v726
    %v812 = vpack.c.b16 %v729, %v728
    %v813 = vpack.c.b16 %v731, %v730
    %v814 = vpack.c.b16 %v733, %v732
    %v815 = vpack.c.b16 %v735, %v734
    %v816 = vpack.c.b16 %v737, %v736
    %v817 = vpack.c.b16 %v739, %v738
    %v818 = vpack.c.b16 %v741, %v740
    %v819 = vpack.c.b16 %v743, %v742
    %v820 = vpack.c.b16 %v745, %v744
    %v821 = vpack.c.b16 %v747, %v746
    %v822 = vpack.c.b16 %v749, %v748
    %v823 = vpack.c.b16 %v751, %v750
    %v824 = vpack.c.b16 %v753, %v752
    %v825 = vpack.c.b16 %v755, %v754
    %v826 = vpack.c.b16 %v757, %v756
    %v827 = vpack.c.b16 %v759, %v758
    %v828 = vpack.c.b16 %v761, %v760
    %v829 = vpack.c.b16 %v763, %v762
    %v830 = vpack.c.b16 %v765, %v764
    %v831 = vpack.c.b16 %v767, %v766
    %v832 = vpack.c.b16 %v769, %v768
    %v833 = vpack.c.b16 %v771, %v770
    %v834 = vpack.c.b16 %v773, %v772
    %v835 = vpack.c.b16 %v775, %v774
    %v836 = vpack.c.b16 %v777, %v776
    %v837 = vpack.c.b16 %v779, %v778
    %v838 = vpack.c.b16 %v781, %v780
    %v839 = vpack.c.b16 %v783, %v782
    %896 = vmatprep.subr.bf16.mxu0 0
    %897 = vmatpush1.bf16.msra.mxu0 %v791
    %898 = vmatprep.subr.bf16.mxu0 0
    %899 = vmatpush1.bf16.msra.mxu0 %v790
    %900 = vmatprep.subr.bf16.mxu0 0
    %901 = vmatpush1.bf16.msra.mxu0 %v789
    %902 = vmatprep.subr.bf16.mxu0 0
    %903 = vmatpush1.bf16.msra.mxu0 %v788
    %904 = vmatprep.subr.bf16.mxu0 0
    %905 = vmatpush1.bf16.msra.mxu0 %v787
    %906 = vmatprep.subr.bf16.mxu0 0
    %907 = vmatpush1.bf16.msra.mxu0 %v786
    %908 = vmatprep.subr.bf16.mxu0 0
    %909 = vmatpush1.bf16.msra.mxu0 %v785
    %910 = vmatprep.subr.bf16.mxu0 0
    %911 = vmatpush1.bf16.msra.mxu0 %v784
    %912 = vmatprep.subr.bf16.mxu0 0
    %913 = vmatpush2.bf16.msra.mxu0 %v799
    %914 = vmatprep.subr.bf16.mxu0 0
    %915 = vmatpush2.bf16.msra.mxu0 %v798
    %916 = vmatprep.subr.bf16.mxu0 0
    %917 = vmatpush2.bf16.msra.mxu0 %v797
    %918 = vmatprep.subr.bf16.mxu0 0
    %919 = vmatpush2.bf16.msra.mxu0 %v796
    %920 = vmatprep.subr.bf16.mxu0 0
    %921 = vmatpush2.bf16.msra.mxu0 %v795
    %922 = vmatprep.subr.bf16.mxu0 0
    %923 = vmatpush2.bf16.msra.mxu0 %v794
    %924 = vmatprep.subr.bf16.mxu0 0
    %925 = vmatpush2.bf16.msra.mxu0 %v793
    %926 = vmatprep.subr.bf16.mxu0 0
    %927 = vmatpush2.bf16.msra.mxu0 %v792
    %928 = vmatprep.mubr.bf16.mxu0 %v331
    %929 = vmatmul.mubr.bf16.gmra.mxu0 %v330
    %v930 = vpop.f32.mrf.mxu0
    %v931 = vadd.f32 %v558, %v930
    %v932 = vpop.f32.mrf.mxu0
    %v933 = vpop.f32.mrf.mxu0
    %v934 = vadd.f32 %v558, %v933
    %v935 = vpop.f32.mrf.mxu0
    %936 = vmatprep.mubr.bf16.mxu0 %v338
    %937 = vmatmul.mubr.bf16.gmra.mxu0 %v337
    %v938 = vpop.f32.mrf.mxu0
    %v939 = vadd.f32 %v558, %v938
    %v940 = vpop.f32.mrf.mxu0
    %v941 = vpop.f32.mrf.mxu0
    %v942 = vadd.f32 %v558, %v941
    %v943 = vpop.f32.mrf.mxu0
    %944 = vmatprep.mubr.bf16.mxu0 %v345
    %945 = vmatmul.mubr.bf16.gmra.mxu0 %v344
    %v946 = vpop.f32.mrf.mxu0
    %v947 = vadd.f32 %v558, %v946
    %v948 = vpop.f32.mrf.mxu0
    %v949 = vpop.f32.mrf.mxu0
    %v950 = vadd.f32 %v558, %v949
    %v951 = vpop.f32.mrf.mxu0
    %952 = vmatprep.mubr.bf16.mxu0 %v352
    %953 = vmatmul.mubr.bf16.gmra.mxu0 %v351
    %v954 = vpop.f32.mrf.mxu0
    %v955 = vadd.f32 %v558, %v954
    %v956 = vpop.f32.mrf.mxu0
    %v957 = vpop.f32.mrf.mxu0
    %v958 = vadd.f32 %v558, %v957
    %v959 = vpop.f32.mrf.mxu0
    %960 = vmatprep.mubr.bf16.mxu0 %v359
    %961 = vmatmul.mubr.bf16.gmra.mxu0 %v358
    %v962 = vpop.f32.mrf.mxu0
    %v963 = vadd.f32 %v558, %v962
    %v964 = vpop.f32.mrf.mxu0
    %v965 = vpop.f32.mrf.mxu0
    %v966 = vadd.f32 %v558, %v965
    %v967 = vpop.f32.mrf.mxu0
    %968 = vmatprep.mubr.bf16.mxu0 %v366
    %969 = vmatmul.mubr.bf16.gmra.mxu0 %v365
    %v970 = vpop.f32.mrf.mxu0
    %v971 = vadd.f32 %v558, %v970
    %v972 = vpop.f32.mrf.mxu0
    %v973 = vpop.f32.mrf.mxu0
    %v974 = vadd.f32 %v558, %v973
    %v975 = vpop.f32.mrf.mxu0
    %976 = vmatprep.mubr.bf16.mxu0 %v373
    %977 = vmatmul.mubr.bf16.gmra.mxu0 %v372
    %v978 = vpop.f32.mrf.mxu0
    %v979 = vadd.f32 %v558, %v978
    %v980 = vpop.f32.mrf.mxu0
    %v981 = vpop.f32.mrf.mxu0
    %v982 = vadd.f32 %v558, %v981
    %v983 = vpop.f32.mrf.mxu0
    %984 = vmatprep.mubr.bf16.mxu0 %v380
    %985 = vmatmul.mubr.bf16.gmra.mxu0 %v379
    %v986 = vpop.f32.mrf.mxu0
    %v987 = vadd.f32 %v558, %v986
    %v988 = vpop.f32.mrf.mxu0
    %v989 = vpop.f32.mrf.mxu0
    %v990 = vadd.f32 %v558, %v989
    %v991 = vpop.f32.mrf.mxu0
    %992 = vmatprep.mubr.bf16.mxu0 %v387
    %993 = vmatmul.mubr.bf16.gmra.mxu0 %v386
    %v994 = vpop.f32.mrf.mxu0
    %v995 = vadd.f32 %v558, %v994
    %v996 = vpop.f32.mrf.mxu0
    %v997 = vpop.f32.mrf.mxu0
    %v998 = vadd.f32 %v558, %v997
    %v999 = vpop.f32.mrf.mxu0
    %1000 = vmatprep.mubr.bf16.mxu0 %v394
    %1001 = vmatmul.mubr.bf16.gmra.mxu0 %v393
    %v1002 = vpop.f32.mrf.mxu0
    %v1003 = vadd.f32 %v558, %v1002
    %v1004 = vpop.f32.mrf.mxu0
    %v1005 = vpop.f32.mrf.mxu0
    %v1006 = vadd.f32 %v558, %v1005
    %v1007 = vpop.f32.mrf.mxu0
    %1008 = vmatprep.mubr.bf16.mxu0 %v401
    %1009 = vmatmul.mubr.bf16.gmra.mxu0 %v400
    %v1010 = vpop.f32.mrf.mxu0
    %v1011 = vadd.f32 %v558, %v1010
    %v1012 = vpop.f32.mrf.mxu0
    %v1013 = vpop.f32.mrf.mxu0
    %v1014 = vadd.f32 %v558, %v1013
    %v1015 = vpop.f32.mrf.mxu0
    %1016 = vmatprep.mubr.bf16.mxu0 %v408
    %1017 = vmatmul.mubr.bf16.gmra.mxu0 %v407
    %v1018 = vpop.f32.mrf.mxu0
    %v1019 = vadd.f32 %v558, %v1018
    %v1020 = vpop.f32.mrf.mxu0
    %v1021 = vpop.f32.mrf.mxu0
    %v1022 = vadd.f32 %v558, %v1021
    %v1023 = vpop.f32.mrf.mxu0
    %1024 = vmatprep.mubr.bf16.mxu0 %v415
    %1025 = vmatmul.mubr.bf16.gmra.mxu0 %v414
    %v1026 = vpop.f32.mrf.mxu0
    %v1027 = vadd.f32 %v558, %v1026
    %v1028 = vpop.f32.mrf.mxu0
    %v1029 = vpop.f32.mrf.mxu0
    %v1030 = vadd.f32 %v558, %v1029
    %v1031 = vpop.f32.mrf.mxu0
    %1032 = vmatprep.mubr.bf16.mxu0 %v422
    %1033 = vmatmul.mubr.bf16.gmra.mxu0 %v421
    %v1034 = vpop.f32.mrf.mxu0
    %v1035 = vadd.f32 %v558, %v1034
    %v1036 = vpop.f32.mrf.mxu0
    %v1037 = vpop.f32.mrf.mxu0
    %v1038 = vadd.f32 %v558, %v1037
    %v1039 = vpop.f32.mrf.mxu0
    %1040 = vmatprep.mubr.bf16.mxu0 %v429
    %1041 = vmatmul.mubr.bf16.gmra.mxu0 %v428
    %v1042 = vpop.f32.mrf.mxu0
    %v1043 = vadd.f32 %v558, %v1042
    %v1044 = vpop.f32.mrf.mxu0
    %v1045 = vpop.f32.mrf.mxu0
    %v1046 = vadd.f32 %v558, %v1045
    %v1047 = vpop.f32.mrf.mxu0
    %1048 = vmatprep.mubr.bf16.mxu0 %v436
    %1049 = vmatmul.mubr.bf16.gmra.mxu0 %v435
    %v1050 = vpop.f32.mrf.mxu0
    %v1051 = vadd.f32 %v558, %v1050
    %v1052 = vpop.f32.mrf.mxu0
    %v1053 = vpop.f32.mrf.mxu0
    %v1054 = vadd.f32 %v558, %v1053
    %v1055 = vpop.f32.mrf.mxu0
    %1056 = vdwg.mxu0
    %1057 = vmatprep.subr.bf16.mxu0 0
    %1058 = vmatpush1.bf16.msra.mxu0 %v807
    %1059 = vmatprep.subr.bf16.mxu0 0
    %1060 = vmatpush1.bf16.msra.mxu0 %v806
    %1061 = vmatprep.subr.bf16.mxu0 0
    %1062 = vmatpush1.bf16.msra.mxu0 %v805
    %1063 = vmatprep.subr.bf16.mxu0 0
    %1064 = vmatpush1.bf16.msra.mxu0 %v804
    %1065 = vmatprep.subr.bf16.mxu0 0
    %1066 = vmatpush1.bf16.msra.mxu0 %v803
    %1067 = vmatprep.subr.bf16.mxu0 0
    %1068 = vmatpush1.bf16.msra.mxu0 %v802
    %1069 = vmatprep.subr.bf16.mxu0 0
    %1070 = vmatpush1.bf16.msra.mxu0 %v801
    %1071 = vmatprep.subr.bf16.mxu0 0
    %1072 = vmatpush1.bf16.msra.mxu0 %v800
    %1073 = vmatprep.subr.bf16.mxu0 0
    %1074 = vmatpush2.bf16.msra.mxu0 %v815
    %1075 = vmatprep.subr.bf16.mxu0 0
    %1076 = vmatpush2.bf16.msra.mxu0 %v814
    %1077 = vmatprep.subr.bf16.mxu0 0
    %1078 = vmatpush2.bf16.msra.mxu0 %v813
    %1079 = vmatprep.subr.bf16.mxu0 0
    %1080 = vmatpush2.bf16.msra.mxu0 %v812
    %1081 = vmatprep.subr.bf16.mxu0 0
    %1082 = vmatpush2.bf16.msra.mxu0 %v811
    %1083 = vmatprep.subr.bf16.mxu0 0
    %1084 = vmatpush2.bf16.msra.mxu0 %v810
    %1085 = vmatprep.subr.bf16.mxu0 0
    %1086 = vmatpush2.bf16.msra.mxu0 %v809
    %1087 = vmatprep.subr.bf16.mxu0 0
    %1088 = vmatpush2.bf16.msra.mxu0 %v808
    %1089 = vmatprep.mubr.bf16.mxu0 %v333
    %1090 = vmatmul.mubr.bf16.gmra.mxu0 %v332
    %v1091 = vpop.f32.mrf.mxu0
    %v1092 = vadd.f32 %v931, %v1091
    %v1093 = vpop.f32.mrf.mxu0
    %v1094 = vpop.f32.mrf.mxu0
    %v1095 = vadd.f32 %v934, %v1094
    %v1096 = vpop.f32.mrf.mxu0
    %1097 = vmatprep.mubr.bf16.mxu0 %v340
    %1098 = vmatmul.mubr.bf16.gmra.mxu0 %v339
    %v1099 = vpop.f32.mrf.mxu0
    %v1100 = vadd.f32 %v939, %v1099
    %v1101 = vpop.f32.mrf.mxu0
    %v1102 = vpop.f32.mrf.mxu0
    %v1103 = vadd.f32 %v942, %v1102
    %v1104 = vpop.f32.mrf.mxu0
    %1105 = vmatprep.mubr.bf16.mxu0 %v347
    %1106 = vmatmul.mubr.bf16.gmra.mxu0 %v346
    %v1107 = vpop.f32.mrf.mxu0
    %v1108 = vadd.f32 %v947, %v1107
    %v1109 = vpop.f32.mrf.mxu0
    %v1110 = vpop.f32.mrf.mxu0
    %v1111 = vadd.f32 %v950, %v1110
    %v1112 = vpop.f32.mrf.mxu0
    %1113 = vmatprep.mubr.bf16.mxu0 %v354
    %1114 = vmatmul.mubr.bf16.gmra.mxu0 %v353
    %v1115 = vpop.f32.mrf.mxu0
    %v1116 = vadd.f32 %v955, %v1115
    %v1117 = vpop.f32.mrf.mxu0
    %v1118 = vpop.f32.mrf.mxu0
    %v1119 = vadd.f32 %v958, %v1118
    %v1120 = vpop.f32.mrf.mxu0
    %1121 = vmatprep.mubr.bf16.mxu0 %v361
    %1122 = vmatmul.mubr.bf16.gmra.mxu0 %v360
    %v1123 = vpop.f32.mrf.mxu0
    %v1124 = vadd.f32 %v963, %v1123
    %v1125 = vpop.f32.mrf.mxu0
    %v1126 = vpop.f32.mrf.mxu0
    %v1127 = vadd.f32 %v966, %v1126
    %v1128 = vpop.f32.mrf.mxu0
    %1129 = vmatprep.mubr.bf16.mxu0 %v368
    %1130 = vmatmul.mubr.bf16.gmra.mxu0 %v367
    %v1131 = vpop.f32.mrf.mxu0
    %v1132 = vadd.f32 %v971, %v1131
    %v1133 = vpop.f32.mrf.mxu0
    %v1134 = vpop.f32.mrf.mxu0
    %v1135 = vadd.f32 %v974, %v1134
    %v1136 = vpop.f32.mrf.mxu0
    %1137 = vmatprep.mubr.bf16.mxu0 %v375
    %1138 = vmatmul.mubr.bf16.gmra.mxu0 %v374
    %v1139 = vpop.f32.mrf.mxu0
    %v1140 = vadd.f32 %v979, %v1139
    %v1141 = vpop.f32.mrf.mxu0
    %v1142 = vpop.f32.mrf.mxu0
    %v1143 = vadd.f32 %v982, %v1142
    %v1144 = vpop.f32.mrf.mxu0
    %1145 = vmatprep.mubr.bf16.mxu0 %v382
    %1146 = vmatmul.mubr.bf16.gmra.mxu0 %v381
    %v1147 = vpop.f32.mrf.mxu0
    %v1148 = vadd.f32 %v987, %v1147
    %v1149 = vpop.f32.mrf.mxu0
    %v1150 = vpop.f32.mrf.mxu0
    %v1151 = vadd.f32 %v990, %v1150
    %v1152 = vpop.f32.mrf.mxu0
    %1153 = vmatprep.mubr.bf16.mxu0 %v389
    %1154 = vmatmul.mubr.bf16.gmra.mxu0 %v388
    %v1155 = vpop.f32.mrf.mxu0
    %v1156 = vadd.f32 %v995, %v1155
    %v1157 = vpop.f32.mrf.mxu0
    %v1158 = vpop.f32.mrf.mxu0
    %v1159 = vadd.f32 %v998, %v1158
    %v1160 = vpop.f32.mrf.mxu0
    %1161 = vmatprep.mubr.bf16.mxu0 %v396
    %1162 = vmatmul.mubr.bf16.gmra.mxu0 %v395
    %v1163 = vpop.f32.mrf.mxu0
    %v1164 = vadd.f32 %v1003, %v1163
    %v1165 = vpop.f32.mrf.mxu0
    %v1166 = vpop.f32.mrf.mxu0
    %v1167 = vadd.f32 %v1006, %v1166
    %v1168 = vpop.f32.mrf.mxu0
    %1169 = vmatprep.mubr.bf16.mxu0 %v403
    %1170 = vmatmul.mubr.bf16.gmra.mxu0 %v402
    %v1171 = vpop.f32.mrf.mxu0
    %v1172 = vadd.f32 %v1011, %v1171
    %v1173 = vpop.f32.mrf.mxu0
    %v1174 = vpop.f32.mrf.mxu0
    %v1175 = vadd.f32 %v1014, %v1174
    %v1176 = vpop.f32.mrf.mxu0
    %1177 = vmatprep.mubr.bf16.mxu0 %v410
    %1178 = vmatmul.mubr.bf16.gmra.mxu0 %v409
    %v1179 = vpop.f32.mrf.mxu0
    %v1180 = vadd.f32 %v1019, %v1179
    %v1181 = vpop.f32.mrf.mxu0
    %v1182 = vpop.f32.mrf.mxu0
    %v1183 = vadd.f32 %v1022, %v1182
    %v1184 = vpop.f32.mrf.mxu0
    %1185 = vmatprep.mubr.bf16.mxu0 %v417
    %1186 = vmatmul.mubr.bf16.gmra.mxu0 %v416
    %v1187 = vpop.f32.mrf.mxu0
    %v1188 = vadd.f32 %v1027, %v1187
    %v1189 = vpop.f32.mrf.mxu0
    %v1190 = vpop.f32.mrf.mxu0
    %v1191 = vadd.f32 %v1030, %v1190
    %v1192 = vpop.f32.mrf.mxu0
    %1193 = vmatprep.mubr.bf16.mxu0 %v424
    %1194 = vmatmul.mubr.bf16.gmra.mxu0 %v423
    %v1195 = vpop.f32.mrf.mxu0
    %v1196 = vadd.f32 %v1035, %v1195
    %v1197 = vpop.f32.mrf.mxu0
    %v1198 = vpop.f32.mrf.mxu0
    %v1199 = vadd.f32 %v1038, %v1198
    %v1200 = vpop.f32.mrf.mxu0
    %1201 = vmatprep.mubr.bf16.mxu0 %v431
    %1202 = vmatmul.mubr.bf16.gmra.mxu0 %v430
    %v1203 = vpop.f32.mrf.mxu0
    %v1204 = vadd.f32 %v1043, %v1203
    %v1205 = vpop.f32.mrf.mxu0
    %v1206 = vpop.f32.mrf.mxu0
    %v1207 = vadd.f32 %v1046, %v1206
    %v1208 = vpop.f32.mrf.mxu0
    %1209 = vmatprep.mubr.bf16.mxu0 %v438
    %1210 = vmatmul.mubr.bf16.gmra.mxu0 %v437
    %v1211 = vpop.f32.mrf.mxu0
    %v1212 = vadd.f32 %v1051, %v1211
    %v1213 = vpop.f32.mrf.mxu0
    %v1214 = vpop.f32.mrf.mxu0
    %v1215 = vadd.f32 %v1054, %v1214
    %v1216 = vpop.f32.mrf.mxu0
    %1217 = vdwg.mxu0
    %1218 = vmatprep.subr.bf16.mxu0 0
    %1219 = vmatpush1.bf16.msra.mxu0 %v823
    %1220 = vmatprep.subr.bf16.mxu0 0
    %1221 = vmatpush1.bf16.msra.mxu0 %v822
    %1222 = vmatprep.subr.bf16.mxu0 0
    %1223 = vmatpush1.bf16.msra.mxu0 %v821
    %1224 = vmatprep.subr.bf16.mxu0 0
    %1225 = vmatpush1.bf16.msra.mxu0 %v820
    %1226 = vmatprep.subr.bf16.mxu0 0
    %1227 = vmatpush1.bf16.msra.mxu0 %v819
    %1228 = vmatprep.subr.bf16.mxu0 0
    %1229 = vmatpush1.bf16.msra.mxu0 %v818
    %1230 = vmatprep.subr.bf16.mxu0 0
    %1231 = vmatpush1.bf16.msra.mxu0 %v817
    %1232 = vmatprep.subr.bf16.mxu0 0
    %1233 = vmatpush1.bf16.msra.mxu0 %v816
    %1234 = vmatprep.subr.bf16.mxu0 0
    %1235 = vmatpush2.bf16.msra.mxu0 %v831
    %1236 = vmatprep.subr.bf16.mxu0 0
    %1237 = vmatpush2.bf16.msra.mxu0 %v830
    %1238 = vmatprep.subr.bf16.mxu0 0
    %1239 = vmatpush2.bf16.msra.mxu0 %v829
    %1240 = vmatprep.subr.bf16.mxu0 0
    %1241 = vmatpush2.bf16.msra.mxu0 %v828
    %1242 = vmatprep.subr.bf16.mxu0 0
    %1243 = vmatpush2.bf16.msra.mxu0 %v827
    %1244 = vmatprep.subr.bf16.mxu0 0
    %1245 = vmatpush2.bf16.msra.mxu0 %v826
    %1246 = vmatprep.subr.bf16.mxu0 0
    %1247 = vmatpush2.bf16.msra.mxu0 %v825
    %1248 = vmatprep.subr.bf16.mxu0 0
    %1249 = vmatpush2.bf16.msra.mxu0 %v824
    %1250 = vmatprep.mubr.bf16.mxu0 %v335
    %1251 = vmatmul.mubr.bf16.gmra.mxu0 %v334
    %v1252 = vpop.f32.mrf.mxu0
    %v1253 = vadd.f32 %v1092, %v1252
    %v1254 = vpop.f32.mrf.mxu0
    %v1255 = vpop.f32.mrf.mxu0
    %v1256 = vadd.f32 %v1095, %v1255
    %v1257 = vpop.f32.mrf.mxu0
    %1258 = vmatprep.mubr.bf16.mxu0 %v342
    %1259 = vmatmul.mubr.bf16.gmra.mxu0 %v341
    %v1260 = vpop.f32.mrf.mxu0
    %v1261 = vadd.f32 %v1100, %v1260
    %v1262 = vpop.f32.mrf.mxu0
    %v1263 = vpop.f32.mrf.mxu0
    %v1264 = vadd.f32 %v1103, %v1263
    %v1265 = vpop.f32.mrf.mxu0
    %1266 = vmatprep.mubr.bf16.mxu0 %v349
    %1267 = vmatmul.mubr.bf16.gmra.mxu0 %v348
    %v1268 = vpop.f32.mrf.mxu0
    %v1269 = vadd.f32 %v1108, %v1268
    %v1270 = vpop.f32.mrf.mxu0
    %v1271 = vpop.f32.mrf.mxu0
    %v1272 = vadd.f32 %v1111, %v1271
    %v1273 = vpop.f32.mrf.mxu0
    %1274 = vmatprep.mubr.bf16.mxu0 %v356
    %1275 = vmatmul.mubr.bf16.gmra.mxu0 %v355
    %v1276 = vpop.f32.mrf.mxu0
    %v1277 = vadd.f32 %v1116, %v1276
    %v1278 = vpop.f32.mrf.mxu0
    %v1279 = vpop.f32.mrf.mxu0
    %v1280 = vadd.f32 %v1119, %v1279
    %v1281 = vpop.f32.mrf.mxu0
    %1282 = vmatprep.mubr.bf16.mxu0 %v363
    %1283 = vmatmul.mubr.bf16.gmra.mxu0 %v362
    %v1284 = vpop.f32.mrf.mxu0
    %v1285 = vadd.f32 %v1124, %v1284
    %v1286 = vpop.f32.mrf.mxu0
    %v1287 = vpop.f32.mrf.mxu0
    %v1288 = vadd.f32 %v1127, %v1287
    %v1289 = vpop.f32.mrf.mxu0
    %1290 = vmatprep.mubr.bf16.mxu0 %v370
    %1291 = vmatmul.mubr.bf16.gmra.mxu0 %v369
    %v1292 = vpop.f32.mrf.mxu0
    %v1293 = vadd.f32 %v1132, %v1292
    %v1294 = vpop.f32.mrf.mxu0
    %v1295 = vpop.f32.mrf.mxu0
    %v1296 = vadd.f32 %v1135, %v1295
    %v1297 = vpop.f32.mrf.mxu0
    %1298 = vmatprep.mubr.bf16.mxu0 %v377
    %1299 = vmatmul.mubr.bf16.gmra.mxu0 %v376
    %v1300 = vpop.f32.mrf.mxu0
    %v1301 = vadd.f32 %v1140, %v1300
    %v1302 = vpop.f32.mrf.mxu0
    %v1303 = vpop.f32.mrf.mxu0
    %v1304 = vadd.f32 %v1143, %v1303
    %v1305 = vpop.f32.mrf.mxu0
    %1306 = vmatprep.mubr.bf16.mxu0 %v384
    %1307 = vmatmul.mubr.bf16.gmra.mxu0 %v383
    %v1308 = vpop.f32.mrf.mxu0
    %v1309 = vadd.f32 %v1148, %v1308
    %v1310 = vpop.f32.mrf.mxu0
    %v1311 = vpop.f32.mrf.mxu0
    %v1312 = vadd.f32 %v1151, %v1311
    %v1313 = vpop.f32.mrf.mxu0
    %1314 = vmatprep.mubr.bf16.mxu0 %v391
    %1315 = vmatmul.mubr.bf16.gmra.mxu0 %v390
    %v1316 = vpop.f32.mrf.mxu0
    %v1317 = vadd.f32 %v1156, %v1316
    %v1318 = vpop.f32.mrf.mxu0
    %v1319 = vpop.f32.mrf.mxu0
    %v1320 = vadd.f32 %v1159, %v1319
    %v1321 = vpop.f32.mrf.mxu0
    %1322 = vmatprep.mubr.bf16.mxu0 %v398
    %1323 = vmatmul.mubr.bf16.gmra.mxu0 %v397
    %v1324 = vpop.f32.mrf.mxu0
    %v1325 = vadd.f32 %v1164, %v1324
    %v1326 = vpop.f32.mrf.mxu0
    %v1327 = vpop.f32.mrf.mxu0
    %v1328 = vadd.f32 %v1167, %v1327
    %v1329 = vpop.f32.mrf.mxu0
    %1330 = vmatprep.mubr.bf16.mxu0 %v405
    %1331 = vmatmul.mubr.bf16.gmra.mxu0 %v404
    %v1332 = vpop.f32.mrf.mxu0
    %v1333 = vadd.f32 %v1172, %v1332
    %v1334 = vpop.f32.mrf.mxu0
    %v1335 = vpop.f32.mrf.mxu0
    %v1336 = vadd.f32 %v1175, %v1335
    %v1337 = vpop.f32.mrf.mxu0
    %1338 = vmatprep.mubr.bf16.mxu0 %v412
    %1339 = vmatmul.mubr.bf16.gmra.mxu0 %v411
    %v1340 = vpop.f32.mrf.mxu0
    %v1341 = vadd.f32 %v1180, %v1340
    %v1342 = vpop.f32.mrf.mxu0
    %v1343 = vpop.f32.mrf.mxu0
    %v1344 = vadd.f32 %v1183, %v1343
    %v1345 = vpop.f32.mrf.mxu0
    %1346 = vmatprep.mubr.bf16.mxu0 %v419
    %1347 = vmatmul.mubr.bf16.gmra.mxu0 %v418
    %v1348 = vpop.f32.mrf.mxu0
    %v1349 = vadd.f32 %v1188, %v1348
    %v1350 = vpop.f32.mrf.mxu0
    %v1351 = vpop.f32.mrf.mxu0
    %v1352 = vadd.f32 %v1191, %v1351
    %v1353 = vpop.f32.mrf.mxu0
    %1354 = vmatprep.mubr.bf16.mxu0 %v426
    %1355 = vmatmul.mubr.bf16.gmra.mxu0 %v425
    %v1356 = vpop.f32.mrf.mxu0
    %v1357 = vadd.f32 %v1196, %v1356
    %v1358 = vpop.f32.mrf.mxu0
    %v1359 = vpop.f32.mrf.mxu0
    %v1360 = vadd.f32 %v1199, %v1359
    %v1361 = vpop.f32.mrf.mxu0
    %1362 = vmatprep.mubr.bf16.mxu0 %v433
    %1363 = vmatmul.mubr.bf16.gmra.mxu0 %v432
    %v1364 = vpop.f32.mrf.mxu0
    %v1365 = vadd.f32 %v1204, %v1364
    %v1366 = vpop.f32.mrf.mxu0
    %v1367 = vpop.f32.mrf.mxu0
    %v1368 = vadd.f32 %v1207, %v1367
    %v1369 = vpop.f32.mrf.mxu0
    %1370 = vmatprep.mubr.bf16.mxu0 %v440
    %1371 = vmatmul.mubr.bf16.gmra.mxu0 %v439
    %v1372 = vpop.f32.mrf.mxu0
    %v1373 = vadd.f32 %v1212, %v1372
    %v1374 = vpop.f32.mrf.mxu0
    %v1375 = vpop.f32.mrf.mxu0
    %v1376 = vadd.f32 %v1215, %v1375
    %v1377 = vpop.f32.mrf.mxu0
    %1378 = vdwg.mxu0
    %1379 = vmatprep.subr.bf16.mxu0 0
    %1380 = vmatpush1.bf16.msra.mxu0 %v839
    %1381 = vmatprep.subr.bf16.mxu0 0
    %1382 = vmatpush1.bf16.msra.mxu0 %v838
    %1383 = vmatprep.subr.bf16.mxu0 0
    %1384 = vmatpush1.bf16.msra.mxu0 %v837
    %1385 = vmatprep.subr.bf16.mxu0 0
    %1386 = vmatpush1.bf16.msra.mxu0 %v836
    %1387 = vmatprep.subr.bf16.mxu0 0
    %1388 = vmatpush1.bf16.msra.mxu0 %v835
    %1389 = vmatprep.subr.bf16.mxu0 0
    %1390 = vmatpush1.bf16.msra.mxu0 %v834
    %1391 = vmatprep.subr.bf16.mxu0 0
    %1392 = vmatpush1.bf16.msra.mxu0 %v833
    %1393 = vmatprep.subr.bf16.mxu0 0
    %1394 = vmatpush1.bf16.msra.mxu0 %v832
    %1395 = vmatprep.subr.bf16.mxu0 0
    %1396 = vmatpush2.bf16.msra.mxu0 0
    %1397 = vmatprep.subr.bf16.mxu0 0
    %1398 = vmatpush2.bf16.msra.mxu0 0
    %1399 = vmatprep.subr.bf16.mxu0 0
    %1400 = vmatpush2.bf16.msra.mxu0 0
    %1401 = vmatprep.subr.bf16.mxu0 0
    %1402 = vmatpush2.bf16.msra.mxu0 0
    %1403 = vmatprep.subr.bf16.mxu0 0
    %1404 = vmatpush2.bf16.msra.mxu0 0
    %1405 = vmatprep.subr.bf16.mxu0 0
    %1406 = vmatpush2.bf16.msra.mxu0 0
    %1407 = vmatprep.subr.bf16.mxu0 0
    %1408 = vmatpush2.bf16.msra.mxu0 0
    %1409 = vmatprep.subr.bf16.mxu0 0
    %1410 = vmatpush2.bf16.msra.mxu0 0
    %1411 = vmatprep.mubr.bf16.mxu0 0
    %1412 = vmatmul.mubr.bf16.gmra.mxu0 %v336
    %v1413 = vpop.f32.mrf.mxu0
    %v1414 = vadd.f32 %v1253, %v1413
    %v1415 = vpop.f32.mrf.mxu0
    %v1416 = vpop.f32.mrf.mxu0
    %v1417 = vadd.f32 %v1256, %v1416
    %v1418 = vpop.f32.mrf.mxu0
    %1419 = vmatprep.mubr.bf16.mxu0 0
    %1420 = vmatmul.mubr.bf16.gmra.mxu0 %v343
    %v1421 = vpop.f32.mrf.mxu0
    %v1422 = vadd.f32 %v1261, %v1421
    %v1423 = vpop.f32.mrf.mxu0
    %v1424 = vpop.f32.mrf.mxu0
    %v1425 = vadd.f32 %v1264, %v1424
    %v1426 = vpop.f32.mrf.mxu0
    %1427 = vmatprep.mubr.bf16.mxu0 0
    %1428 = vmatmul.mubr.bf16.gmra.mxu0 %v350
    %v1429 = vpop.f32.mrf.mxu0
    %v1430 = vadd.f32 %v1269, %v1429
    %v1431 = vpop.f32.mrf.mxu0
    %v1432 = vpop.f32.mrf.mxu0
    %v1433 = vadd.f32 %v1272, %v1432
    %v1434 = vpop.f32.mrf.mxu0
    %1435 = vmatprep.mubr.bf16.mxu0 0
    %1436 = vmatmul.mubr.bf16.gmra.mxu0 %v357
    %v1437 = vpop.f32.mrf.mxu0
    %v1438 = vadd.f32 %v1277, %v1437
    %v1439 = vpop.f32.mrf.mxu0
    %v1440 = vpop.f32.mrf.mxu0
    %v1441 = vadd.f32 %v1280, %v1440
    %v1442 = vpop.f32.mrf.mxu0
    %1443 = vmatprep.mubr.bf16.mxu0 0
    %1444 = vmatmul.mubr.bf16.gmra.mxu0 %v364
    %v1445 = vpop.f32.mrf.mxu0
    %v1446 = vadd.f32 %v1285, %v1445
    %v1447 = vpop.f32.mrf.mxu0
    %v1448 = vpop.f32.mrf.mxu0
    %v1449 = vadd.f32 %v1288, %v1448
    %v1450 = vpop.f32.mrf.mxu0
    %1451 = vmatprep.mubr.bf16.mxu0 0
    %1452 = vmatmul.mubr.bf16.gmra.mxu0 %v371
    %v1453 = vpop.f32.mrf.mxu0
    %v1454 = vadd.f32 %v1293, %v1453
    %v1455 = vpop.f32.mrf.mxu0
    %v1456 = vpop.f32.mrf.mxu0
    %v1457 = vadd.f32 %v1296, %v1456
    %v1458 = vpop.f32.mrf.mxu0
    %1459 = vmatprep.mubr.bf16.mxu0 0
    %1460 = vmatmul.mubr.bf16.gmra.mxu0 %v378
    %v1461 = vpop.f32.mrf.mxu0
    %v1462 = vadd.f32 %v1301, %v1461
    %v1463 = vpop.f32.mrf.mxu0
    %v1464 = vpop.f32.mrf.mxu0
    %v1465 = vadd.f32 %v1304, %v1464
    %v1466 = vpop.f32.mrf.mxu0
    %1467 = vmatprep.mubr.bf16.mxu0 0
    %1468 = vmatmul.mubr.bf16.gmra.mxu0 %v385
    %v1469 = vpop.f32.mrf.mxu0
    %v1470 = vadd.f32 %v1309, %v1469
    %v1471 = vpop.f32.mrf.mxu0
    %v1472 = vpop.f32.mrf.mxu0
    %v1473 = vadd.f32 %v1312, %v1472
    %v1474 = vpop.f32.mrf.mxu0
    %1475 = vmatprep.mubr.bf16.mxu0 0
    %1476 = vmatmul.mubr.bf16.gmra.mxu0 %v392
    %v1477 = vpop.f32.mrf.mxu0
    %v1478 = vadd.f32 %v1317, %v1477
    %v1479 = vpop.f32.mrf.mxu0
    %v1480 = vpop.f32.mrf.mxu0
    %v1481 = vadd.f32 %v1320, %v1480
    %v1482 = vpop.f32.mrf.mxu0
    %1483 = vmatprep.mubr.bf16.mxu0 0
    %1484 = vmatmul.mubr.bf16.gmra.mxu0 %v399
    %v1485 = vpop.f32.mrf.mxu0
    %v1486 = vadd.f32 %v1325, %v1485
    %v1487 = vpop.f32.mrf.mxu0
    %v1488 = vpop.f32.mrf.mxu0
    %v1489 = vadd.f32 %v1328, %v1488
    %v1490 = vpop.f32.mrf.mxu0
    %1491 = vmatprep.mubr.bf16.mxu0 0
    %1492 = vmatmul.mubr.bf16.gmra.mxu0 %v406
    %v1493 = vpop.f32.mrf.mxu0
    %v1494 = vadd.f32 %v1333, %v1493
    %v1495 = vpop.f32.mrf.mxu0
    %v1496 = vpop.f32.mrf.mxu0
    %v1497 = vadd.f32 %v1336, %v1496
    %v1498 = vpop.f32.mrf.mxu0
    %1499 = vmatprep.mubr.bf16.mxu0 0
    %1500 = vmatmul.mubr.bf16.gmra.mxu0 %v413
    %v1501 = vpop.f32.mrf.mxu0
    %v1502 = vadd.f32 %v1341, %v1501
    %v1503 = vpop.f32.mrf.mxu0
    %v1504 = vpop.f32.mrf.mxu0
    %v1505 = vadd.f32 %v1344, %v1504
    %v1506 = vpop.f32.mrf.mxu0
    %1507 = vmatprep.mubr.bf16.mxu0 0
    %1508 = vmatmul.mubr.bf16.gmra.mxu0 %v420
    %v1509 = vpop.f32.mrf.mxu0
    %v1510 = vadd.f32 %v1349, %v1509
    %v1511 = vpop.f32.mrf.mxu0
    %v1512 = vpop.f32.mrf.mxu0
    %v1513 = vadd.f32 %v1352, %v1512
    %v1514 = vpop.f32.mrf.mxu0
    %1515 = vmatprep.mubr.bf16.mxu0 0
    %1516 = vmatmul.mubr.bf16.gmra.mxu0 %v427
    %v1517 = vpop.f32.mrf.mxu0
    %v1518 = vadd.f32 %v1357, %v1517
    %v1519 = vpop.f32.mrf.mxu0
    %v1520 = vpop.f32.mrf.mxu0
    %v1521 = vadd.f32 %v1360, %v1520
    %v1522 = vpop.f32.mrf.mxu0
    %1523 = vmatprep.mubr.bf16.mxu0 0
    %1524 = vmatmul.mubr.bf16.gmra.mxu0 %v434
    %v1525 = vpop.f32.mrf.mxu0
    %v1526 = vadd.f32 %v1365, %v1525
    %v1527 = vpop.f32.mrf.mxu0
    %v1528 = vpop.f32.mrf.mxu0
    %v1529 = vadd.f32 %v1368, %v1528
    %v1530 = vpop.f32.mrf.mxu0
    %1531 = vmatprep.mubr.bf16.mxu0 0
    %1532 = vmatmul.mubr.bf16.gmra.mxu0 %v441
    %v1533 = vpop.f32.mrf.mxu0
    %v1534 = vadd.f32 %v1373, %v1533
    %v1535 = vpop.f32.mrf.mxu0
    %v1536 = vpop.f32.mrf.mxu0
    %v1537 = vadd.f32 %v1376, %v1536
    %v1538 = vpop.f32.mrf.mxu0
    %1539 = vdwg.mxu0
    %v1540 = vmax.f32 %v1414, 0.0
    %v1541 = vmax.f32 %v1417, 0.0
    %v1542 = vmax.f32 %v1422, 0.0
    %v1543 = vmax.f32 %v1425, 0.0
    %v1544 = vmax.f32 %v1430, 0.0
    %v1545 = vmax.f32 %v1433, 0.0
    %v1546 = vmax.f32 %v1438, 0.0
    %v1547 = vmax.f32 %v1441, 0.0
    %v1548 = vmax.f32 %v1446, 0.0
    %v1549 = vmax.f32 %v1449, 0.0
    %v1550 = vmax.f32 %v1454, 0.0
    %v1551 = vmax.f32 %v1457, 0.0
    %v1552 = vmax.f32 %v1462, 0.0
    %v1553 = vmax.f32 %v1465, 0.0
    %v1554 = vmax.f32 %v1470, 0.0
    %v1555 = vmax.f32 %v1473, 0.0
    %v1556 = vmax.f32 %v1478, 0.0
    %v1557 = vmax.f32 %v1481, 0.0
    %v1558 = vmax.f32 %v1486, 0.0
    %v1559 = vmax.f32 %v1489, 0.0
    %v1560 = vmax.f32 %v1494, 0.0
    %v1561 = vmax.f32 %v1497, 0.0
    %v1562 = vmax.f32 %v1502, 0.0
    %v1563 = vmax.f32 %v1505, 0.0
    %v1564 = vmax.f32 %v1510, 0.0
    %v1565 = vmax.f32 %v1513, 0.0
    %v1566 = vmax.f32 %v1518, 0.0
    %v1567 = vmax.f32 %v1521, 0.0
    %v1568 = vmax.f32 %v1526, 0.0
    %v1569 = vmax.f32 %v1529, 0.0
    %v1570 = vmax.f32 %v1534, 0.0
    %v1571 = vmax.f32 %v1537, 0.0
    %v1572 = vpack.c.bf16 %v1541, %v1540
    %v1573 = vpack.c.bf16 %v1543, %v1542
    %v1574 = vpack.c.bf16 %v1545, %v1544
    %v1575 = vpack.c.bf16 %v1547, %v1546
    %v1576 = vpack.c.bf16 %v1549, %v1548
    %v1577 = vpack.c.bf16 %v1551, %v1550
    %v1578 = vpack.c.bf16 %v1553, %v1552
    %v1579 = vpack.c.bf16 %v1555, %v1554
    %v1580 = vpack.c.bf16 %v1557, %v1556
    %v1581 = vpack.c.bf16 %v1559, %v1558
    %v1582 = vpack.c.bf16 %v1561, %v1560
    %v1583 = vpack.c.bf16 %v1563, %v1562
    %v1584 = vpack.c.bf16 %v1565, %v1564
    %v1585 = vpack.c.bf16 %v1567, %v1566
    %v1586 = vpack.c.bf16 %v1569, %v1568
    %v1587 = vpack.c.bf16 %v1571, %v1570
    %v1588 = vld [vmem:[#allocation7] sm:$0xf]
    %v1589 = vld [vmem:[#allocation7 + $0x4] sm:$0xf]
    %v1590 = vld [vmem:[#allocation7 + $0x8] sm:$0xf]
    %v1591 = vld [vmem:[#allocation7 + $0xc] sm:$0xf]
    %v1592 = vld [vmem:[#allocation7 + $0x10] sm:$0xf]
    %v1593 = vld [vmem:[#allocation7 + $0x14] sm:$0xf]
    %v1594 = vld [vmem:[#allocation7 + $0x18] sm:$0xf]
    %v1595 = vld [vmem:[#allocation7 + $0x1c] sm:$0xf]
    %v1596 = vld [vmem:[#allocation7 + $0x20] sm:$0xf]
    %v1597 = vld [vmem:[#allocation7 + $0x24] sm:$0xf]
    %v1598 = vld [vmem:[#allocation7 + $0x28] sm:$0xf]
    %v1599 = vld [vmem:[#allocation7 + $0x2c] sm:$0xf]
    %v1600 = vld [vmem:[#allocation7 + $0x30] sm:$0xf]
    %v1601 = vld [vmem:[#allocation7 + $0x34] sm:$0xf]
    %v1602 = vld [vmem:[#allocation7 + $0x38] sm:$0xf]
    %v1603 = vld [vmem:[#allocation7 + $0x3c] sm:$0xf]
    %v1605 = vlaneseq
    %v1606 = vshrl.u32 %v1605, 7
    %v1607 = vsub.s32 0, %v1606
    %v1608 = vrot.slane %v103, %v1607
    %v1626 = vunpack.c.l.b16 %v1588
    %v1627 = vunpack.c.l.b16 %v1589
    %v1628 = vunpack.c.l.b16 %v1590
    %v1629 = vunpack.c.l.b16 %v1591
    %v1630 = vunpack.c.l.b16 %v1592
    %v1631 = vunpack.c.l.b16 %v1593
    %v1632 = vunpack.c.l.b16 %v1594
    %v1633 = vunpack.c.l.b16 %v1595
    %v1634 = vunpack.c.l.b16 %v1596
    %v1635 = vunpack.c.l.b16 %v1597
    %v1636 = vunpack.c.l.b16 %v1598
    %v1637 = vunpack.c.l.b16 %v1599
    %v1638 = vunpack.c.l.b16 %v1600
    %v1639 = vunpack.c.l.b16 %v1601
    %v1640 = vunpack.c.l.b16 %v1602
    %v1641 = vunpack.c.l.b16 %v1603
    %v1642 = vpack.c.b16 %v1627, %v1626
    %v1643 = vpack.c.b16 %v1629, %v1628
    %v1644 = vpack.c.b16 %v1631, %v1630
    %v1645 = vpack.c.b16 %v1633, %v1632
    %v1646 = vpack.c.b16 %v1635, %v1634
    %v1647 = vpack.c.b16 %v1637, %v1636
    %v1648 = vpack.c.b16 %v1639, %v1638
    %v1649 = vpack.c.b16 %v1641, %v1640
    %1658 = vmatprep.subr.bf16.mxu0 0
    %1659 = vmatpush1.bf16.msra.mxu0 %v1649
    %1660 = vmatprep.subr.bf16.mxu0 0
    %1661 = vmatpush1.bf16.msra.mxu0 %v1648
    %1662 = vmatprep.subr.bf16.mxu0 0
    %1663 = vmatpush1.bf16.msra.mxu0 %v1647
    %1664 = vmatprep.subr.bf16.mxu0 0
    %1665 = vmatpush1.bf16.msra.mxu0 %v1646
    %1666 = vmatprep.subr.bf16.mxu0 0
    %1667 = vmatpush1.bf16.msra.mxu0 %v1645
    %1668 = vmatprep.subr.bf16.mxu0 0
    %1669 = vmatpush1.bf16.msra.mxu0 %v1644
    %1670 = vmatprep.subr.bf16.mxu0 0
    %1671 = vmatpush1.bf16.msra.mxu0 %v1643
    %1672 = vmatprep.subr.bf16.mxu0 0
    %1673 = vmatpush1.bf16.msra.mxu0 %v1642
    %1674 = vmatprep.subr.bf16.mxu0 0
    %1675 = vmatpush2.bf16.msra.mxu0 0
    %1676 = vmatprep.subr.bf16.mxu0 0
    %1677 = vmatpush2.bf16.msra.mxu0 0
    %1678 = vmatprep.subr.bf16.mxu0 0
    %1679 = vmatpush2.bf16.msra.mxu0 0
    %1680 = vmatprep.subr.bf16.mxu0 0
    %1681 = vmatpush2.bf16.msra.mxu0 0
    %1682 = vmatprep.subr.bf16.mxu0 0
    %1683 = vmatpush2.bf16.msra.mxu0 0
    %1684 = vmatprep.subr.bf16.mxu0 0
    %1685 = vmatpush2.bf16.msra.mxu0 0
    %1686 = vmatprep.subr.bf16.mxu0 0
    %1687 = vmatpush2.bf16.msra.mxu0 0
    %1688 = vmatprep.subr.bf16.mxu0 0
    %1689 = vmatpush2.bf16.msra.mxu0 0
    %1690 = vmatprep.mubr.bf16.mxu0 0
    %1691 = vmatmul.mubr.bf16.gmra.mxu0 %v1572
    %v1692 = vpop.f32.mrf.mxu0
    %v1693 = vadd.f32 %v1608, %v1692
    %v1694 = vpop.f32.mrf.mxu0
    %v1695 = vpop.f32.mrf.mxu0
    %v1696 = vadd.f32 %v1608, %v1695
    %v1697 = vpop.f32.mrf.mxu0
    %1698 = vmatprep.mubr.bf16.mxu0 0
    %1699 = vmatmul.mubr.bf16.gmra.mxu0 %v1573
    %v1700 = vpop.f32.mrf.mxu0
    %v1701 = vadd.f32 %v1608, %v1700
    %v1702 = vpop.f32.mrf.mxu0
    %v1703 = vpop.f32.mrf.mxu0
    %v1704 = vadd.f32 %v1608, %v1703
    %v1705 = vpop.f32.mrf.mxu0
    %1706 = vmatprep.mubr.bf16.mxu0 0
    %1707 = vmatmul.mubr.bf16.gmra.mxu0 %v1574
    %v1708 = vpop.f32.mrf.mxu0
    %v1709 = vadd.f32 %v1608, %v1708
    %v1710 = vpop.f32.mrf.mxu0
    %v1711 = vpop.f32.mrf.mxu0
    %v1712 = vadd.f32 %v1608, %v1711
    %v1713 = vpop.f32.mrf.mxu0
    %1714 = vmatprep.mubr.bf16.mxu0 0
    %1715 = vmatmul.mubr.bf16.gmra.mxu0 %v1575
    %v1716 = vpop.f32.mrf.mxu0
    %v1717 = vadd.f32 %v1608, %v1716
    %v1718 = vpop.f32.mrf.mxu0
    %v1719 = vpop.f32.mrf.mxu0
    %v1720 = vadd.f32 %v1608, %v1719
    %v1721 = vpop.f32.mrf.mxu0
    %1722 = vmatprep.mubr.bf16.mxu0 0
    %1723 = vmatmul.mubr.bf16.gmra.mxu0 %v1576
    %v1724 = vpop.f32.mrf.mxu0
    %v1725 = vadd.f32 %v1608, %v1724
    %v1726 = vpop.f32.mrf.mxu0
    %v1727 = vpop.f32.mrf.mxu0
    %v1728 = vadd.f32 %v1608, %v1727
    %v1729 = vpop.f32.mrf.mxu0
    %1730 = vmatprep.mubr.bf16.mxu0 0
    %1731 = vmatmul.mubr.bf16.gmra.mxu0 %v1577
    %v1732 = vpop.f32.mrf.mxu0
    %v1733 = vadd.f32 %v1608, %v1732
    %v1734 = vpop.f32.mrf.mxu0
    %v1735 = vpop.f32.mrf.mxu0
    %v1736 = vadd.f32 %v1608, %v1735
    %v1737 = vpop.f32.mrf.mxu0
    %1738 = vmatprep.mubr.bf16.mxu0 0
    %1739 = vmatmul.mubr.bf16.gmra.mxu0 %v1578
    %v1740 = vpop.f32.mrf.mxu0
    %v1741 = vadd.f32 %v1608, %v1740
    %v1742 = vpop.f32.mrf.mxu0
    %v1743 = vpop.f32.mrf.mxu0
    %v1744 = vadd.f32 %v1608, %v1743
    %v1745 = vpop.f32.mrf.mxu0
    %1746 = vmatprep.mubr.bf16.mxu0 0
    %1747 = vmatmul.mubr.bf16.gmra.mxu0 %v1579
    %v1748 = vpop.f32.mrf.mxu0
    %v1749 = vadd.f32 %v1608, %v1748
    %v1750 = vpop.f32.mrf.mxu0
    %v1751 = vpop.f32.mrf.mxu0
    %v1752 = vadd.f32 %v1608, %v1751
    %v1753 = vpop.f32.mrf.mxu0
    %1754 = vmatprep.mubr.bf16.mxu0 0
    %1755 = vmatmul.mubr.bf16.gmra.mxu0 %v1580
    %v1756 = vpop.f32.mrf.mxu0
    %v1757 = vadd.f32 %v1608, %v1756
    %v1758 = vpop.f32.mrf.mxu0
    %v1759 = vpop.f32.mrf.mxu0
    %v1760 = vadd.f32 %v1608, %v1759
    %v1761 = vpop.f32.mrf.mxu0
    %1762 = vmatprep.mubr.bf16.mxu0 0
    %1763 = vmatmul.mubr.bf16.gmra.mxu0 %v1581
    %v1764 = vpop.f32.mrf.mxu0
    %v1765 = vadd.f32 %v1608, %v1764
    %v1766 = vpop.f32.mrf.mxu0
    %v1767 = vpop.f32.mrf.mxu0
    %v1768 = vadd.f32 %v1608, %v1767
    %v1769 = vpop.f32.mrf.mxu0
    %1770 = vmatprep.mubr.bf16.mxu0 0
    %1771 = vmatmul.mubr.bf16.gmra.mxu0 %v1582
    %v1772 = vpop.f32.mrf.mxu0
    %v1773 = vadd.f32 %v1608, %v1772
    %v1774 = vpop.f32.mrf.mxu0
    %v1775 = vpop.f32.mrf.mxu0
    %v1776 = vadd.f32 %v1608, %v1775
    %v1777 = vpop.f32.mrf.mxu0
    %1778 = vmatprep.mubr.bf16.mxu0 0
    %1779 = vmatmul.mubr.bf16.gmra.mxu0 %v1583
    %v1780 = vpop.f32.mrf.mxu0
    %v1781 = vadd.f32 %v1608, %v1780
    %v1782 = vpop.f32.mrf.mxu0
    %v1783 = vpop.f32.mrf.mxu0
    %v1784 = vadd.f32 %v1608, %v1783
    %v1785 = vpop.f32.mrf.mxu0
    %1786 = vmatprep.mubr.bf16.mxu0 0
    %1787 = vmatmul.mubr.bf16.gmra.mxu0 %v1584
    %v1788 = vpop.f32.mrf.mxu0
    %v1789 = vadd.f32 %v1608, %v1788
    %v1790 = vpop.f32.mrf.mxu0
    %v1791 = vpop.f32.mrf.mxu0
    %v1792 = vadd.f32 %v1608, %v1791
    %v1793 = vpop.f32.mrf.mxu0
    %1794 = vmatprep.mubr.bf16.mxu0 0
    %1795 = vmatmul.mubr.bf16.gmra.mxu0 %v1585
    %v1796 = vpop.f32.mrf.mxu0
    %v1797 = vadd.f32 %v1608, %v1796
    %v1798 = vpop.f32.mrf.mxu0
    %v1799 = vpop.f32.mrf.mxu0
    %v1800 = vadd.f32 %v1608, %v1799
    %v1801 = vpop.f32.mrf.mxu0
    %1802 = vmatprep.mubr.bf16.mxu0 0
    %1803 = vmatmul.mubr.bf16.gmra.mxu0 %v1586
    %v1804 = vpop.f32.mrf.mxu0
    %v1805 = vadd.f32 %v1608, %v1804
    %v1806 = vpop.f32.mrf.mxu0
    %v1807 = vpop.f32.mrf.mxu0
    %v1808 = vadd.f32 %v1608, %v1807
    %v1809 = vpop.f32.mrf.mxu0
    %1810 = vmatprep.mubr.bf16.mxu0 0
    %1811 = vmatmul.mubr.bf16.gmra.mxu0 %v1587
    %v1812 = vpop.f32.mrf.mxu0
    %v1813 = vadd.f32 %v1608, %v1812
    %v1814 = vpop.f32.mrf.mxu0
    %v1815 = vpop.f32.mrf.mxu0
    %v1816 = vadd.f32 %v1608, %v1815
    %v1817 = vpop.f32.mrf.mxu0
    %1818 = vdwg.mxu0
    %v1819 = vmax.f32 %v1693, 0.0
    %v1820 = vmax.f32 %v1696, 0.0
    %v1821 = vmax.f32 %v1701, 0.0
    %v1822 = vmax.f32 %v1704, 0.0
    %v1823 = vmax.f32 %v1709, 0.0
    %v1824 = vmax.f32 %v1712, 0.0
    %v1825 = vmax.f32 %v1717, 0.0
    %v1826 = vmax.f32 %v1720, 0.0
    %v1827 = vmax.f32 %v1725, 0.0
    %v1828 = vmax.f32 %v1728, 0.0
    %v1829 = vmax.f32 %v1733, 0.0
    %v1830 = vmax.f32 %v1736, 0.0
    %v1831 = vmax.f32 %v1741, 0.0
    %v1832 = vmax.f32 %v1744, 0.0
    %v1833 = vmax.f32 %v1749, 0.0
    %v1834 = vmax.f32 %v1752, 0.0
    %v1835 = vmax.f32 %v1757, 0.0
    %v1836 = vmax.f32 %v1760, 0.0
    %v1837 = vmax.f32 %v1765, 0.0
    %v1838 = vmax.f32 %v1768, 0.0
    %v1839 = vmax.f32 %v1773, 0.0
    %v1840 = vmax.f32 %v1776, 0.0
    %v1841 = vmax.f32 %v1781, 0.0
    %v1842 = vmax.f32 %v1784, 0.0
    %v1843 = vmax.f32 %v1789, 0.0
    %v1844 = vmax.f32 %v1792, 0.0
    %v1845 = vmax.f32 %v1797, 0.0
    %v1846 = vmax.f32 %v1800, 0.0
    %v1847 = vmax.f32 %v1805, 0.0
    %v1848 = vmax.f32 %v1808, 0.0
    %v1849 = vmax.f32 %v1813, 0.0
    %v1850 = vmax.f32 %v1816, 0.0
    %v1851 = vpack.c.bf16 %v1820, %v1819
    %v1852 = vpack.c.bf16 %v1822, %v1821
    %v1853 = vpack.c.bf16 %v1824, %v1823
    %v1854 = vpack.c.bf16 %v1826, %v1825
    %v1855 = vpack.c.bf16 %v1828, %v1827
    %v1856 = vpack.c.bf16 %v1830, %v1829
    %v1857 = vpack.c.bf16 %v1832, %v1831
    %v1858 = vpack.c.bf16 %v1834, %v1833
    %v1859 = vpack.c.bf16 %v1836, %v1835
    %v1860 = vpack.c.bf16 %v1838, %v1837
    %v1861 = vpack.c.bf16 %v1840, %v1839
    %v1862 = vpack.c.bf16 %v1842, %v1841
    %v1863 = vpack.c.bf16 %v1844, %v1843
    %v1864 = vpack.c.bf16 %v1846, %v1845
    %v1865 = vpack.c.bf16 %v1848, %v1847
    %v1866 = vpack.c.bf16 %v1850, %v1849
    %v1867 = vld [vmem:[#allocation8] sm:$0xf]
    %v1868 = vld [vmem:[#allocation8 + $0x4] sm:$0xf]
    %v1869 = vld [vmem:[#allocation8 + $0x8] sm:$0xf]
    %v1870 = vld [vmem:[#allocation8 + $0xc] sm:$0xf]
    %v1871 = vld [vmem:[#allocation8 + $0x10] sm:$0xf]
    %v1872 = vld [vmem:[#allocation8 + $0x14] sm:$0xf]
    %v1873 = vld [vmem:[#allocation8 + $0x18] sm:$0xf]
    %v1874 = vld [vmem:[#allocation8 + $0x1c] sm:$0xf]
    %v1875 = vld [vmem:[#allocation8 + $0x20] sm:$0xf]
    %v1876 = vld [vmem:[#allocation8 + $0x24] sm:$0xf]
    %v1877 = vld [vmem:[#allocation8 + $0x28] sm:$0xf]
    %v1878 = vld [vmem:[#allocation8 + $0x2c] sm:$0xf]
    %v1879 = vld [vmem:[#allocation8 + $0x30] sm:$0xf]
    %v1880 = vld [vmem:[#allocation8 + $0x34] sm:$0xf]
    %v1881 = vld [vmem:[#allocation8 + $0x38] sm:$0xf]
    %v1882 = vld [vmem:[#allocation8 + $0x3c] sm:$0xf]
    %v1884 = vlaneseq
    %v1885 = vshrl.u32 %v1884, 7
    %v1886 = vsub.s32 0, %v1885
    %v1887 = vrot.slane %v104, %v1886
    %v1905 = vunpack.c.l.b16 %v1867
    %v1906 = vunpack.c.l.b16 %v1868
    %v1907 = vunpack.c.l.b16 %v1869
    %v1908 = vunpack.c.l.b16 %v1870
    %v1909 = vunpack.c.l.b16 %v1871
    %v1910 = vunpack.c.l.b16 %v1872
    %v1911 = vunpack.c.l.b16 %v1873
    %v1912 = vunpack.c.l.b16 %v1874
    %v1913 = vunpack.c.l.b16 %v1875
    %v1914 = vunpack.c.l.b16 %v1876
    %v1915 = vunpack.c.l.b16 %v1877
    %v1916 = vunpack.c.l.b16 %v1878
    %v1917 = vunpack.c.l.b16 %v1879
    %v1918 = vunpack.c.l.b16 %v1880
    %v1919 = vunpack.c.l.b16 %v1881
    %v1920 = vunpack.c.l.b16 %v1882
    %v1921 = vpack.c.b16 %v1906, %v1905
    %v1922 = vpack.c.b16 %v1908, %v1907
    %v1923 = vpack.c.b16 %v1910, %v1909
    %v1924 = vpack.c.b16 %v1912, %v1911
    %v1925 = vpack.c.b16 %v1914, %v1913
    %v1926 = vpack.c.b16 %v1916, %v1915
    %v1927 = vpack.c.b16 %v1918, %v1917
    %v1928 = vpack.c.b16 %v1920, %v1919
    %1937 = vmatprep.subr.bf16.mxu0 0
    %1938 = vmatpush1.bf16.msra.mxu0 %v1928
    %1939 = vmatprep.subr.bf16.mxu0 0
    %1940 = vmatpush1.bf16.msra.mxu0 %v1927
    %1941 = vmatprep.subr.bf16.mxu0 0
    %1942 = vmatpush1.bf16.msra.mxu0 %v1926
    %1943 = vmatprep.subr.bf16.mxu0 0
    %1944 = vmatpush1.bf16.msra.mxu0 %v1925
    %1945 = vmatprep.subr.bf16.mxu0 0
    %1946 = vmatpush1.bf16.msra.mxu0 %v1924
    %1947 = vmatprep.subr.bf16.mxu0 0
    %1948 = vmatpush1.bf16.msra.mxu0 %v1923
    %1949 = vmatprep.subr.bf16.mxu0 0
    %1950 = vmatpush1.bf16.msra.mxu0 %v1922
    %1951 = vmatprep.subr.bf16.mxu0 0
    %1952 = vmatpush1.bf16.msra.mxu0 %v1921
    %1953 = vmatprep.subr.bf16.mxu0 0
    %1954 = vmatpush2.bf16.msra.mxu0 0
    %1955 = vmatprep.subr.bf16.mxu0 0
    %1956 = vmatpush2.bf16.msra.mxu0 0
    %1957 = vmatprep.subr.bf16.mxu0 0
    %1958 = vmatpush2.bf16.msra.mxu0 0
    %1959 = vmatprep.subr.bf16.mxu0 0
    %1960 = vmatpush2.bf16.msra.mxu0 0
    %1961 = vmatprep.subr.bf16.mxu0 0
    %1962 = vmatpush2.bf16.msra.mxu0 0
    %1963 = vmatprep.subr.bf16.mxu0 0
    %1964 = vmatpush2.bf16.msra.mxu0 0
    %1965 = vmatprep.subr.bf16.mxu0 0
    %1966 = vmatpush2.bf16.msra.mxu0 0
    %1967 = vmatprep.subr.bf16.mxu0 0
    %1968 = vmatpush2.bf16.msra.mxu0 0
    %1969 = vmatprep.mubr.bf16.mxu0 0
    %1970 = vmatmul.mubr.bf16.gmra.mxu0 %v1851
    %v1971 = vpop.f32.mrf.mxu0
    %v1972 = vadd.f32 %v1887, %v1971
    %v1973 = vpop.f32.mrf.mxu0
    %v1974 = vpop.f32.mrf.mxu0
    %v1975 = vadd.f32 %v1887, %v1974
    %v1976 = vpop.f32.mrf.mxu0
    %1977 = vmatprep.mubr.bf16.mxu0 0
    %1978 = vmatmul.mubr.bf16.gmra.mxu0 %v1852
    %v1979 = vpop.f32.mrf.mxu0
    %v1980 = vadd.f32 %v1887, %v1979
    %v1981 = vpop.f32.mrf.mxu0
    %v1982 = vpop.f32.mrf.mxu0
    %v1983 = vadd.f32 %v1887, %v1982
    %v1984 = vpop.f32.mrf.mxu0
    %1985 = vmatprep.mubr.bf16.mxu0 0
    %1986 = vmatmul.mubr.bf16.gmra.mxu0 %v1853
    %v1987 = vpop.f32.mrf.mxu0
    %v1988 = vadd.f32 %v1887, %v1987
    %v1989 = vpop.f32.mrf.mxu0
    %v1990 = vpop.f32.mrf.mxu0
    %v1991 = vadd.f32 %v1887, %v1990
    %v1992 = vpop.f32.mrf.mxu0
    %1993 = vmatprep.mubr.bf16.mxu0 0
    %1994 = vmatmul.mubr.bf16.gmra.mxu0 %v1854
    %v1995 = vpop.f32.mrf.mxu0
    %v1996 = vadd.f32 %v1887, %v1995
    %v1997 = vpop.f32.mrf.mxu0
    %v1998 = vpop.f32.mrf.mxu0
    %v1999 = vadd.f32 %v1887, %v1998
    %v2000 = vpop.f32.mrf.mxu0
    %2001 = vmatprep.mubr.bf16.mxu0 0
    %2002 = vmatmul.mubr.bf16.gmra.mxu0 %v1855
    %v2003 = vpop.f32.mrf.mxu0
    %v2004 = vadd.f32 %v1887, %v2003
    %v2005 = vpop.f32.mrf.mxu0
    %v2006 = vpop.f32.mrf.mxu0
    %v2007 = vadd.f32 %v1887, %v2006
    %v2008 = vpop.f32.mrf.mxu0
    %2009 = vmatprep.mubr.bf16.mxu0 0
    %2010 = vmatmul.mubr.bf16.gmra.mxu0 %v1856
    %v2011 = vpop.f32.mrf.mxu0
    %v2012 = vadd.f32 %v1887, %v2011
    %v2013 = vpop.f32.mrf.mxu0
    %v2014 = vpop.f32.mrf.mxu0
    %v2015 = vadd.f32 %v1887, %v2014
    %v2016 = vpop.f32.mrf.mxu0
    %2017 = vmatprep.mubr.bf16.mxu0 0
    %2018 = vmatmul.mubr.bf16.gmra.mxu0 %v1857
    %v2019 = vpop.f32.mrf.mxu0
    %v2020 = vadd.f32 %v1887, %v2019
    %v2021 = vpop.f32.mrf.mxu0
    %v2022 = vpop.f32.mrf.mxu0
    %v2023 = vadd.f32 %v1887, %v2022
    %v2024 = vpop.f32.mrf.mxu0
    %2025 = vmatprep.mubr.bf16.mxu0 0
    %2026 = vmatmul.mubr.bf16.gmra.mxu0 %v1858
    %v2027 = vpop.f32.mrf.mxu0
    %v2028 = vadd.f32 %v1887, %v2027
    %v2029 = vpop.f32.mrf.mxu0
    %v2030 = vpop.f32.mrf.mxu0
    %v2031 = vadd.f32 %v1887, %v2030
    %v2032 = vpop.f32.mrf.mxu0
    %2033 = vmatprep.mubr.bf16.mxu0 0
    %2034 = vmatmul.mubr.bf16.gmra.mxu0 %v1859
    %v2035 = vpop.f32.mrf.mxu0
    %v2036 = vadd.f32 %v1887, %v2035
    %v2037 = vpop.f32.mrf.mxu0
    %v2038 = vpop.f32.mrf.mxu0
    %v2039 = vadd.f32 %v1887, %v2038
    %v2040 = vpop.f32.mrf.mxu0
    %2041 = vmatprep.mubr.bf16.mxu0 0
    %2042 = vmatmul.mubr.bf16.gmra.mxu0 %v1860
    %v2043 = vpop.f32.mrf.mxu0
    %v2044 = vadd.f32 %v1887, %v2043
    %v2045 = vpop.f32.mrf.mxu0
    %v2046 = vpop.f32.mrf.mxu0
    %v2047 = vadd.f32 %v1887, %v2046
    %v2048 = vpop.f32.mrf.mxu0
    %2049 = vmatprep.mubr.bf16.mxu0 0
    %2050 = vmatmul.mubr.bf16.gmra.mxu0 %v1861
    %v2051 = vpop.f32.mrf.mxu0
    %v2052 = vadd.f32 %v1887, %v2051
    %v2053 = vpop.f32.mrf.mxu0
    %v2054 = vpop.f32.mrf.mxu0
    %v2055 = vadd.f32 %v1887, %v2054
    %v2056 = vpop.f32.mrf.mxu0
    %2057 = vmatprep.mubr.bf16.mxu0 0
    %2058 = vmatmul.mubr.bf16.gmra.mxu0 %v1862
    %v2059 = vpop.f32.mrf.mxu0
    %v2060 = vadd.f32 %v1887, %v2059
    %v2061 = vpop.f32.mrf.mxu0
    %v2062 = vpop.f32.mrf.mxu0
    %v2063 = vadd.f32 %v1887, %v2062
    %v2064 = vpop.f32.mrf.mxu0
    %2065 = vmatprep.mubr.bf16.mxu0 0
    %2066 = vmatmul.mubr.bf16.gmra.mxu0 %v1863
    %v2067 = vpop.f32.mrf.mxu0
    %v2068 = vadd.f32 %v1887, %v2067
    %v2069 = vpop.f32.mrf.mxu0
    %v2070 = vpop.f32.mrf.mxu0
    %v2071 = vadd.f32 %v1887, %v2070
    %v2072 = vpop.f32.mrf.mxu0
    %2073 = vmatprep.mubr.bf16.mxu0 0
    %2074 = vmatmul.mubr.bf16.gmra.mxu0 %v1864
    %v2075 = vpop.f32.mrf.mxu0
    %v2076 = vadd.f32 %v1887, %v2075
    %v2077 = vpop.f32.mrf.mxu0
    %v2078 = vpop.f32.mrf.mxu0
    %v2079 = vadd.f32 %v1887, %v2078
    %v2080 = vpop.f32.mrf.mxu0
    %2081 = vmatprep.mubr.bf16.mxu0 0
    %2082 = vmatmul.mubr.bf16.gmra.mxu0 %v1865
    %v2083 = vpop.f32.mrf.mxu0
    %v2084 = vadd.f32 %v1887, %v2083
    %v2085 = vpop.f32.mrf.mxu0
    %v2086 = vpop.f32.mrf.mxu0
    %v2087 = vadd.f32 %v1887, %v2086
    %v2088 = vpop.f32.mrf.mxu0
    %2089 = vmatprep.mubr.bf16.mxu0 0
    %2090 = vmatmul.mubr.bf16.gmra.mxu0 %v1866
    %v2091 = vpop.f32.mrf.mxu0
    %v2092 = vadd.f32 %v1887, %v2091
    %v2093 = vpop.f32.mrf.mxu0
    %v2094 = vpop.f32.mrf.mxu0
    %v2095 = vadd.f32 %v1887, %v2094
    %v2096 = vpop.f32.mrf.mxu0
    %2097 = vdwg.mxu0
    %v2098 = vmax.f32 %v1972, 0.0
    %v2099 = vmax.f32 %v1975, 0.0
    %v2100 = vmax.f32 %v1980, 0.0
    %v2101 = vmax.f32 %v1983, 0.0
    %v2102 = vmax.f32 %v1988, 0.0
    %v2103 = vmax.f32 %v1991, 0.0
    %v2104 = vmax.f32 %v1996, 0.0
    %v2105 = vmax.f32 %v1999, 0.0
    %v2106 = vmax.f32 %v2004, 0.0
    %v2107 = vmax.f32 %v2007, 0.0
    %v2108 = vmax.f32 %v2012, 0.0
    %v2109 = vmax.f32 %v2015, 0.0
    %v2110 = vmax.f32 %v2020, 0.0
    %v2111 = vmax.f32 %v2023, 0.0
    %v2112 = vmax.f32 %v2028, 0.0
    %v2113 = vmax.f32 %v2031, 0.0
    %v2114 = vmax.f32 %v2036, 0.0
    %v2115 = vmax.f32 %v2039, 0.0
    %v2116 = vmax.f32 %v2044, 0.0
    %v2117 = vmax.f32 %v2047, 0.0
    %v2118 = vmax.f32 %v2052, 0.0
    %v2119 = vmax.f32 %v2055, 0.0
    %v2120 = vmax.f32 %v2060, 0.0
    %v2121 = vmax.f32 %v2063, 0.0
    %v2122 = vmax.f32 %v2068, 0.0
    %v2123 = vmax.f32 %v2071, 0.0
    %v2124 = vmax.f32 %v2076, 0.0
    %v2125 = vmax.f32 %v2079, 0.0
    %v2126 = vmax.f32 %v2084, 0.0
    %v2127 = vmax.f32 %v2087, 0.0
    %v2128 = vmax.f32 %v2092, 0.0
    %v2129 = vmax.f32 %v2095, 0.0
    %v2130 = vpack.c.bf16 %v2099, %v2098
    %v2131 = vpack.c.bf16 %v2101, %v2100
    %v2132 = vpack.c.bf16 %v2103, %v2102
    %v2133 = vpack.c.bf16 %v2105, %v2104
    %v2134 = vpack.c.bf16 %v2107, %v2106
    %v2135 = vpack.c.bf16 %v2109, %v2108
    %v2136 = vpack.c.bf16 %v2111, %v2110
    %v2137 = vpack.c.bf16 %v2113, %v2112
    %v2138 = vpack.c.bf16 %v2115, %v2114
    %v2139 = vpack.c.bf16 %v2117, %v2116
    %v2140 = vpack.c.bf16 %v2119, %v2118
    %v2141 = vpack.c.bf16 %v2121, %v2120
    %v2142 = vpack.c.bf16 %v2123, %v2122
    %v2143 = vpack.c.bf16 %v2125, %v2124
    %v2144 = vpack.c.bf16 %v2127, %v2126
    %v2145 = vpack.c.bf16 %v2129, %v2128
    %v2146 = vld [vmem:[#allocation10] sm:$0xff]
    %v2147 = vld [vmem:[#allocation10 + $0x8] sm:$0xff]
    %v2148 = vld [vmem:[#allocation10 + $0x10] sm:$0xff]
    %v2149 = vld [vmem:[#allocation10 + $0x18] sm:$0xf]
    %v2150 = vld [vmem:[#allocation10 + $0x1c] sm:$0xff]
    %v2151 = vld [vmem:[#allocation10 + $0x24] sm:$0xff]
    %v2152 = vld [vmem:[#allocation10 + $0x2c] sm:$0xff]
    %v2153 = vld [vmem:[#allocation10 + $0x34] sm:$0xf]
    %v2154 = vld [vmem:[#allocation10 + $0x38] sm:$0xff]
    %v2155 = vld [vmem:[#allocation10 + $0x40] sm:$0xff]
    %v2156 = vld [vmem:[#allocation10 + $0x48] sm:$0xff]
    %v2157 = vld [vmem:[#allocation10 + $0x50] sm:$0xf]
    %v2158 = vld [vmem:[#allocation10 + $0x54] sm:$0xff]
    %v2159 = vld [vmem:[#allocation10 + $0x5c] sm:$0xff]
    %v2160 = vld [vmem:[#allocation10 + $0x64] sm:$0xff]
    %v2161 = vld [vmem:[#allocation10 + $0x6c] sm:$0xf]
    %v2162 = vld [vmem:[#allocation10 + $0x70] sm:$0xff]
    %v2163 = vld [vmem:[#allocation10 + $0x78] sm:$0xff]
    %v2164 = vld [vmem:[#allocation10 + $0x80] sm:$0xff]
    %v2165 = vld [vmem:[#allocation10 + $0x88] sm:$0xf]
    %v2166 = vld [vmem:[#allocation10 + $0x8c] sm:$0xff]
    %v2167 = vld [vmem:[#allocation10 + $0x94] sm:$0xff]
    %v2168 = vld [vmem:[#allocation10 + $0x9c] sm:$0xff]
    %v2169 = vld [vmem:[#allocation10 + $0xa4] sm:$0xf]
    %v2170 = vld [vmem:[#allocation10 + $0xa8] sm:$0xff]
    %v2171 = vld [vmem:[#allocation10 + $0xb0] sm:$0xff]
    %v2172 = vld [vmem:[#allocation10 + $0xb8] sm:$0xff]
    %v2173 = vld [vmem:[#allocation10 + $0xc0] sm:$0xf]
    %v2174 = vld [vmem:[#allocation10 + $0xc4] sm:$0xff]
    %v2175 = vld [vmem:[#allocation10 + $0xcc] sm:$0xff]
    %v2176 = vld [vmem:[#allocation10 + $0xd4] sm:$0xff]
    %v2177 = vld [vmem:[#allocation10 + $0xdc] sm:$0xf]
    %v2178 = vld [vmem:[#allocation10 + $0xe0] sm:$0xff]
    %v2179 = vld [vmem:[#allocation10 + $0xe8] sm:$0xff]
    %v2180 = vld [vmem:[#allocation10 + $0xf0] sm:$0xff]
    %v2181 = vld [vmem:[#allocation10 + $0xf8] sm:$0xf]
    %v2182 = vld [vmem:[#allocation10 + $0xfc] sm:$0xff]
    %v2183 = vld [vmem:[#allocation10 + $0x104] sm:$0xff]
    %v2184 = vld [vmem:[#allocation10 + $0x10c] sm:$0xff]
    %v2185 = vld [vmem:[#allocation10 + $0x114] sm:$0xf]
    %v2186 = vld [vmem:[#allocation10 + $0x118] sm:$0xff]
    %v2187 = vld [vmem:[#allocation10 + $0x120] sm:$0xff]
    %v2188 = vld [vmem:[#allocation10 + $0x128] sm:$0xff]
    %v2189 = vld [vmem:[#allocation10 + $0x130] sm:$0xf]
    %v2190 = vld [vmem:[#allocation10 + $0x134] sm:$0xff]
    %v2191 = vld [vmem:[#allocation10 + $0x13c] sm:$0xff]
    %v2192 = vld [vmem:[#allocation10 + $0x144] sm:$0xff]
    %v2193 = vld [vmem:[#allocation10 + $0x14c] sm:$0xf]
    %v2194 = vld [vmem:[#allocation10 + $0x150] sm:$0xff]
    %v2195 = vld [vmem:[#allocation10 + $0x158] sm:$0xff]
    %v2196 = vld [vmem:[#allocation10 + $0x160] sm:$0xff]
    %v2197 = vld [vmem:[#allocation10 + $0x168] sm:$0xf]
    %v2198 = vld [vmem:[#allocation10 + $0x16c] sm:$0xff]
    %v2199 = vld [vmem:[#allocation10 + $0x174] sm:$0xff]
    %v2200 = vld [vmem:[#allocation10 + $0x17c] sm:$0xff]
    %v2201 = vld [vmem:[#allocation10 + $0x184] sm:$0xf]
    %v2202 = vld [vmem:[#allocation10 + $0x188] sm:$0xff]
    %v2203 = vld [vmem:[#allocation10 + $0x190] sm:$0xff]
    %v2204 = vld [vmem:[#allocation10 + $0x198] sm:$0xff]
    %v2205 = vld [vmem:[#allocation10 + $0x1a0] sm:$0xf]
    %v2206 = vld [vmem:[#allocation10 + $0x1a4] sm:$0xff]
    %v2207 = vld [vmem:[#allocation10 + $0x1ac] sm:$0xff]
    %v2208 = vld [vmem:[#allocation10 + $0x1b4] sm:$0xff]
    %v2209 = vld [vmem:[#allocation10 + $0x1bc] sm:$0xf]
    %v2211 = vlaneseq
    %v2212 = vshrl.u32 %v2211, 7
    %v2213 = vsub.s32 0, %v2212
    %v2214 = vrot.slane %v105, %v2213
    %v2215 = vlaneseq
    %v2216 = vshrl.u32 %v2215, 7
    %v2217 = vsub.s32 1, %v2216
    %v2218 = vrot.slane %v105, %v2217
    %v2219 = vlaneseq
    %v2220 = vshrl.u32 %v2219, 7
    %v2221 = vsub.s32 2, %v2220
    %v2222 = vrot.slane %v105, %v2221
    %v2223 = vlaneseq
    %v2224 = vshrl.u32 %v2223, 7
    %v2225 = vsub.s32 3, %v2224
    %v2226 = vrot.slane %v105, %v2225
    %v2227 = vlaneseq
    %v2228 = vshrl.u32 %v2227, 7
    %v2229 = vsub.s32 4, %v2228
    %v2230 = vrot.slane %v105, %v2229
    %v2231 = vlaneseq
    %v2232 = vshrl.u32 %v2231, 7
    %v2233 = vsub.s32 5, %v2232
    %v2234 = vrot.slane %v105, %v2233
    %v2235 = vlaneseq
    %v2236 = vshrl.u32 %v2235, 7
    %v2237 = vsub.s32 6, %v2236
    %v2238 = vrot.slane %v105, %v2237
    %v2310 = vunpack.c.l.b16 %v2146
    %v2311 = vunpack.c.h.b16 %v2146
    %v2312 = vunpack.c.l.b16 %v2147
    %v2313 = vunpack.c.h.b16 %v2147
    %v2314 = vunpack.c.l.b16 %v2148
    %v2315 = vunpack.c.h.b16 %v2148
    %v2316 = vunpack.c.l.b16 %v2149
    %v2317 = vunpack.c.l.b16 %v2150
    %v2318 = vunpack.c.h.b16 %v2150
    %v2319 = vunpack.c.l.b16 %v2151
    %v2320 = vunpack.c.h.b16 %v2151
    %v2321 = vunpack.c.l.b16 %v2152
    %v2322 = vunpack.c.h.b16 %v2152
    %v2323 = vunpack.c.l.b16 %v2153
    %v2324 = vunpack.c.l.b16 %v2154
    %v2325 = vunpack.c.h.b16 %v2154
    %v2326 = vunpack.c.l.b16 %v2155
    %v2327 = vunpack.c.h.b16 %v2155
    %v2328 = vunpack.c.l.b16 %v2156
    %v2329 = vunpack.c.h.b16 %v2156
    %v2330 = vunpack.c.l.b16 %v2157
    %v2331 = vunpack.c.l.b16 %v2158
    %v2332 = vunpack.c.h.b16 %v2158
    %v2333 = vunpack.c.l.b16 %v2159
    %v2334 = vunpack.c.h.b16 %v2159
    %v2335 = vunpack.c.l.b16 %v2160
    %v2336 = vunpack.c.h.b16 %v2160
    %v2337 = vunpack.c.l.b16 %v2161
    %v2338 = vunpack.c.l.b16 %v2162
    %v2339 = vunpack.c.h.b16 %v2162
    %v2340 = vunpack.c.l.b16 %v2163
    %v2341 = vunpack.c.h.b16 %v2163
    %v2342 = vunpack.c.l.b16 %v2164
    %v2343 = vunpack.c.h.b16 %v2164
    %v2344 = vunpack.c.l.b16 %v2165
    %v2345 = vunpack.c.l.b16 %v2166
    %v2346 = vunpack.c.h.b16 %v2166
    %v2347 = vunpack.c.l.b16 %v2167
    %v2348 = vunpack.c.h.b16 %v2167
    %v2349 = vunpack.c.l.b16 %v2168
    %v2350 = vunpack.c.h.b16 %v2168
    %v2351 = vunpack.c.l.b16 %v2169
    %v2352 = vunpack.c.l.b16 %v2170
    %v2353 = vunpack.c.h.b16 %v2170
    %v2354 = vunpack.c.l.b16 %v2171
    %v2355 = vunpack.c.h.b16 %v2171
    %v2356 = vunpack.c.l.b16 %v2172
    %v2357 = vunpack.c.h.b16 %v2172
    %v2358 = vunpack.c.l.b16 %v2173
    %v2359 = vunpack.c.l.b16 %v2174
    %v2360 = vunpack.c.h.b16 %v2174
    %v2361 = vunpack.c.l.b16 %v2175
    %v2362 = vunpack.c.h.b16 %v2175
    %v2363 = vunpack.c.l.b16 %v2176
    %v2364 = vunpack.c.h.b16 %v2176
    %v2365 = vunpack.c.l.b16 %v2177
    %v2366 = vunpack.c.l.b16 %v2178
    %v2367 = vunpack.c.h.b16 %v2178
    %v2368 = vunpack.c.l.b16 %v2179
    %v2369 = vunpack.c.h.b16 %v2179
    %v2370 = vunpack.c.l.b16 %v2180
    %v2371 = vunpack.c.h.b16 %v2180
    %v2372 = vunpack.c.l.b16 %v2181
    %v2373 = vunpack.c.l.b16 %v2182
    %v2374 = vunpack.c.h.b16 %v2182
    %v2375 = vunpack.c.l.b16 %v2183
    %v2376 = vunpack.c.h.b16 %v2183
    %v2377 = vunpack.c.l.b16 %v2184
    %v2378 = vunpack.c.h.b16 %v2184
    %v2379 = vunpack.c.l.b16 %v2185
    %v2380 = vunpack.c.l.b16 %v2186
    %v2381 = vunpack.c.h.b16 %v2186
    %v2382 = vunpack.c.l.b16 %v2187
    %v2383 = vunpack.c.h.b16 %v2187
    %v2384 = vunpack.c.l.b16 %v2188
    %v2385 = vunpack.c.h.b16 %v2188
    %v2386 = vunpack.c.l.b16 %v2189
    %v2387 = vunpack.c.l.b16 %v2190
    %v2388 = vunpack.c.h.b16 %v2190
    %v2389 = vunpack.c.l.b16 %v2191
    %v2390 = vunpack.c.h.b16 %v2191
    %v2391 = vunpack.c.l.b16 %v2192
    %v2392 = vunpack.c.h.b16 %v2192
    %v2393 = vunpack.c.l.b16 %v2193
    %v2394 = vunpack.c.l.b16 %v2194
    %v2395 = vunpack.c.h.b16 %v2194
    %v2396 = vunpack.c.l.b16 %v2195
    %v2397 = vunpack.c.h.b16 %v2195
    %v2398 = vunpack.c.l.b16 %v2196
    %v2399 = vunpack.c.h.b16 %v2196
    %v2400 = vunpack.c.l.b16 %v2197
    %v2401 = vunpack.c.l.b16 %v2198
    %v2402 = vunpack.c.h.b16 %v2198
    %v2403 = vunpack.c.l.b16 %v2199
    %v2404 = vunpack.c.h.b16 %v2199
    %v2405 = vunpack.c.l.b16 %v2200
    %v2406 = vunpack.c.h.b16 %v2200
    %v2407 = vunpack.c.l.b16 %v2201
    %v2408 = vunpack.c.l.b16 %v2202
    %v2409 = vunpack.c.h.b16 %v2202
    %v2410 = vunpack.c.l.b16 %v2203
    %v2411 = vunpack.c.h.b16 %v2203
    %v2412 = vunpack.c.l.b16 %v2204
    %v2413 = vunpack.c.h.b16 %v2204
    %v2414 = vunpack.c.l.b16 %v2205
    %v2415 = vunpack.c.l.b16 %v2206
    %v2416 = vunpack.c.h.b16 %v2206
    %v2417 = vunpack.c.l.b16 %v2207
    %v2418 = vunpack.c.h.b16 %v2207
    %v2419 = vunpack.c.l.b16 %v2208
    %v2420 = vunpack.c.h.b16 %v2208
    %v2421 = vunpack.c.l.b16 %v2209
    %v2422 = vpack.c.b16 %v2317, %v2310
    %v2423 = vpack.c.b16 %v2318, %v2311
    %v2424 = vpack.c.b16 %v2319, %v2312
    %v2425 = vpack.c.b16 %v2320, %v2313
    %v2426 = vpack.c.b16 %v2321, %v2314
    %v2427 = vpack.c.b16 %v2322, %v2315
    %v2428 = vpack.c.b16 %v2323, %v2316
    %v2429 = vpack.c.b16 %v2331, %v2324
    %v2430 = vpack.c.b16 %v2332, %v2325
    %v2431 = vpack.c.b16 %v2333, %v2326
    %v2432 = vpack.c.b16 %v2334, %v2327
    %v2433 = vpack.c.b16 %v2335, %v2328
    %v2434 = vpack.c.b16 %v2336, %v2329
    %v2435 = vpack.c.b16 %v2337, %v2330
    %v2436 = vpack.c.b16 %v2345, %v2338
    %v2437 = vpack.c.b16 %v2346, %v2339
    %v2438 = vpack.c.b16 %v2347, %v2340
    %v2439 = vpack.c.b16 %v2348, %v2341
    %v2440 = vpack.c.b16 %v2349, %v2342
    %v2441 = vpack.c.b16 %v2350, %v2343
    %v2442 = vpack.c.b16 %v2351, %v2344
    %v2443 = vpack.c.b16 %v2359, %v2352
    %v2444 = vpack.c.b16 %v2360, %v2353
    %v2445 = vpack.c.b16 %v2361, %v2354
    %v2446 = vpack.c.b16 %v2362, %v2355
    %v2447 = vpack.c.b16 %v2363, %v2356
    %v2448 = vpack.c.b16 %v2364, %v2357
    %v2449 = vpack.c.b16 %v2365, %v2358
    %v2450 = vpack.c.b16 %v2373, %v2366
    %v2451 = vpack.c.b16 %v2374, %v2367
    %v2452 = vpack.c.b16 %v2375, %v2368
    %v2453 = vpack.c.b16 %v2376, %v2369
    %v2454 = vpack.c.b16 %v2377, %v2370
    %v2455 = vpack.c.b16 %v2378, %v2371
    %v2456 = vpack.c.b16 %v2379, %v2372
    %v2457 = vpack.c.b16 %v2387, %v2380
    %v2458 = vpack.c.b16 %v2388, %v2381
    %v2459 = vpack.c.b16 %v2389, %v2382
    %v2460 = vpack.c.b16 %v2390, %v2383
    %v2461 = vpack.c.b16 %v2391, %v2384
    %v2462 = vpack.c.b16 %v2392, %v2385
    %v2463 = vpack.c.b16 %v2393, %v2386
    %v2464 = vpack.c.b16 %v2401, %v2394
    %v2465 = vpack.c.b16 %v2402, %v2395
    %v2466 = vpack.c.b16 %v2403, %v2396
    %v2467 = vpack.c.b16 %v2404, %v2397
    %v2468 = vpack.c.b16 %v2405, %v2398
    %v2469 = vpack.c.b16 %v2406, %v2399
    %v2470 = vpack.c.b16 %v2407, %v2400
    %v2471 = vpack.c.b16 %v2415, %v2408
    %v2472 = vpack.c.b16 %v2416, %v2409
    %v2473 = vpack.c.b16 %v2417, %v2410
    %v2474 = vpack.c.b16 %v2418, %v2411
    %v2475 = vpack.c.b16 %v2419, %v2412
    %v2476 = vpack.c.b16 %v2420, %v2413
    %v2477 = vpack.c.b16 %v2421, %v2414
    %2534 = vmatprep.subr.bf16.mxu0 %v2472
    %2535 = vmatpush1.bf16.msra.mxu0 %v2471
    %2536 = vmatprep.subr.bf16.mxu0 %v2465
    %2537 = vmatpush1.bf16.msra.mxu0 %v2464
    %2538 = vmatprep.subr.bf16.mxu0 %v2458
    %2539 = vmatpush1.bf16.msra.mxu0 %v2457
    %2540 = vmatprep.subr.bf16.mxu0 %v2451
    %2541 = vmatpush1.bf16.msra.mxu0 %v2450
    %2542 = vmatprep.subr.bf16.mxu0 %v2444
    %2543 = vmatpush1.bf16.msra.mxu0 %v2443
    %2544 = vmatprep.subr.bf16.mxu0 %v2437
    %2545 = vmatpush1.bf16.msra.mxu0 %v2436
    %2546 = vmatprep.subr.bf16.mxu0 %v2430
    %2547 = vmatpush1.bf16.msra.mxu0 %v2429
    %2548 = vmatprep.subr.bf16.mxu0 %v2423
    %2549 = vmatpush1.bf16.msra.mxu0 %v2422
    %2550 = vmatprep.subr.bf16.mxu0 0
    %2551 = vmatpush2.bf16.msra.mxu0 0
    %2552 = vmatprep.subr.bf16.mxu0 0
    %2553 = vmatpush2.bf16.msra.mxu0 0
    %2554 = vmatprep.subr.bf16.mxu0 0
    %2555 = vmatpush2.bf16.msra.mxu0 0
    %2556 = vmatprep.subr.bf16.mxu0 0
    %2557 = vmatpush2.bf16.msra.mxu0 0
    %2558 = vmatprep.subr.bf16.mxu0 0
    %2559 = vmatpush2.bf16.msra.mxu0 0
    %2560 = vmatprep.subr.bf16.mxu0 0
    %2561 = vmatpush2.bf16.msra.mxu0 0
    %2562 = vmatprep.subr.bf16.mxu0 0
    %2563 = vmatpush2.bf16.msra.mxu0 0
    %2564 = vmatprep.subr.bf16.mxu0 0
    %2565 = vmatpush2.bf16.msra.mxu0 0
    %2566 = vmatprep.mubr.bf16.mxu0 0
    %2567 = vmatmul.mubr.bf16.gmra.mxu0 %v2130
    %v2568 = vpop.f32.mrf.mxu0
    %v2569 = vadd.f32 %v2214, %v2568
    %v2570 = vpop.f32.mrf.mxu0
    %v2571 = vadd.f32 %v2218, %v2570
    %v2572 = vpop.f32.mrf.mxu0
    %v2573 = vadd.f32 %v2214, %v2572
    %v2574 = vpop.f32.mrf.mxu0
    %v2575 = vadd.f32 %v2218, %v2574
    %2576 = vmatprep.mubr.bf16.mxu0 0
    %2577 = vmatmul.mubr.bf16.gmra.mxu0 %v2131
    %v2578 = vpop.f32.mrf.mxu0
    %v2579 = vadd.f32 %v2214, %v2578
    %v2580 = vpop.f32.mrf.mxu0
    %v2581 = vadd.f32 %v2218, %v2580
    %v2582 = vpop.f32.mrf.mxu0
    %v2583 = vadd.f32 %v2214, %v2582
    %v2584 = vpop.f32.mrf.mxu0
    %v2585 = vadd.f32 %v2218, %v2584
    %2586 = vmatprep.mubr.bf16.mxu0 0
    %2587 = vmatmul.mubr.bf16.gmra.mxu0 %v2132
    %v2588 = vpop.f32.mrf.mxu0
    %v2589 = vadd.f32 %v2214, %v2588
    %v2590 = vpop.f32.mrf.mxu0
    %v2591 = vadd.f32 %v2218, %v2590
    %v2592 = vpop.f32.mrf.mxu0
    %v2593 = vadd.f32 %v2214, %v2592
    %v2594 = vpop.f32.mrf.mxu0
    %v2595 = vadd.f32 %v2218, %v2594
    %2596 = vmatprep.mubr.bf16.mxu0 0
    %2597 = vmatmul.mubr.bf16.gmra.mxu0 %v2133
    %v2598 = vpop.f32.mrf.mxu0
    %v2599 = vadd.f32 %v2214, %v2598
    %v2600 = vpop.f32.mrf.mxu0
    %v2601 = vadd.f32 %v2218, %v2600
    %v2602 = vpop.f32.mrf.mxu0
    %v2603 = vadd.f32 %v2214, %v2602
    %v2604 = vpop.f32.mrf.mxu0
    %v2605 = vadd.f32 %v2218, %v2604
    %2606 = vmatprep.mubr.bf16.mxu0 0
    %2607 = vmatmul.mubr.bf16.gmra.mxu0 %v2134
    %v2608 = vpop.f32.mrf.mxu0
    %v2609 = vadd.f32 %v2214, %v2608
    %v2610 = vpop.f32.mrf.mxu0
    %v2611 = vadd.f32 %v2218, %v2610
    %v2612 = vpop.f32.mrf.mxu0
    %v2613 = vadd.f32 %v2214, %v2612
    %v2614 = vpop.f32.mrf.mxu0
    %v2615 = vadd.f32 %v2218, %v2614
    %2616 = vmatprep.mubr.bf16.mxu0 0
    %2617 = vmatmul.mubr.bf16.gmra.mxu0 %v2135
    %v2618 = vpop.f32.mrf.mxu0
    %v2619 = vadd.f32 %v2214, %v2618
    %v2620 = vpop.f32.mrf.mxu0
    %v2621 = vadd.f32 %v2218, %v2620
    %v2622 = vpop.f32.mrf.mxu0
    %v2623 = vadd.f32 %v2214, %v2622
    %v2624 = vpop.f32.mrf.mxu0
    %v2625 = vadd.f32 %v2218, %v2624
    %2626 = vmatprep.mubr.bf16.mxu0 0
    %2627 = vmatmul.mubr.bf16.gmra.mxu0 %v2136
    %v2628 = vpop.f32.mrf.mxu0
    %v2629 = vadd.f32 %v2214, %v2628
    %v2630 = vpop.f32.mrf.mxu0
    %v2631 = vadd.f32 %v2218, %v2630
    %v2632 = vpop.f32.mrf.mxu0
    %v2633 = vadd.f32 %v2214, %v2632
    %v2634 = vpop.f32.mrf.mxu0
    %v2635 = vadd.f32 %v2218, %v2634
    %2636 = vmatprep.mubr.bf16.mxu0 0
    %2637 = vmatmul.mubr.bf16.gmra.mxu0 %v2137
    %v2638 = vpop.f32.mrf.mxu0
    %v2639 = vadd.f32 %v2214, %v2638
    %v2640 = vpop.f32.mrf.mxu0
    %v2641 = vadd.f32 %v2218, %v2640
    %v2642 = vpop.f32.mrf.mxu0
    %v2643 = vadd.f32 %v2214, %v2642
    %v2644 = vpop.f32.mrf.mxu0
    %v2645 = vadd.f32 %v2218, %v2644
    %2646 = vmatprep.mubr.bf16.mxu0 0
    %2647 = vmatmul.mubr.bf16.gmra.mxu0 %v2138
    %v2648 = vpop.f32.mrf.mxu0
    %v2649 = vadd.f32 %v2214, %v2648
    %v2650 = vpop.f32.mrf.mxu0
    %v2651 = vadd.f32 %v2218, %v2650
    %v2652 = vpop.f32.mrf.mxu0
    %v2653 = vadd.f32 %v2214, %v2652
    %v2654 = vpop.f32.mrf.mxu0
    %v2655 = vadd.f32 %v2218, %v2654
    %2656 = vmatprep.mubr.bf16.mxu0 0
    %2657 = vmatmul.mubr.bf16.gmra.mxu0 %v2139
    %v2658 = vpop.f32.mrf.mxu0
    %v2659 = vadd.f32 %v2214, %v2658
    %v2660 = vpop.f32.mrf.mxu0
    %v2661 = vadd.f32 %v2218, %v2660
    %v2662 = vpop.f32.mrf.mxu0
    %v2663 = vadd.f32 %v2214, %v2662
    %v2664 = vpop.f32.mrf.mxu0
    %v2665 = vadd.f32 %v2218, %v2664
    %2666 = vmatprep.mubr.bf16.mxu0 0
    %2667 = vmatmul.mubr.bf16.gmra.mxu0 %v2140
    %v2668 = vpop.f32.mrf.mxu0
    %v2669 = vadd.f32 %v2214, %v2668
    %v2670 = vpop.f32.mrf.mxu0
    %v2671 = vadd.f32 %v2218, %v2670
    %v2672 = vpop.f32.mrf.mxu0
    %v2673 = vadd.f32 %v2214, %v2672
    %v2674 = vpop.f32.mrf.mxu0
    %v2675 = vadd.f32 %v2218, %v2674
    %2676 = vmatprep.mubr.bf16.mxu0 0
    %2677 = vmatmul.mubr.bf16.gmra.mxu0 %v2141
    %v2678 = vpop.f32.mrf.mxu0
    %v2679 = vadd.f32 %v2214, %v2678
    %v2680 = vpop.f32.mrf.mxu0
    %v2681 = vadd.f32 %v2218, %v2680
    %v2682 = vpop.f32.mrf.mxu0
    %v2683 = vadd.f32 %v2214, %v2682
    %v2684 = vpop.f32.mrf.mxu0
    %v2685 = vadd.f32 %v2218, %v2684
    %2686 = vmatprep.mubr.bf16.mxu0 0
    %2687 = vmatmul.mubr.bf16.gmra.mxu0 %v2142
    %v2688 = vpop.f32.mrf.mxu0
    %v2689 = vadd.f32 %v2214, %v2688
    %v2690 = vpop.f32.mrf.mxu0
    %v2691 = vadd.f32 %v2218, %v2690
    %v2692 = vpop.f32.mrf.mxu0
    %v2693 = vadd.f32 %v2214, %v2692
    %v2694 = vpop.f32.mrf.mxu0
    %v2695 = vadd.f32 %v2218, %v2694
    %2696 = vmatprep.mubr.bf16.mxu0 0
    %2697 = vmatmul.mubr.bf16.gmra.mxu0 %v2143
    %v2698 = vpop.f32.mrf.mxu0
    %v2699 = vadd.f32 %v2214, %v2698
    %v2700 = vpop.f32.mrf.mxu0
    %v2701 = vadd.f32 %v2218, %v2700
    %v2702 = vpop.f32.mrf.mxu0
    %v2703 = vadd.f32 %v2214, %v2702
    %v2704 = vpop.f32.mrf.mxu0
    %v2705 = vadd.f32 %v2218, %v2704
    %2706 = vmatprep.mubr.bf16.mxu0 0
    %2707 = vmatmul.mubr.bf16.gmra.mxu0 %v2144
    %v2708 = vpop.f32.mrf.mxu0
    %v2709 = vadd.f32 %v2214, %v2708
    %v2710 = vpop.f32.mrf.mxu0
    %v2711 = vadd.f32 %v2218, %v2710
    %v2712 = vpop.f32.mrf.mxu0
    %v2713 = vadd.f32 %v2214, %v2712
    %v2714 = vpop.f32.mrf.mxu0
    %v2715 = vadd.f32 %v2218, %v2714
    %2716 = vmatprep.mubr.bf16.mxu0 0
    %2717 = vmatmul.mubr.bf16.gmra.mxu0 %v2145
    %v2718 = vpop.f32.mrf.mxu0
    %v2719 = vadd.f32 %v2214, %v2718
    %v2720 = vpop.f32.mrf.mxu0
    %v2721 = vadd.f32 %v2218, %v2720
    %v2722 = vpop.f32.mrf.mxu0
    %v2723 = vadd.f32 %v2214, %v2722
    %v2724 = vpop.f32.mrf.mxu0
    %v2725 = vadd.f32 %v2218, %v2724
    %2726 = vdwg.mxu0
    %2727 = vmatprep.subr.bf16.mxu0 %v2474
    %2728 = vmatpush1.bf16.msra.mxu0 %v2473
    %2729 = vmatprep.subr.bf16.mxu0 %v2467
    %2730 = vmatpush1.bf16.msra.mxu0 %v2466
    %2731 = vmatprep.subr.bf16.mxu0 %v2460
    %2732 = vmatpush1.bf16.msra.mxu0 %v2459
    %2733 = vmatprep.subr.bf16.mxu0 %v2453
    %2734 = vmatpush1.bf16.msra.mxu0 %v2452
    %2735 = vmatprep.subr.bf16.mxu0 %v2446
    %2736 = vmatpush1.bf16.msra.mxu0 %v2445
    %2737 = vmatprep.subr.bf16.mxu0 %v2439
    %2738 = vmatpush1.bf16.msra.mxu0 %v2438
    %2739 = vmatprep.subr.bf16.mxu0 %v2432
    %2740 = vmatpush1.bf16.msra.mxu0 %v2431
    %2741 = vmatprep.subr.bf16.mxu0 %v2425
    %2742 = vmatpush1.bf16.msra.mxu0 %v2424
    %2743 = vmatprep.subr.bf16.mxu0 0
    %2744 = vmatpush2.bf16.msra.mxu0 0
    %2745 = vmatprep.subr.bf16.mxu0 0
    %2746 = vmatpush2.bf16.msra.mxu0 0
    %2747 = vmatprep.subr.bf16.mxu0 0
    %2748 = vmatpush2.bf16.msra.mxu0 0
    %2749 = vmatprep.subr.bf16.mxu0 0
    %2750 = vmatpush2.bf16.msra.mxu0 0
    %2751 = vmatprep.subr.bf16.mxu0 0
    %2752 = vmatpush2.bf16.msra.mxu0 0
    %2753 = vmatprep.subr.bf16.mxu0 0
    %2754 = vmatpush2.bf16.msra.mxu0 0
    %2755 = vmatprep.subr.bf16.mxu0 0
    %2756 = vmatpush2.bf16.msra.mxu0 0
    %2757 = vmatprep.subr.bf16.mxu0 0
    %2758 = vmatpush2.bf16.msra.mxu0 0
    %2759 = vmatprep.mubr.bf16.mxu0 0
    %2760 = vmatmul.mubr.bf16.gmra.mxu0 %v2130
    %v2761 = vpop.f32.mrf.mxu0
    %v2762 = vadd.f32 %v2222, %v2761
    %v2763 = vpop.f32.mrf.mxu0
    %v2764 = vadd.f32 %v2226, %v2763
    %v2765 = vpop.f32.mrf.mxu0
    %v2766 = vadd.f32 %v2222, %v2765
    %v2767 = vpop.f32.mrf.mxu0
    %v2768 = vadd.f32 %v2226, %v2767
    %2769 = vmatprep.mubr.bf16.mxu0 0
    %2770 = vmatmul.mubr.bf16.gmra.mxu0 %v2131
    %v2771 = vpop.f32.mrf.mxu0
    %v2772 = vadd.f32 %v2222, %v2771
    %v2773 = vpop.f32.mrf.mxu0
    %v2774 = vadd.f32 %v2226, %v2773
    %v2775 = vpop.f32.mrf.mxu0
    %v2776 = vadd.f32 %v2222, %v2775
    %v2777 = vpop.f32.mrf.mxu0
    %v2778 = vadd.f32 %v2226, %v2777
    %2779 = vmatprep.mubr.bf16.mxu0 0
    %2780 = vmatmul.mubr.bf16.gmra.mxu0 %v2132
    %v2781 = vpop.f32.mrf.mxu0
    %v2782 = vadd.f32 %v2222, %v2781
    %v2783 = vpop.f32.mrf.mxu0
    %v2784 = vadd.f32 %v2226, %v2783
    %v2785 = vpop.f32.mrf.mxu0
    %v2786 = vadd.f32 %v2222, %v2785
    %v2787 = vpop.f32.mrf.mxu0
    %v2788 = vadd.f32 %v2226, %v2787
    %2789 = vmatprep.mubr.bf16.mxu0 0
    %2790 = vmatmul.mubr.bf16.gmra.mxu0 %v2133
    %v2791 = vpop.f32.mrf.mxu0
    %v2792 = vadd.f32 %v2222, %v2791
    %v2793 = vpop.f32.mrf.mxu0
    %v2794 = vadd.f32 %v2226, %v2793
    %v2795 = vpop.f32.mrf.mxu0
    %v2796 = vadd.f32 %v2222, %v2795
    %v2797 = vpop.f32.mrf.mxu0
    %v2798 = vadd.f32 %v2226, %v2797
    %2799 = vmatprep.mubr.bf16.mxu0 0
    %2800 = vmatmul.mubr.bf16.gmra.mxu0 %v2134
    %v2801 = vpop.f32.mrf.mxu0
    %v2802 = vadd.f32 %v2222, %v2801
    %v2803 = vpop.f32.mrf.mxu0
    %v2804 = vadd.f32 %v2226, %v2803
    %v2805 = vpop.f32.mrf.mxu0
    %v2806 = vadd.f32 %v2222, %v2805
    %v2807 = vpop.f32.mrf.mxu0
    %v2808 = vadd.f32 %v2226, %v2807
    %2809 = vmatprep.mubr.bf16.mxu0 0
    %2810 = vmatmul.mubr.bf16.gmra.mxu0 %v2135
    %v2811 = vpop.f32.mrf.mxu0
    %v2812 = vadd.f32 %v2222, %v2811
    %v2813 = vpop.f32.mrf.mxu0
    %v2814 = vadd.f32 %v2226, %v2813
    %v2815 = vpop.f32.mrf.mxu0
    %v2816 = vadd.f32 %v2222, %v2815
    %v2817 = vpop.f32.mrf.mxu0
    %v2818 = vadd.f32 %v2226, %v2817
    %2819 = vmatprep.mubr.bf16.mxu0 0
    %2820 = vmatmul.mubr.bf16.gmra.mxu0 %v2136
    %v2821 = vpop.f32.mrf.mxu0
    %v2822 = vadd.f32 %v2222, %v2821
    %v2823 = vpop.f32.mrf.mxu0
    %v2824 = vadd.f32 %v2226, %v2823
    %v2825 = vpop.f32.mrf.mxu0
    %v2826 = vadd.f32 %v2222, %v2825
    %v2827 = vpop.f32.mrf.mxu0
    %v2828 = vadd.f32 %v2226, %v2827
    %2829 = vmatprep.mubr.bf16.mxu0 0
    %2830 = vmatmul.mubr.bf16.gmra.mxu0 %v2137
    %v2831 = vpop.f32.mrf.mxu0
    %v2832 = vadd.f32 %v2222, %v2831
    %v2833 = vpop.f32.mrf.mxu0
    %v2834 = vadd.f32 %v2226, %v2833
    %v2835 = vpop.f32.mrf.mxu0
    %v2836 = vadd.f32 %v2222, %v2835
    %v2837 = vpop.f32.mrf.mxu0
    %v2838 = vadd.f32 %v2226, %v2837
    %2839 = vmatprep.mubr.bf16.mxu0 0
    %2840 = vmatmul.mubr.bf16.gmra.mxu0 %v2138
    %v2841 = vpop.f32.mrf.mxu0
    %v2842 = vadd.f32 %v2222, %v2841
    %v2843 = vpop.f32.mrf.mxu0
    %v2844 = vadd.f32 %v2226, %v2843
    %v2845 = vpop.f32.mrf.mxu0
    %v2846 = vadd.f32 %v2222, %v2845
    %v2847 = vpop.f32.mrf.mxu0
    %v2848 = vadd.f32 %v2226, %v2847
    %2849 = vmatprep.mubr.bf16.mxu0 0
    %2850 = vmatmul.mubr.bf16.gmra.mxu0 %v2139
    %v2851 = vpop.f32.mrf.mxu0
    %v2852 = vadd.f32 %v2222, %v2851
    %v2853 = vpop.f32.mrf.mxu0
    %v2854 = vadd.f32 %v2226, %v2853
    %v2855 = vpop.f32.mrf.mxu0
    %v2856 = vadd.f32 %v2222, %v2855
    %v2857 = vpop.f32.mrf.mxu0
    %v2858 = vadd.f32 %v2226, %v2857
    %2859 = vmatprep.mubr.bf16.mxu0 0
    %2860 = vmatmul.mubr.bf16.gmra.mxu0 %v2140
    %v2861 = vpop.f32.mrf.mxu0
    %v2862 = vadd.f32 %v2222, %v2861
    %v2863 = vpop.f32.mrf.mxu0
    %v2864 = vadd.f32 %v2226, %v2863
    %v2865 = vpop.f32.mrf.mxu0
    %v2866 = vadd.f32 %v2222, %v2865
    %v2867 = vpop.f32.mrf.mxu0
    %v2868 = vadd.f32 %v2226, %v2867
    %2869 = vmatprep.mubr.bf16.mxu0 0
    %2870 = vmatmul.mubr.bf16.gmra.mxu0 %v2141
    %v2871 = vpop.f32.mrf.mxu0
    %v2872 = vadd.f32 %v2222, %v2871
    %v2873 = vpop.f32.mrf.mxu0
    %v2874 = vadd.f32 %v2226, %v2873
    %v2875 = vpop.f32.mrf.mxu0
    %v2876 = vadd.f32 %v2222, %v2875
    %v2877 = vpop.f32.mrf.mxu0
    %v2878 = vadd.f32 %v2226, %v2877
    %2879 = vmatprep.mubr.bf16.mxu0 0
    %2880 = vmatmul.mubr.bf16.gmra.mxu0 %v2142
    %v2881 = vpop.f32.mrf.mxu0
    %v2882 = vadd.f32 %v2222, %v2881
    %v2883 = vpop.f32.mrf.mxu0
    %v2884 = vadd.f32 %v2226, %v2883
    %v2885 = vpop.f32.mrf.mxu0
    %v2886 = vadd.f32 %v2222, %v2885
    %v2887 = vpop.f32.mrf.mxu0
    %v2888 = vadd.f32 %v2226, %v2887
    %2889 = vmatprep.mubr.bf16.mxu0 0
    %2890 = vmatmul.mubr.bf16.gmra.mxu0 %v2143
    %v2891 = vpop.f32.mrf.mxu0
    %v2892 = vadd.f32 %v2222, %v2891
    %v2893 = vpop.f32.mrf.mxu0
    %v2894 = vadd.f32 %v2226, %v2893
    %v2895 = vpop.f32.mrf.mxu0
    %v2896 = vadd.f32 %v2222, %v2895
    %v2897 = vpop.f32.mrf.mxu0
    %v2898 = vadd.f32 %v2226, %v2897
    %2899 = vmatprep.mubr.bf16.mxu0 0
    %2900 = vmatmul.mubr.bf16.gmra.mxu0 %v2144
    %v2901 = vpop.f32.mrf.mxu0
    %v2902 = vadd.f32 %v2222, %v2901
    %v2903 = vpop.f32.mrf.mxu0
    %v2904 = vadd.f32 %v2226, %v2903
    %v2905 = vpop.f32.mrf.mxu0
    %v2906 = vadd.f32 %v2222, %v2905
    %v2907 = vpop.f32.mrf.mxu0
    %v2908 = vadd.f32 %v2226, %v2907
    %2909 = vmatprep.mubr.bf16.mxu0 0
    %2910 = vmatmul.mubr.bf16.gmra.mxu0 %v2145
    %v2911 = vpop.f32.mrf.mxu0
    %v2912 = vadd.f32 %v2222, %v2911
    %v2913 = vpop.f32.mrf.mxu0
    %v2914 = vadd.f32 %v2226, %v2913
    %v2915 = vpop.f32.mrf.mxu0
    %v2916 = vadd.f32 %v2222, %v2915
    %v2917 = vpop.f32.mrf.mxu0
    %v2918 = vadd.f32 %v2226, %v2917
    %2919 = vdwg.mxu0
    %2920 = vmatprep.subr.bf16.mxu0 %v2476
    %2921 = vmatpush1.bf16.msra.mxu0 %v2475
    %2922 = vmatprep.subr.bf16.mxu0 %v2469
    %2923 = vmatpush1.bf16.msra.mxu0 %v2468
    %2924 = vmatprep.subr.bf16.mxu0 %v2462
    %2925 = vmatpush1.bf16.msra.mxu0 %v2461
    %2926 = vmatprep.subr.bf16.mxu0 %v2455
    %2927 = vmatpush1.bf16.msra.mxu0 %v2454
    %2928 = vmatprep.subr.bf16.mxu0 %v2448
    %2929 = vmatpush1.bf16.msra.mxu0 %v2447
    %2930 = vmatprep.subr.bf16.mxu0 %v2441
    %2931 = vmatpush1.bf16.msra.mxu0 %v2440
    %2932 = vmatprep.subr.bf16.mxu0 %v2434
    %2933 = vmatpush1.bf16.msra.mxu0 %v2433
    %2934 = vmatprep.subr.bf16.mxu0 %v2427
    %2935 = vmatpush1.bf16.msra.mxu0 %v2426
    %2936 = vmatprep.subr.bf16.mxu0 0
    %2937 = vmatpush2.bf16.msra.mxu0 0
    %2938 = vmatprep.subr.bf16.mxu0 0
    %2939 = vmatpush2.bf16.msra.mxu0 0
    %2940 = vmatprep.subr.bf16.mxu0 0
    %2941 = vmatpush2.bf16.msra.mxu0 0
    %2942 = vmatprep.subr.bf16.mxu0 0
    %2943 = vmatpush2.bf16.msra.mxu0 0
    %2944 = vmatprep.subr.bf16.mxu0 0
    %2945 = vmatpush2.bf16.msra.mxu0 0
    %2946 = vmatprep.subr.bf16.mxu0 0
    %2947 = vmatpush2.bf16.msra.mxu0 0
    %2948 = vmatprep.subr.bf16.mxu0 0
    %2949 = vmatpush2.bf16.msra.mxu0 0
    %2950 = vmatprep.subr.bf16.mxu0 0
    %2951 = vmatpush2.bf16.msra.mxu0 0
    %2952 = vmatprep.mubr.bf16.mxu0 0
    %2953 = vmatmul.mubr.bf16.gmra.mxu0 %v2130
    %v2954 = vpop.f32.mrf.mxu0
    %v2955 = vadd.f32 %v2230, %v2954
    %v2956 = vpop.f32.mrf.mxu0
    %v2957 = vadd.f32 %v2234, %v2956
    %v2958 = vpop.f32.mrf.mxu0
    %v2959 = vadd.f32 %v2230, %v2958
    %v2960 = vpop.f32.mrf.mxu0
    %v2961 = vadd.f32 %v2234, %v2960
    %2962 = vmatprep.mubr.bf16.mxu0 0
    %2963 = vmatmul.mubr.bf16.gmra.mxu0 %v2131
    %v2964 = vpop.f32.mrf.mxu0
    %v2965 = vadd.f32 %v2230, %v2964
    %v2966 = vpop.f32.mrf.mxu0
    %v2967 = vadd.f32 %v2234, %v2966
    %v2968 = vpop.f32.mrf.mxu0
    %v2969 = vadd.f32 %v2230, %v2968
    %v2970 = vpop.f32.mrf.mxu0
    %v2971 = vadd.f32 %v2234, %v2970
    %2972 = vmatprep.mubr.bf16.mxu0 0
    %2973 = vmatmul.mubr.bf16.gmra.mxu0 %v2132
    %v2974 = vpop.f32.mrf.mxu0
    %v2975 = vadd.f32 %v2230, %v2974
    %v2976 = vpop.f32.mrf.mxu0
    %v2977 = vadd.f32 %v2234, %v2976
    %v2978 = vpop.f32.mrf.mxu0
    %v2979 = vadd.f32 %v2230, %v2978
    %v2980 = vpop.f32.mrf.mxu0
    %v2981 = vadd.f32 %v2234, %v2980
    %2982 = vmatprep.mubr.bf16.mxu0 0
    %2983 = vmatmul.mubr.bf16.gmra.mxu0 %v2133
    %v2984 = vpop.f32.mrf.mxu0
    %v2985 = vadd.f32 %v2230, %v2984
    %v2986 = vpop.f32.mrf.mxu0
    %v2987 = vadd.f32 %v2234, %v2986
    %v2988 = vpop.f32.mrf.mxu0
    %v2989 = vadd.f32 %v2230, %v2988
    %v2990 = vpop.f32.mrf.mxu0
    %v2991 = vadd.f32 %v2234, %v2990
    %2992 = vmatprep.mubr.bf16.mxu0 0
    %2993 = vmatmul.mubr.bf16.gmra.mxu0 %v2134
    %v2994 = vpop.f32.mrf.mxu0
    %v2995 = vadd.f32 %v2230, %v2994
    %v2996 = vpop.f32.mrf.mxu0
    %v2997 = vadd.f32 %v2234, %v2996
    %v2998 = vpop.f32.mrf.mxu0
    %v2999 = vadd.f32 %v2230, %v2998
    %v3000 = vpop.f32.mrf.mxu0
    %v3001 = vadd.f32 %v2234, %v3000
    %3002 = vmatprep.mubr.bf16.mxu0 0
    %3003 = vmatmul.mubr.bf16.gmra.mxu0 %v2135
    %v3004 = vpop.f32.mrf.mxu0
    %v3005 = vadd.f32 %v2230, %v3004
    %v3006 = vpop.f32.mrf.mxu0
    %v3007 = vadd.f32 %v2234, %v3006
    %v3008 = vpop.f32.mrf.mxu0
    %v3009 = vadd.f32 %v2230, %v3008
    %v3010 = vpop.f32.mrf.mxu0
    %v3011 = vadd.f32 %v2234, %v3010
    %3012 = vmatprep.mubr.bf16.mxu0 0
    %3013 = vmatmul.mubr.bf16.gmra.mxu0 %v2136
    %v3014 = vpop.f32.mrf.mxu0
    %v3015 = vadd.f32 %v2230, %v3014
    %v3016 = vpop.f32.mrf.mxu0
    %v3017 = vadd.f32 %v2234, %v3016
    %v3018 = vpop.f32.mrf.mxu0
    %v3019 = vadd.f32 %v2230, %v3018
    %v3020 = vpop.f32.mrf.mxu0
    %v3021 = vadd.f32 %v2234, %v3020
    %3022 = vmatprep.mubr.bf16.mxu0 0
    %3023 = vmatmul.mubr.bf16.gmra.mxu0 %v2137
    %v3024 = vpop.f32.mrf.mxu0
    %v3025 = vadd.f32 %v2230, %v3024
    %v3026 = vpop.f32.mrf.mxu0
    %v3027 = vadd.f32 %v2234, %v3026
    %v3028 = vpop.f32.mrf.mxu0
    %v3029 = vadd.f32 %v2230, %v3028
    %v3030 = vpop.f32.mrf.mxu0
    %v3031 = vadd.f32 %v2234, %v3030
    %3032 = vmatprep.mubr.bf16.mxu0 0
    %3033 = vmatmul.mubr.bf16.gmra.mxu0 %v2138
    %v3034 = vpop.f32.mrf.mxu0
    %v3035 = vadd.f32 %v2230, %v3034
    %v3036 = vpop.f32.mrf.mxu0
    %v3037 = vadd.f32 %v2234, %v3036
    %v3038 = vpop.f32.mrf.mxu0
    %v3039 = vadd.f32 %v2230, %v3038
    %v3040 = vpop.f32.mrf.mxu0
    %v3041 = vadd.f32 %v2234, %v3040
    %3042 = vmatprep.mubr.bf16.mxu0 0
    %3043 = vmatmul.mubr.bf16.gmra.mxu0 %v2139
    %v3044 = vpop.f32.mrf.mxu0
    %v3045 = vadd.f32 %v2230, %v3044
    %v3046 = vpop.f32.mrf.mxu0
    %v3047 = vadd.f32 %v2234, %v3046
    %v3048 = vpop.f32.mrf.mxu0
    %v3049 = vadd.f32 %v2230, %v3048
    %v3050 = vpop.f32.mrf.mxu0
    %v3051 = vadd.f32 %v2234, %v3050
    %3052 = vmatprep.mubr.bf16.mxu0 0
    %3053 = vmatmul.mubr.bf16.gmra.mxu0 %v2140
    %v3054 = vpop.f32.mrf.mxu0
    %v3055 = vadd.f32 %v2230, %v3054
    %v3056 = vpop.f32.mrf.mxu0
    %v3057 = vadd.f32 %v2234, %v3056
    %v3058 = vpop.f32.mrf.mxu0
    %v3059 = vadd.f32 %v2230, %v3058
    %v3060 = vpop.f32.mrf.mxu0
    %v3061 = vadd.f32 %v2234, %v3060
    %3062 = vmatprep.mubr.bf16.mxu0 0
    %3063 = vmatmul.mubr.bf16.gmra.mxu0 %v2141
    %v3064 = vpop.f32.mrf.mxu0
    %v3065 = vadd.f32 %v2230, %v3064
    %v3066 = vpop.f32.mrf.mxu0
    %v3067 = vadd.f32 %v2234, %v3066
    %v3068 = vpop.f32.mrf.mxu0
    %v3069 = vadd.f32 %v2230, %v3068
    %v3070 = vpop.f32.mrf.mxu0
    %v3071 = vadd.f32 %v2234, %v3070
    %3072 = vmatprep.mubr.bf16.mxu0 0
    %3073 = vmatmul.mubr.bf16.gmra.mxu0 %v2142
    %v3074 = vpop.f32.mrf.mxu0
    %v3075 = vadd.f32 %v2230, %v3074
    %v3076 = vpop.f32.mrf.mxu0
    %v3077 = vadd.f32 %v2234, %v3076
    %v3078 = vpop.f32.mrf.mxu0
    %v3079 = vadd.f32 %v2230, %v3078
    %v3080 = vpop.f32.mrf.mxu0
    %v3081 = vadd.f32 %v2234, %v3080
    %3082 = vmatprep.mubr.bf16.mxu0 0
    %3083 = vmatmul.mubr.bf16.gmra.mxu0 %v2143
    %v3084 = vpop.f32.mrf.mxu0
    %v3085 = vadd.f32 %v2230, %v3084
    %v3086 = vpop.f32.mrf.mxu0
    %v3087 = vadd.f32 %v2234, %v3086
    %v3088 = vpop.f32.mrf.mxu0
    %v3089 = vadd.f32 %v2230, %v3088
    %v3090 = vpop.f32.mrf.mxu0
    %v3091 = vadd.f32 %v2234, %v3090
    %3092 = vmatprep.mubr.bf16.mxu0 0
    %3093 = vmatmul.mubr.bf16.gmra.mxu0 %v2144
    %v3094 = vpop.f32.mrf.mxu0
    %v3095 = vadd.f32 %v2230, %v3094
    %v3096 = vpop.f32.mrf.mxu0
    %v3097 = vadd.f32 %v2234, %v3096
    %v3098 = vpop.f32.mrf.mxu0
    %v3099 = vadd.f32 %v2230, %v3098
    %v3100 = vpop.f32.mrf.mxu0
    %v3101 = vadd.f32 %v2234, %v3100
    %3102 = vmatprep.mubr.bf16.mxu0 0
    %3103 = vmatmul.mubr.bf16.gmra.mxu0 %v2145
    %v3104 = vpop.f32.mrf.mxu0
    %v3105 = vadd.f32 %v2230, %v3104
    %v3106 = vpop.f32.mrf.mxu0
    %v3107 = vadd.f32 %v2234, %v3106
    %v3108 = vpop.f32.mrf.mxu0
    %v3109 = vadd.f32 %v2230, %v3108
    %v3110 = vpop.f32.mrf.mxu0
    %v3111 = vadd.f32 %v2234, %v3110
    %3112 = vdwg.mxu0
    %3113 = vmatprep.subr.bf16.mxu0 0
    %3114 = vmatpush1.bf16.msra.mxu0 %v2477
    %3115 = vmatprep.subr.bf16.mxu0 0
    %3116 = vmatpush1.bf16.msra.mxu0 %v2470
    %3117 = vmatprep.subr.bf16.mxu0 0
    %3118 = vmatpush1.bf16.msra.mxu0 %v2463
    %3119 = vmatprep.subr.bf16.mxu0 0
    %3120 = vmatpush1.bf16.msra.mxu0 %v2456
    %3121 = vmatprep.subr.bf16.mxu0 0
    %3122 = vmatpush1.bf16.msra.mxu0 %v2449
    %3123 = vmatprep.subr.bf16.mxu0 0
    %3124 = vmatpush1.bf16.msra.mxu0 %v2442
    %3125 = vmatprep.subr.bf16.mxu0 0
    %3126 = vmatpush1.bf16.msra.mxu0 %v2435
    %3127 = vmatprep.subr.bf16.mxu0 0
    %3128 = vmatpush1.bf16.msra.mxu0 %v2428
    %3129 = vmatprep.subr.bf16.mxu0 0
    %3130 = vmatpush2.bf16.msra.mxu0 0
    %3131 = vmatprep.subr.bf16.mxu0 0
    %3132 = vmatpush2.bf16.msra.mxu0 0
    %3133 = vmatprep.subr.bf16.mxu0 0
    %3134 = vmatpush2.bf16.msra.mxu0 0
    %3135 = vmatprep.subr.bf16.mxu0 0
    %3136 = vmatpush2.bf16.msra.mxu0 0
    %3137 = vmatprep.subr.bf16.mxu0 0
    %3138 = vmatpush2.bf16.msra.mxu0 0
    %3139 = vmatprep.subr.bf16.mxu0 0
    %3140 = vmatpush2.bf16.msra.mxu0 0
    %3141 = vmatprep.subr.bf16.mxu0 0
    %3142 = vmatpush2.bf16.msra.mxu0 0
    %3143 = vmatprep.subr.bf16.mxu0 0
    %3144 = vmatpush2.bf16.msra.mxu0 0
    %3145 = vmatprep.mubr.bf16.mxu0 0
    %3146 = vmatmul.mubr.bf16.gmra.mxu0 %v2130
    %v3147 = vpop.f32.mrf.mxu0
    %v3148 = vadd.f32 %v2238, %v3147
    %v3149 = vpop.f32.mrf.mxu0
    %v3150 = vpop.f32.mrf.mxu0
    %v3151 = vadd.f32 %v2238, %v3150
    %v3152 = vpop.f32.mrf.mxu0
    %3153 = vmatprep.mubr.bf16.mxu0 0
    %3154 = vmatmul.mubr.bf16.gmra.mxu0 %v2131
    %v3155 = vpop.f32.mrf.mxu0
    %v3156 = vadd.f32 %v2238, %v3155
    %v3157 = vpop.f32.mrf.mxu0
    %v3158 = vpop.f32.mrf.mxu0
    %v3159 = vadd.f32 %v2238, %v3158
    %v3160 = vpop.f32.mrf.mxu0
    %3161 = vmatprep.mubr.bf16.mxu0 0
    %3162 = vmatmul.mubr.bf16.gmra.mxu0 %v2132
    %v3163 = vpop.f32.mrf.mxu0
    %v3164 = vadd.f32 %v2238, %v3163
    %v3165 = vpop.f32.mrf.mxu0
    %v3166 = vpop.f32.mrf.mxu0
    %v3167 = vadd.f32 %v2238, %v3166
    %v3168 = vpop.f32.mrf.mxu0
    %3169 = vmatprep.mubr.bf16.mxu0 0
    %3170 = vmatmul.mubr.bf16.gmra.mxu0 %v2133
    %v3171 = vpop.f32.mrf.mxu0
    %v3172 = vadd.f32 %v2238, %v3171
    %v3173 = vpop.f32.mrf.mxu0
    %v3174 = vpop.f32.mrf.mxu0
    %v3175 = vadd.f32 %v2238, %v3174
    %v3176 = vpop.f32.mrf.mxu0
    %3177 = vmatprep.mubr.bf16.mxu0 0
    %3178 = vmatmul.mubr.bf16.gmra.mxu0 %v2134
    %v3179 = vpop.f32.mrf.mxu0
    %v3180 = vadd.f32 %v2238, %v3179
    %v3181 = vpop.f32.mrf.mxu0
    %v3182 = vpop.f32.mrf.mxu0
    %v3183 = vadd.f32 %v2238, %v3182
    %v3184 = vpop.f32.mrf.mxu0
    %3185 = vmatprep.mubr.bf16.mxu0 0
    %3186 = vmatmul.mubr.bf16.gmra.mxu0 %v2135
    %v3187 = vpop.f32.mrf.mxu0
    %v3188 = vadd.f32 %v2238, %v3187
    %v3189 = vpop.f32.mrf.mxu0
    %v3190 = vpop.f32.mrf.mxu0
    %v3191 = vadd.f32 %v2238, %v3190
    %v3192 = vpop.f32.mrf.mxu0
    %3193 = vmatprep.mubr.bf16.mxu0 0
    %3194 = vmatmul.mubr.bf16.gmra.mxu0 %v2136
    %v3195 = vpop.f32.mrf.mxu0
    %v3196 = vadd.f32 %v2238, %v3195
    %v3197 = vpop.f32.mrf.mxu0
    %v3198 = vpop.f32.mrf.mxu0
    %v3199 = vadd.f32 %v2238, %v3198
    %v3200 = vpop.f32.mrf.mxu0
    %3201 = vmatprep.mubr.bf16.mxu0 0
    %3202 = vmatmul.mubr.bf16.gmra.mxu0 %v2137
    %v3203 = vpop.f32.mrf.mxu0
    %v3204 = vadd.f32 %v2238, %v3203
    %v3205 = vpop.f32.mrf.mxu0
    %v3206 = vpop.f32.mrf.mxu0
    %v3207 = vadd.f32 %v2238, %v3206
    %v3208 = vpop.f32.mrf.mxu0
    %3209 = vmatprep.mubr.bf16.mxu0 0
    %3210 = vmatmul.mubr.bf16.gmra.mxu0 %v2138
    %v3211 = vpop.f32.mrf.mxu0
    %v3212 = vadd.f32 %v2238, %v3211
    %v3213 = vpop.f32.mrf.mxu0
    %v3214 = vpop.f32.mrf.mxu0
    %v3215 = vadd.f32 %v2238, %v3214
    %v3216 = vpop.f32.mrf.mxu0
    %3217 = vmatprep.mubr.bf16.mxu0 0
    %3218 = vmatmul.mubr.bf16.gmra.mxu0 %v2139
    %v3219 = vpop.f32.mrf.mxu0
    %v3220 = vadd.f32 %v2238, %v3219
    %v3221 = vpop.f32.mrf.mxu0
    %v3222 = vpop.f32.mrf.mxu0
    %v3223 = vadd.f32 %v2238, %v3222
    %v3224 = vpop.f32.mrf.mxu0
    %3225 = vmatprep.mubr.bf16.mxu0 0
    %3226 = vmatmul.mubr.bf16.gmra.mxu0 %v2140
    %v3227 = vpop.f32.mrf.mxu0
    %v3228 = vadd.f32 %v2238, %v3227
    %v3229 = vpop.f32.mrf.mxu0
    %v3230 = vpop.f32.mrf.mxu0
    %v3231 = vadd.f32 %v2238, %v3230
    %v3232 = vpop.f32.mrf.mxu0
    %3233 = vmatprep.mubr.bf16.mxu0 0
    %3234 = vmatmul.mubr.bf16.gmra.mxu0 %v2141
    %v3235 = vpop.f32.mrf.mxu0
    %v3236 = vadd.f32 %v2238, %v3235
    %v3237 = vpop.f32.mrf.mxu0
    %v3238 = vpop.f32.mrf.mxu0
    %v3239 = vadd.f32 %v2238, %v3238
    %v3240 = vpop.f32.mrf.mxu0
    %3241 = vmatprep.mubr.bf16.mxu0 0
    %3242 = vmatmul.mubr.bf16.gmra.mxu0 %v2142
    %v3243 = vpop.f32.mrf.mxu0
    %v3244 = vadd.f32 %v2238, %v3243
    %v3245 = vpop.f32.mrf.mxu0
    %v3246 = vpop.f32.mrf.mxu0
    %v3247 = vadd.f32 %v2238, %v3246
    %v3248 = vpop.f32.mrf.mxu0
    %3249 = vmatprep.mubr.bf16.mxu0 0
    %3250 = vmatmul.mubr.bf16.gmra.mxu0 %v2143
    %v3251 = vpop.f32.mrf.mxu0
    %v3252 = vadd.f32 %v2238, %v3251
    %v3253 = vpop.f32.mrf.mxu0
    %v3254 = vpop.f32.mrf.mxu0
    %v3255 = vadd.f32 %v2238, %v3254
    %v3256 = vpop.f32.mrf.mxu0
    %3257 = vmatprep.mubr.bf16.mxu0 0
    %3258 = vmatmul.mubr.bf16.gmra.mxu0 %v2144
    %v3259 = vpop.f32.mrf.mxu0
    %v3260 = vadd.f32 %v2238, %v3259
    %v3261 = vpop.f32.mrf.mxu0
    %v3262 = vpop.f32.mrf.mxu0
    %v3263 = vadd.f32 %v2238, %v3262
    %v3264 = vpop.f32.mrf.mxu0
    %3265 = vmatprep.mubr.bf16.mxu0 0
    %3266 = vmatmul.mubr.bf16.gmra.mxu0 %v2145
    %v3267 = vpop.f32.mrf.mxu0
    %v3268 = vadd.f32 %v2238, %v3267
    %v3269 = vpop.f32.mrf.mxu0
    %v3270 = vpop.f32.mrf.mxu0
    %v3271 = vadd.f32 %v2238, %v3270
    %v3272 = vpop.f32.mrf.mxu0
    %3273 = vdwg.mxu0
    %v3274 = vxor.u32 %v2569, 2147483648
    %v3275 = vxor.u32 %v2571, 2147483648
    %v3276 = vxor.u32 %v2762, 2147483648
    %v3277 = vxor.u32 %v2764, 2147483648
    %v3278 = vxor.u32 %v2955, 2147483648
    %v3279 = vxor.u32 %v2957, 2147483648
    %v3280 = vxor.u32 %v3148, 2147483648
    %v3281 = vxor.u32 %v2573, 2147483648
    %v3282 = vxor.u32 %v2575, 2147483648
    %v3283 = vxor.u32 %v2766, 2147483648
    %v3284 = vxor.u32 %v2768, 2147483648
    %v3285 = vxor.u32 %v2959, 2147483648
    %v3286 = vxor.u32 %v2961, 2147483648
    %v3287 = vxor.u32 %v3151, 2147483648
    %v3288 = vxor.u32 %v2579, 2147483648
    %v3289 = vxor.u32 %v2581, 2147483648
    %v3290 = vxor.u32 %v2772, 2147483648
    %v3291 = vxor.u32 %v2774, 2147483648
    %v3292 = vxor.u32 %v2965, 2147483648
    %v3293 = vxor.u32 %v2967, 2147483648
    %v3294 = vxor.u32 %v3156, 2147483648
    %v3295 = vxor.u32 %v2583, 2147483648
    %v3296 = vxor.u32 %v2585, 2147483648
    %v3297 = vxor.u32 %v2776, 2147483648
    %v3298 = vxor.u32 %v2778, 2147483648
    %v3299 = vxor.u32 %v2969, 2147483648
    %v3300 = vxor.u32 %v2971, 2147483648
    %v3301 = vxor.u32 %v3159, 2147483648
    %v3302 = vxor.u32 %v2589, 2147483648
    %v3303 = vxor.u32 %v2591, 2147483648
    %v3304 = vxor.u32 %v2782, 2147483648
    %v3305 = vxor.u32 %v2784, 2147483648
    %v3306 = vxor.u32 %v2975, 2147483648
    %v3307 = vxor.u32 %v2977, 2147483648
    %v3308 = vxor.u32 %v3164, 2147483648
    %v3309 = vxor.u32 %v2593, 2147483648
    %v3310 = vxor.u32 %v2595, 2147483648
    %v3311 = vxor.u32 %v2786, 2147483648
    %v3312 = vxor.u32 %v2788, 2147483648
    %v3313 = vxor.u32 %v2979, 2147483648
    %v3314 = vxor.u32 %v2981, 2147483648
    %v3315 = vxor.u32 %v3167, 2147483648
    %v3316 = vxor.u32 %v2599, 2147483648
    %v3317 = vxor.u32 %v2601, 2147483648
    %v3318 = vxor.u32 %v2792, 2147483648
    %v3319 = vxor.u32 %v2794, 2147483648
    %v3320 = vxor.u32 %v2985, 2147483648
    %v3321 = vxor.u32 %v2987, 2147483648
    %v3322 = vxor.u32 %v3172, 2147483648
    %v3323 = vxor.u32 %v2603, 2147483648
    %v3324 = vxor.u32 %v2605, 2147483648
    %v3325 = vxor.u32 %v2796, 2147483648
    %v3326 = vxor.u32 %v2798, 2147483648
    %v3327 = vxor.u32 %v2989, 2147483648
    %v3328 = vxor.u32 %v2991, 2147483648
    %v3329 = vxor.u32 %v3175, 2147483648
    %v3330 = vxor.u32 %v2609, 2147483648
    %v3331 = vxor.u32 %v2611, 2147483648
    %v3332 = vxor.u32 %v2802, 2147483648
    %v3333 = vxor.u32 %v2804, 2147483648
    %v3334 = vxor.u32 %v2995, 2147483648
    %v3335 = vxor.u32 %v2997, 2147483648
    %v3336 = vxor.u32 %v3180, 2147483648
    %v3337 = vxor.u32 %v2613, 2147483648
    %v3338 = vxor.u32 %v2615, 2147483648
    %v3339 = vxor.u32 %v2806, 2147483648
    %v3340 = vxor.u32 %v2808, 2147483648
    %v3341 = vxor.u32 %v2999, 2147483648
    %v3342 = vxor.u32 %v3001, 2147483648
    %v3343 = vxor.u32 %v3183, 2147483648
    %v3344 = vxor.u32 %v2619, 2147483648
    %v3345 = vxor.u32 %v2621, 2147483648
    %v3346 = vxor.u32 %v2812, 2147483648
    %v3347 = vxor.u32 %v2814, 2147483648
    %v3348 = vxor.u32 %v3005, 2147483648
    %v3349 = vxor.u32 %v3007, 2147483648
    %v3350 = vxor.u32 %v3188, 2147483648
    %v3351 = vxor.u32 %v2623, 2147483648
    %v3352 = vxor.u32 %v2625, 2147483648
    %v3353 = vxor.u32 %v2816, 2147483648
    %v3354 = vxor.u32 %v2818, 2147483648
    %v3355 = vxor.u32 %v3009, 2147483648
    %v3356 = vxor.u32 %v3011, 2147483648
    %v3357 = vxor.u32 %v3191, 2147483648
    %v3358 = vxor.u32 %v2629, 2147483648
    %v3359 = vxor.u32 %v2631, 2147483648
    %v3360 = vxor.u32 %v2822, 2147483648
    %v3361 = vxor.u32 %v2824, 2147483648
    %v3362 = vxor.u32 %v3015, 2147483648
    %v3363 = vxor.u32 %v3017, 2147483648
    %v3364 = vxor.u32 %v3196, 2147483648
    %v3365 = vxor.u32 %v2633, 2147483648
    %v3366 = vxor.u32 %v2635, 2147483648
    %v3367 = vxor.u32 %v2826, 2147483648
    %v3368 = vxor.u32 %v2828, 2147483648
    %v3369 = vxor.u32 %v3019, 2147483648
    %v3370 = vxor.u32 %v3021, 2147483648
    %v3371 = vxor.u32 %v3199, 2147483648
    %v3372 = vxor.u32 %v2639, 2147483648
    %v3373 = vxor.u32 %v2641, 2147483648
    %v3374 = vxor.u32 %v2832, 2147483648
    %v3375 = vxor.u32 %v2834, 2147483648
    %v3376 = vxor.u32 %v3025, 2147483648
    %v3377 = vxor.u32 %v3027, 2147483648
    %v3378 = vxor.u32 %v3204, 2147483648
    %v3379 = vxor.u32 %v2643, 2147483648
    %v3380 = vxor.u32 %v2645, 2147483648
    %v3381 = vxor.u32 %v2836, 2147483648
    %v3382 = vxor.u32 %v2838, 2147483648
    %v3383 = vxor.u32 %v3029, 2147483648
    %v3384 = vxor.u32 %v3031, 2147483648
    %v3385 = vxor.u32 %v3207, 2147483648
    %v3386 = vxor.u32 %v2649, 2147483648
    %v3387 = vxor.u32 %v2651, 2147483648
    %v3388 = vxor.u32 %v2842, 2147483648
    %v3389 = vxor.u32 %v2844, 2147483648
    %v3390 = vxor.u32 %v3035, 2147483648
    %v3391 = vxor.u32 %v3037, 2147483648
    %v3392 = vxor.u32 %v3212, 2147483648
    %v3393 = vxor.u32 %v2653, 2147483648
    %v3394 = vxor.u32 %v2655, 2147483648
    %v3395 = vxor.u32 %v2846, 2147483648
    %v3396 = vxor.u32 %v2848, 2147483648
    %v3397 = vxor.u32 %v3039, 2147483648
    %v3398 = vxor.u32 %v3041, 2147483648
    %v3399 = vxor.u32 %v3215, 2147483648
    %v3400 = vxor.u32 %v2659, 2147483648
    %v3401 = vxor.u32 %v2661, 2147483648
    %v3402 = vxor.u32 %v2852, 2147483648
    %v3403 = vxor.u32 %v2854, 2147483648
    %v3404 = vxor.u32 %v3045, 2147483648
    %v3405 = vxor.u32 %v3047, 2147483648
    %v3406 = vxor.u32 %v3220, 2147483648
    %v3407 = vxor.u32 %v2663, 2147483648
    %v3408 = vxor.u32 %v2665, 2147483648
    %v3409 = vxor.u32 %v2856, 2147483648
    %v3410 = vxor.u32 %v2858, 2147483648
    %v3411 = vxor.u32 %v3049, 2147483648
    %v3412 = vxor.u32 %v3051, 2147483648
    %v3413 = vxor.u32 %v3223, 2147483648
    %v3414 = vxor.u32 %v2669, 2147483648
    %v3415 = vxor.u32 %v2671, 2147483648
    %v3416 = vxor.u32 %v2862, 2147483648
    %v3417 = vxor.u32 %v2864, 2147483648
    %v3418 = vxor.u32 %v3055, 2147483648
    %v3419 = vxor.u32 %v3057, 2147483648
    %v3420 = vxor.u32 %v3228, 2147483648
    %v3421 = vxor.u32 %v2673, 2147483648
    %v3422 = vxor.u32 %v2675, 2147483648
    %v3423 = vxor.u32 %v2866, 2147483648
    %v3424 = vxor.u32 %v2868, 2147483648
    %v3425 = vxor.u32 %v3059, 2147483648
    %v3426 = vxor.u32 %v3061, 2147483648
    %v3427 = vxor.u32 %v3231, 2147483648
    %v3428 = vxor.u32 %v2679, 2147483648
    %v3429 = vxor.u32 %v2681, 2147483648
    %v3430 = vxor.u32 %v2872, 2147483648
    %v3431 = vxor.u32 %v2874, 2147483648
    %v3432 = vxor.u32 %v3065, 2147483648
    %v3433 = vxor.u32 %v3067, 2147483648
    %v3434 = vxor.u32 %v3236, 2147483648
    %v3435 = vxor.u32 %v2683, 2147483648
    %v3436 = vxor.u32 %v2685, 2147483648
    %v3437 = vxor.u32 %v2876, 2147483648
    %v3438 = vxor.u32 %v2878, 2147483648
    %v3439 = vxor.u32 %v3069, 2147483648
    %v3440 = vxor.u32 %v3071, 2147483648
    %v3441 = vxor.u32 %v3239, 2147483648
    %v3442 = vxor.u32 %v2689, 2147483648
    %v3443 = vxor.u32 %v2691, 2147483648
    %v3444 = vxor.u32 %v2882, 2147483648
    %v3445 = vxor.u32 %v2884, 2147483648
    %v3446 = vxor.u32 %v3075, 2147483648
    %v3447 = vxor.u32 %v3077, 2147483648
    %v3448 = vxor.u32 %v3244, 2147483648
    %v3449 = vxor.u32 %v2693, 2147483648
    %v3450 = vxor.u32 %v2695, 2147483648
    %v3451 = vxor.u32 %v2886, 2147483648
    %v3452 = vxor.u32 %v2888, 2147483648
    %v3453 = vxor.u32 %v3079, 2147483648
    %v3454 = vxor.u32 %v3081, 2147483648
    %v3455 = vxor.u32 %v3247, 2147483648
    %v3456 = vxor.u32 %v2699, 2147483648
    %v3457 = vxor.u32 %v2701, 2147483648
    %v3458 = vxor.u32 %v2892, 2147483648
    %v3459 = vxor.u32 %v2894, 2147483648
    %v3460 = vxor.u32 %v3085, 2147483648
    %v3461 = vxor.u32 %v3087, 2147483648
    %v3462 = vxor.u32 %v3252, 2147483648
    %v3463 = vxor.u32 %v2703, 2147483648
    %v3464 = vxor.u32 %v2705, 2147483648
    %v3465 = vxor.u32 %v2896, 2147483648
    %v3466 = vxor.u32 %v2898, 2147483648
    %v3467 = vxor.u32 %v3089, 2147483648
    %v3468 = vxor.u32 %v3091, 2147483648
    %v3469 = vxor.u32 %v3255, 2147483648
    %v3470 = vxor.u32 %v2709, 2147483648
    %v3471 = vxor.u32 %v2711, 2147483648
    %v3472 = vxor.u32 %v2902, 2147483648
    %v3473 = vxor.u32 %v2904, 2147483648
    %v3474 = vxor.u32 %v3095, 2147483648
    %v3475 = vxor.u32 %v3097, 2147483648
    %v3476 = vxor.u32 %v3260, 2147483648
    %v3477 = vxor.u32 %v2713, 2147483648
    %v3478 = vxor.u32 %v2715, 2147483648
    %v3479 = vxor.u32 %v2906, 2147483648
    %v3480 = vxor.u32 %v2908, 2147483648
    %v3481 = vxor.u32 %v3099, 2147483648
    %v3482 = vxor.u32 %v3101, 2147483648
    %v3483 = vxor.u32 %v3263, 2147483648
    %v3484 = vxor.u32 %v2719, 2147483648
    %v3485 = vxor.u32 %v2721, 2147483648
    %v3486 = vxor.u32 %v2912, 2147483648
    %v3487 = vxor.u32 %v2914, 2147483648
    %v3488 = vxor.u32 %v3105, 2147483648
    %v3489 = vxor.u32 %v3107, 2147483648
    %v3490 = vxor.u32 %v3268, 2147483648
    %v3491 = vxor.u32 %v2723, 2147483648
    %v3492 = vxor.u32 %v2725, 2147483648
    %v3493 = vxor.u32 %v2916, 2147483648
    %v3494 = vxor.u32 %v2918, 2147483648
    %v3495 = vxor.u32 %v3109, 2147483648
    %v3496 = vxor.u32 %v3111, 2147483648
    %v3497 = vxor.u32 %v3271, 2147483648
    %v3498 = vmul.f32 %v3274, 1.442695
    %v3499 = vpow.pop %v3498
    %v3500 = vmul.f32 %v3275, 1.442695
    %v3501 = vpow.pop %v3500
    %v3502 = vmul.f32 %v3276, 1.442695
    %v3503 = vpow.pop %v3502
    %v3504 = vmul.f32 %v3277, 1.442695
    %v3505 = vpow.pop %v3504
    %v3506 = vmul.f32 %v3278, 1.442695
    %v3507 = vpow.pop %v3506
    %v3508 = vmul.f32 %v3279, 1.442695
    %v3509 = vpow.pop %v3508
    %v3510 = vmul.f32 %v3280, 1.442695
    %v3511 = vpow.pop %v3510
    %v3512 = vmul.f32 %v3281, 1.442695
    %v3513 = vpow.pop %v3512
    %v3514 = vmul.f32 %v3282, 1.442695
    %v3515 = vpow.pop %v3514
    %v3516 = vmul.f32 %v3283, 1.442695
    %v3517 = vpow.pop %v3516
    %v3518 = vmul.f32 %v3284, 1.442695
    %v3519 = vpow.pop %v3518
    %v3520 = vmul.f32 %v3285, 1.442695
    %v3521 = vpow.pop %v3520
    %v3522 = vmul.f32 %v3286, 1.442695
    %v3523 = vpow.pop %v3522
    %v3524 = vmul.f32 %v3287, 1.442695
    %v3525 = vpow.pop %v3524
    %v3526 = vmul.f32 %v3288, 1.442695
    %v3527 = vpow.pop %v3526
    %v3528 = vmul.f32 %v3289, 1.442695
    %v3529 = vpow.pop %v3528
    %v3530 = vmul.f32 %v3290, 1.442695
    %v3531 = vpow.pop %v3530
    %v3532 = vmul.f32 %v3291, 1.442695
    %v3533 = vpow.pop %v3532
    %v3534 = vmul.f32 %v3292, 1.442695
    %v3535 = vpow.pop %v3534
    %v3536 = vmul.f32 %v3293, 1.442695
    %v3537 = vpow.pop %v3536
    %v3538 = vmul.f32 %v3294, 1.442695
    %v3539 = vpow.pop %v3538
    %v3540 = vmul.f32 %v3295, 1.442695
    %v3541 = vpow.pop %v3540
    %v3542 = vmul.f32 %v3296, 1.442695
    %v3543 = vpow.pop %v3542
    %v3544 = vmul.f32 %v3297, 1.442695
    %v3545 = vpow.pop %v3544
    %v3546 = vmul.f32 %v3298, 1.442695
    %v3547 = vpow.pop %v3546
    %v3548 = vmul.f32 %v3299, 1.442695
    %v3549 = vpow.pop %v3548
    %v3550 = vmul.f32 %v3300, 1.442695
    %v3551 = vpow.pop %v3550
    %v3552 = vmul.f32 %v3301, 1.442695
    %v3553 = vpow.pop %v3552
    %v3554 = vmul.f32 %v3302, 1.442695
    %v3555 = vpow.pop %v3554
    %v3556 = vmul.f32 %v3303, 1.442695
    %v3557 = vpow.pop %v3556
    %v3558 = vmul.f32 %v3304, 1.442695
    %v3559 = vpow.pop %v3558
    %v3560 = vmul.f32 %v3305, 1.442695
    %v3561 = vpow.pop %v3560
    %v3562 = vmul.f32 %v3306, 1.442695
    %v3563 = vpow.pop %v3562
    %v3564 = vmul.f32 %v3307, 1.442695
    %v3565 = vpow.pop %v3564
    %v3566 = vmul.f32 %v3308, 1.442695
    %v3567 = vpow.pop %v3566
    %v3568 = vmul.f32 %v3309, 1.442695
    %v3569 = vpow.pop %v3568
    %v3570 = vmul.f32 %v3310, 1.442695
    %v3571 = vpow.pop %v3570
    %v3572 = vmul.f32 %v3311, 1.442695
    %v3573 = vpow.pop %v3572
    %v3574 = vmul.f32 %v3312, 1.442695
    %v3575 = vpow.pop %v3574
    %v3576 = vmul.f32 %v3313, 1.442695
    %v3577 = vpow.pop %v3576
    %v3578 = vmul.f32 %v3314, 1.442695
    %v3579 = vpow.pop %v3578
    %v3580 = vmul.f32 %v3315, 1.442695
    %v3581 = vpow.pop %v3580
    %v3582 = vmul.f32 %v3316, 1.442695
    %v3583 = vpow.pop %v3582
    %v3584 = vmul.f32 %v3317, 1.442695
    %v3585 = vpow.pop %v3584
    %v3586 = vmul.f32 %v3318, 1.442695
    %v3587 = vpow.pop %v3586
    %v3588 = vmul.f32 %v3319, 1.442695
    %v3589 = vpow.pop %v3588
    %v3590 = vmul.f32 %v3320, 1.442695
    %v3591 = vpow.pop %v3590
    %v3592 = vmul.f32 %v3321, 1.442695
    %v3593 = vpow.pop %v3592
    %v3594 = vmul.f32 %v3322, 1.442695
    %v3595 = vpow.pop %v3594
    %v3596 = vmul.f32 %v3323, 1.442695
    %v3597 = vpow.pop %v3596
    %v3598 = vmul.f32 %v3324, 1.442695
    %v3599 = vpow.pop %v3598
    %v3600 = vmul.f32 %v3325, 1.442695
    %v3601 = vpow.pop %v3600
    %v3602 = vmul.f32 %v3326, 1.442695
    %v3603 = vpow.pop %v3602
    %v3604 = vmul.f32 %v3327, 1.442695
    %v3605 = vpow.pop %v3604
    %v3606 = vmul.f32 %v3328, 1.442695
    %v3607 = vpow.pop %v3606
    %v3608 = vmul.f32 %v3329, 1.442695
    %v3609 = vpow.pop %v3608
    %v3610 = vmul.f32 %v3330, 1.442695
    %v3611 = vpow.pop %v3610
    %v3612 = vmul.f32 %v3331, 1.442695
    %v3613 = vpow.pop %v3612
    %v3614 = vmul.f32 %v3332, 1.442695
    %v3615 = vpow.pop %v3614
    %v3616 = vmul.f32 %v3333, 1.442695
    %v3617 = vpow.pop %v3616
    %v3618 = vmul.f32 %v3334, 1.442695
    %v3619 = vpow.pop %v3618
    %v3620 = vmul.f32 %v3335, 1.442695
    %v3621 = vpow.pop %v3620
    %v3622 = vmul.f32 %v3336, 1.442695
    %v3623 = vpow.pop %v3622
    %v3624 = vmul.f32 %v3337, 1.442695
    %v3625 = vpow.pop %v3624
    %v3626 = vmul.f32 %v3338, 1.442695
    %v3627 = vpow.pop %v3626
    %v3628 = vmul.f32 %v3339, 1.442695
    %v3629 = vpow.pop %v3628
    %v3630 = vmul.f32 %v3340, 1.442695
    %v3631 = vpow.pop %v3630
    %v3632 = vmul.f32 %v3341, 1.442695
    %v3633 = vpow.pop %v3632
    %v3634 = vmul.f32 %v3342, 1.442695
    %v3635 = vpow.pop %v3634
    %v3636 = vmul.f32 %v3343, 1.442695
    %v3637 = vpow.pop %v3636
    %v3638 = vmul.f32 %v3344, 1.442695
    %v3639 = vpow.pop %v3638
    %v3640 = vmul.f32 %v3345, 1.442695
    %v3641 = vpow.pop %v3640
    %v3642 = vmul.f32 %v3346, 1.442695
    %v3643 = vpow.pop %v3642
    %v3644 = vmul.f32 %v3347, 1.442695
    %v3645 = vpow.pop %v3644
    %v3646 = vmul.f32 %v3348, 1.442695
    %v3647 = vpow.pop %v3646
    %v3648 = vmul.f32 %v3349, 1.442695
    %v3649 = vpow.pop %v3648
    %v3650 = vmul.f32 %v3350, 1.442695
    %v3651 = vpow.pop %v3650
    %v3652 = vmul.f32 %v3351, 1.442695
    %v3653 = vpow.pop %v3652
    %v3654 = vmul.f32 %v3352, 1.442695
    %v3655 = vpow.pop %v3654
    %v3656 = vmul.f32 %v3353, 1.442695
    %v3657 = vpow.pop %v3656
    %v3658 = vmul.f32 %v3354, 1.442695
    %v3659 = vpow.pop %v3658
    %v3660 = vmul.f32 %v3355, 1.442695
    %v3661 = vpow.pop %v3660
    %v3662 = vmul.f32 %v3356, 1.442695
    %v3663 = vpow.pop %v3662
    %v3664 = vmul.f32 %v3357, 1.442695
    %v3665 = vpow.pop %v3664
    %v3666 = vmul.f32 %v3358, 1.442695
    %v3667 = vpow.pop %v3666
    %v3668 = vmul.f32 %v3359, 1.442695
    %v3669 = vpow.pop %v3668
    %v3670 = vmul.f32 %v3360, 1.442695
    %v3671 = vpow.pop %v3670
    %v3672 = vmul.f32 %v3361, 1.442695
    %v3673 = vpow.pop %v3672
    %v3674 = vmul.f32 %v3362, 1.442695
    %v3675 = vpow.pop %v3674
    %v3676 = vmul.f32 %v3363, 1.442695
    %v3677 = vpow.pop %v3676
    %v3678 = vmul.f32 %v3364, 1.442695
    %v3679 = vpow.pop %v3678
    %v3680 = vmul.f32 %v3365, 1.442695
    %v3681 = vpow.pop %v3680
    %v3682 = vmul.f32 %v3366, 1.442695
    %v3683 = vpow.pop %v3682
    %v3684 = vmul.f32 %v3367, 1.442695
    %v3685 = vpow.pop %v3684
    %v3686 = vmul.f32 %v3368, 1.442695
    %v3687 = vpow.pop %v3686
    %v3688 = vmul.f32 %v3369, 1.442695
    %v3689 = vpow.pop %v3688
    %v3690 = vmul.f32 %v3370, 1.442695
    %v3691 = vpow.pop %v3690
    %v3692 = vmul.f32 %v3371, 1.442695
    %v3693 = vpow.pop %v3692
    %v3694 = vmul.f32 %v3372, 1.442695
    %v3695 = vpow.pop %v3694
    %v3696 = vmul.f32 %v3373, 1.442695
    %v3697 = vpow.pop %v3696
    %v3698 = vmul.f32 %v3374, 1.442695
    %v3699 = vpow.pop %v3698
    %v3700 = vmul.f32 %v3375, 1.442695
    %v3701 = vpow.pop %v3700
    %v3702 = vmul.f32 %v3376, 1.442695
    %v3703 = vpow.pop %v3702
    %v3704 = vmul.f32 %v3377, 1.442695
    %v3705 = vpow.pop %v3704
    %v3706 = vmul.f32 %v3378, 1.442695
    %v3707 = vpow.pop %v3706
    %v3708 = vmul.f32 %v3379, 1.442695
    %v3709 = vpow.pop %v3708
    %v3710 = vmul.f32 %v3380, 1.442695
    %v3711 = vpow.pop %v3710
    %v3712 = vmul.f32 %v3381, 1.442695
    %v3713 = vpow.pop %v3712
    %v3714 = vmul.f32 %v3382, 1.442695
    %v3715 = vpow.pop %v3714
    %v3716 = vmul.f32 %v3383, 1.442695
    %v3717 = vpow.pop %v3716
    %v3718 = vmul.f32 %v3384, 1.442695
    %v3719 = vpow.pop %v3718
    %v3720 = vmul.f32 %v3385, 1.442695
    %v3721 = vpow.pop %v3720
    %v3722 = vmul.f32 %v3386, 1.442695
    %v3723 = vpow.pop %v3722
    %v3724 = vmul.f32 %v3387, 1.442695
    %v3725 = vpow.pop %v3724
    %v3726 = vmul.f32 %v3388, 1.442695
    %v3727 = vpow.pop %v3726
    %v3728 = vmul.f32 %v3389, 1.442695
    %v3729 = vpow.pop %v3728
    %v3730 = vmul.f32 %v3390, 1.442695
    %v3731 = vpow.pop %v3730
    %v3732 = vmul.f32 %v3391, 1.442695
    %v3733 = vpow.pop %v3732
    %v3734 = vmul.f32 %v3392, 1.442695
    %v3735 = vpow.pop %v3734
    %v3736 = vmul.f32 %v3393, 1.442695
    %v3737 = vpow.pop %v3736
    %v3738 = vmul.f32 %v3394, 1.442695
    %v3739 = vpow.pop %v3738
    %v3740 = vmul.f32 %v3395, 1.442695
    %v3741 = vpow.pop %v3740
    %v3742 = vmul.f32 %v3396, 1.442695
    %v3743 = vpow.pop %v3742
    %v3744 = vmul.f32 %v3397, 1.442695
    %v3745 = vpow.pop %v3744
    %v3746 = vmul.f32 %v3398, 1.442695
    %v3747 = vpow.pop %v3746
    %v3748 = vmul.f32 %v3399, 1.442695
    %v3749 = vpow.pop %v3748
    %v3750 = vmul.f32 %v3400, 1.442695
    %v3751 = vpow.pop %v3750
    %v3752 = vmul.f32 %v3401, 1.442695
    %v3753 = vpow.pop %v3752
    %v3754 = vmul.f32 %v3402, 1.442695
    %v3755 = vpow.pop %v3754
    %v3756 = vmul.f32 %v3403, 1.442695
    %v3757 = vpow.pop %v3756
    %v3758 = vmul.f32 %v3404, 1.442695
    %v3759 = vpow.pop %v3758
    %v3760 = vmul.f32 %v3405, 1.442695
    %v3761 = vpow.pop %v3760
    %v3762 = vmul.f32 %v3406, 1.442695
    %v3763 = vpow.pop %v3762
    %v3764 = vmul.f32 %v3407, 1.442695
    %v3765 = vpow.pop %v3764
    %v3766 = vmul.f32 %v3408, 1.442695
    %v3767 = vpow.pop %v3766
    %v3768 = vmul.f32 %v3409, 1.442695
    %v3769 = vpow.pop %v3768
    %v3770 = vmul.f32 %v3410, 1.442695
    %v3771 = vpow.pop %v3770
    %v3772 = vmul.f32 %v3411, 1.442695
    %v3773 = vpow.pop %v3772
    %v3774 = vmul.f32 %v3412, 1.442695
    %v3775 = vpow.pop %v3774
    %v3776 = vmul.f32 %v3413, 1.442695
    %v3777 = vpow.pop %v3776
    %v3778 = vmul.f32 %v3414, 1.442695
    %v3779 = vpow.pop %v3778
    %v3780 = vmul.f32 %v3415, 1.442695
    %v3781 = vpow.pop %v3780
    %v3782 = vmul.f32 %v3416, 1.442695
    %v3783 = vpow.pop %v3782
    %v3784 = vmul.f32 %v3417, 1.442695
    %v3785 = vpow.pop %v3784
    %v3786 = vmul.f32 %v3418, 1.442695
    %v3787 = vpow.pop %v3786
    %v3788 = vmul.f32 %v3419, 1.442695
    %v3789 = vpow.pop %v3788
    %v3790 = vmul.f32 %v3420, 1.442695
    %v3791 = vpow.pop %v3790
    %v3792 = vmul.f32 %v3421, 1.442695
    %v3793 = vpow.pop %v3792
    %v3794 = vmul.f32 %v3422, 1.442695
    %v3795 = vpow.pop %v3794
    %v3796 = vmul.f32 %v3423, 1.442695
    %v3797 = vpow.pop %v3796
    %v3798 = vmul.f32 %v3424, 1.442695
    %v3799 = vpow.pop %v3798
    %v3800 = vmul.f32 %v3425, 1.442695
    %v3801 = vpow.pop %v3800
    %v3802 = vmul.f32 %v3426, 1.442695
    %v3803 = vpow.pop %v3802
    %v3804 = vmul.f32 %v3427, 1.442695
    %v3805 = vpow.pop %v3804
    %v3806 = vmul.f32 %v3428, 1.442695
    %v3807 = vpow.pop %v3806
    %v3808 = vmul.f32 %v3429, 1.442695
    %v3809 = vpow.pop %v3808
    %v3810 = vmul.f32 %v3430, 1.442695
    %v3811 = vpow.pop %v3810
    %v3812 = vmul.f32 %v3431, 1.442695
    %v3813 = vpow.pop %v3812
    %v3814 = vmul.f32 %v3432, 1.442695
    %v3815 = vpow.pop %v3814
    %v3816 = vmul.f32 %v3433, 1.442695
    %v3817 = vpow.pop %v3816
    %v3818 = vmul.f32 %v3434, 1.442695
    %v3819 = vpow.pop %v3818
    %v3820 = vmul.f32 %v3435, 1.442695
    %v3821 = vpow.pop %v3820
    %v3822 = vmul.f32 %v3436, 1.442695
    %v3823 = vpow.pop %v3822
    %v3824 = vmul.f32 %v3437, 1.442695
    %v3825 = vpow.pop %v3824
    %v3826 = vmul.f32 %v3438, 1.442695
    %v3827 = vpow.pop %v3826
    %v3828 = vmul.f32 %v3439, 1.442695
    %v3829 = vpow.pop %v3828
    %v3830 = vmul.f32 %v3440, 1.442695
    %v3831 = vpow.pop %v3830
    %v3832 = vmul.f32 %v3441, 1.442695
    %v3833 = vpow.pop %v3832
    %v3834 = vmul.f32 %v3442, 1.442695
    %v3835 = vpow.pop %v3834
    %v3836 = vmul.f32 %v3443, 1.442695
    %v3837 = vpow.pop %v3836
    %v3838 = vmul.f32 %v3444, 1.442695
    %v3839 = vpow.pop %v3838
    %v3840 = vmul.f32 %v3445, 1.442695
    %v3841 = vpow.pop %v3840
    %v3842 = vmul.f32 %v3446, 1.442695
    %v3843 = vpow.pop %v3842
    %v3844 = vmul.f32 %v3447, 1.442695
    %v3845 = vpow.pop %v3844
    %v3846 = vmul.f32 %v3448, 1.442695
    %v3847 = vpow.pop %v3846
    %v3848 = vmul.f32 %v3449, 1.442695
    %v3849 = vpow.pop %v3848
    %v3850 = vmul.f32 %v3450, 1.442695
    %v3851 = vpow.pop %v3850
    %v3852 = vmul.f32 %v3451, 1.442695
    %v3853 = vpow.pop %v3852
    %v3854 = vmul.f32 %v3452, 1.442695
    %v3855 = vpow.pop %v3854
    %v3856 = vmul.f32 %v3453, 1.442695
    %v3857 = vpow.pop %v3856
    %v3858 = vmul.f32 %v3454, 1.442695
    %v3859 = vpow.pop %v3858
    %v3860 = vmul.f32 %v3455, 1.442695
    %v3861 = vpow.pop %v3860
    %v3862 = vmul.f32 %v3456, 1.442695
    %v3863 = vpow.pop %v3862
    %v3864 = vmul.f32 %v3457, 1.442695
    %v3865 = vpow.pop %v3864
    %v3866 = vmul.f32 %v3458, 1.442695
    %v3867 = vpow.pop %v3866
    %v3868 = vmul.f32 %v3459, 1.442695
    %v3869 = vpow.pop %v3868
    %v3870 = vmul.f32 %v3460, 1.442695
    %v3871 = vpow.pop %v3870
    %v3872 = vmul.f32 %v3461, 1.442695
    %v3873 = vpow.pop %v3872
    %v3874 = vmul.f32 %v3462, 1.442695
    %v3875 = vpow.pop %v3874
    %v3876 = vmul.f32 %v3463, 1.442695
    %v3877 = vpow.pop %v3876
    %v3878 = vmul.f32 %v3464, 1.442695
    %v3879 = vpow.pop %v3878
    %v3880 = vmul.f32 %v3465, 1.442695
    %v3881 = vpow.pop %v3880
    %v3882 = vmul.f32 %v3466, 1.442695
    %v3883 = vpow.pop %v3882
    %v3884 = vmul.f32 %v3467, 1.442695
    %v3885 = vpow.pop %v3884
    %v3886 = vmul.f32 %v3468, 1.442695
    %v3887 = vpow.pop %v3886
    %v3888 = vmul.f32 %v3469, 1.442695
    %v3889 = vpow.pop %v3888
    %v3890 = vmul.f32 %v3470, 1.442695
    %v3891 = vpow.pop %v3890
    %v3892 = vmul.f32 %v3471, 1.442695
    %v3893 = vpow.pop %v3892
    %v3894 = vmul.f32 %v3472, 1.442695
    %v3895 = vpow.pop %v3894
    %v3896 = vmul.f32 %v3473, 1.442695
    %v3897 = vpow.pop %v3896
    %v3898 = vmul.f32 %v3474, 1.442695
    %v3899 = vpow.pop %v3898
    %v3900 = vmul.f32 %v3475, 1.442695
    %v3901 = vpow.pop %v3900
    %v3902 = vmul.f32 %v3476, 1.442695
    %v3903 = vpow.pop %v3902
    %v3904 = vmul.f32 %v3477, 1.442695
    %v3905 = vpow.pop %v3904
    %v3906 = vmul.f32 %v3478, 1.442695
    %v3907 = vpow.pop %v3906
    %v3908 = vmul.f32 %v3479, 1.442695
    %v3909 = vpow.pop %v3908
    %v3910 = vmul.f32 %v3480, 1.442695
    %v3911 = vpow.pop %v3910
    %v3912 = vmul.f32 %v3481, 1.442695
    %v3913 = vpow.pop %v3912
    %v3914 = vmul.f32 %v3482, 1.442695
    %v3915 = vpow.pop %v3914
    %v3916 = vmul.f32 %v3483, 1.442695
    %v3917 = vpow.pop %v3916
    %v3918 = vmul.f32 %v3484, 1.442695
    %v3919 = vpow.pop %v3918
    %v3920 = vmul.f32 %v3485, 1.442695
    %v3921 = vpow.pop %v3920
    %v3922 = vmul.f32 %v3486, 1.442695
    %v3923 = vpow.pop %v3922
    %v3924 = vmul.f32 %v3487, 1.442695
    %v3925 = vpow.pop %v3924
    %v3926 = vmul.f32 %v3488, 1.442695
    %v3927 = vpow.pop %v3926
    %v3928 = vmul.f32 %v3489, 1.442695
    %v3929 = vpow.pop %v3928
    %v3930 = vmul.f32 %v3490, 1.442695
    %v3931 = vpow.pop %v3930
    %v3932 = vmul.f32 %v3491, 1.442695
    %v3933 = vpow.pop %v3932
    %v3934 = vmul.f32 %v3492, 1.442695
    %v3935 = vpow.pop %v3934
    %v3936 = vmul.f32 %v3493, 1.442695
    %v3937 = vpow.pop %v3936
    %v3938 = vmul.f32 %v3494, 1.442695
    %v3939 = vpow.pop %v3938
    %v3940 = vmul.f32 %v3495, 1.442695
    %v3941 = vpow.pop %v3940
    %v3942 = vmul.f32 %v3496, 1.442695
    %v3943 = vpow.pop %v3942
    %v3944 = vmul.f32 %v3497, 1.442695
    %v3945 = vpow.pop %v3944
    %v3946 = vadd.f32 %v3499, 1.0
    %v3947 = vadd.f32 %v3501, 1.0
    %v3948 = vadd.f32 %v3503, 1.0
    %v3949 = vadd.f32 %v3505, 1.0
    %v3950 = vadd.f32 %v3507, 1.0
    %v3951 = vadd.f32 %v3509, 1.0
    %v3952 = vadd.f32 %v3511, 1.0
    %v3953 = vadd.f32 %v3513, 1.0
    %v3954 = vadd.f32 %v3515, 1.0
    %v3955 = vadd.f32 %v3517, 1.0
    %v3956 = vadd.f32 %v3519, 1.0
    %v3957 = vadd.f32 %v3521, 1.0
    %v3958 = vadd.f32 %v3523, 1.0
    %v3959 = vadd.f32 %v3525, 1.0
    %v3960 = vadd.f32 %v3527, 1.0
    %v3961 = vadd.f32 %v3529, 1.0
    %v3962 = vadd.f32 %v3531, 1.0
    %v3963 = vadd.f32 %v3533, 1.0
    %v3964 = vadd.f32 %v3535, 1.0
    %v3965 = vadd.f32 %v3537, 1.0
    %v3966 = vadd.f32 %v3539, 1.0
    %v3967 = vadd.f32 %v3541, 1.0
    %v3968 = vadd.f32 %v3543, 1.0
    %v3969 = vadd.f32 %v3545, 1.0
    %v3970 = vadd.f32 %v3547, 1.0
    %v3971 = vadd.f32 %v3549, 1.0
    %v3972 = vadd.f32 %v3551, 1.0
    %v3973 = vadd.f32 %v3553, 1.0
    %v3974 = vadd.f32 %v3555, 1.0
    %v3975 = vadd.f32 %v3557, 1.0
    %v3976 = vadd.f32 %v3559, 1.0
    %v3977 = vadd.f32 %v3561, 1.0
    %v3978 = vadd.f32 %v3563, 1.0
    %v3979 = vadd.f32 %v3565, 1.0
    %v3980 = vadd.f32 %v3567, 1.0
    %v3981 = vadd.f32 %v3569, 1.0
    %v3982 = vadd.f32 %v3571, 1.0
    %v3983 = vadd.f32 %v3573, 1.0
    %v3984 = vadd.f32 %v3575, 1.0
    %v3985 = vadd.f32 %v3577, 1.0
    %v3986 = vadd.f32 %v3579, 1.0
    %v3987 = vadd.f32 %v3581, 1.0
    %v3988 = vadd.f32 %v3583, 1.0
    %v3989 = vadd.f32 %v3585, 1.0
    %v3990 = vadd.f32 %v3587, 1.0
    %v3991 = vadd.f32 %v3589, 1.0
    %v3992 = vadd.f32 %v3591, 1.0
    %v3993 = vadd.f32 %v3593, 1.0
    %v3994 = vadd.f32 %v3595, 1.0
    %v3995 = vadd.f32 %v3597, 1.0
    %v3996 = vadd.f32 %v3599, 1.0
    %v3997 = vadd.f32 %v3601, 1.0
    %v3998 = vadd.f32 %v3603, 1.0
    %v3999 = vadd.f32 %v3605, 1.0
    %v4000 = vadd.f32 %v3607, 1.0
    %v4001 = vadd.f32 %v3609, 1.0
    %v4002 = vadd.f32 %v3611, 1.0
    %v4003 = vadd.f32 %v3613, 1.0
    %v4004 = vadd.f32 %v3615, 1.0
    %v4005 = vadd.f32 %v3617, 1.0
    %v4006 = vadd.f32 %v3619, 1.0
    %v4007 = vadd.f32 %v3621, 1.0
    %v4008 = vadd.f32 %v3623, 1.0
    %v4009 = vadd.f32 %v3625, 1.0
    %v4010 = vadd.f32 %v3627, 1.0
    %v4011 = vadd.f32 %v3629, 1.0
    %v4012 = vadd.f32 %v3631, 1.0
    %v4013 = vadd.f32 %v3633, 1.0
    %v4014 = vadd.f32 %v3635, 1.0
    %v4015 = vadd.f32 %v3637, 1.0
    %v4016 = vadd.f32 %v3639, 1.0
    %v4017 = vadd.f32 %v3641, 1.0
    %v4018 = vadd.f32 %v3643, 1.0
    %v4019 = vadd.f32 %v3645, 1.0
    %v4020 = vadd.f32 %v3647, 1.0
    %v4021 = vadd.f32 %v3649, 1.0
    %v4022 = vadd.f32 %v3651, 1.0
    %v4023 = vadd.f32 %v3653, 1.0
    %v4024 = vadd.f32 %v3655, 1.0
    %v4025 = vadd.f32 %v3657, 1.0
    %v4026 = vadd.f32 %v3659, 1.0
    %v4027 = vadd.f32 %v3661, 1.0
    %v4028 = vadd.f32 %v3663, 1.0
    %v4029 = vadd.f32 %v3665, 1.0
    %v4030 = vadd.f32 %v3667, 1.0
    %v4031 = vadd.f32 %v3669, 1.0
    %v4032 = vadd.f32 %v3671, 1.0
    %v4033 = vadd.f32 %v3673, 1.0
    %v4034 = vadd.f32 %v3675, 1.0
    %v4035 = vadd.f32 %v3677, 1.0
    %v4036 = vadd.f32 %v3679, 1.0
    %v4037 = vadd.f32 %v3681, 1.0
    %v4038 = vadd.f32 %v3683, 1.0
    %v4039 = vadd.f32 %v3685, 1.0
    %v4040 = vadd.f32 %v3687, 1.0
    %v4041 = vadd.f32 %v3689, 1.0
    %v4042 = vadd.f32 %v3691, 1.0
    %v4043 = vadd.f32 %v3693, 1.0
    %v4044 = vadd.f32 %v3695, 1.0
    %v4045 = vadd.f32 %v3697, 1.0
    %v4046 = vadd.f32 %v3699, 1.0
    %v4047 = vadd.f32 %v3701, 1.0
    %v4048 = vadd.f32 %v3703, 1.0
    %v4049 = vadd.f32 %v3705, 1.0
    %v4050 = vadd.f32 %v3707, 1.0
    %v4051 = vadd.f32 %v3709, 1.0
    %v4052 = vadd.f32 %v3711, 1.0
    %v4053 = vadd.f32 %v3713, 1.0
    %v4054 = vadd.f32 %v3715, 1.0
    %v4055 = vadd.f32 %v3717, 1.0
    %v4056 = vadd.f32 %v3719, 1.0
    %v4057 = vadd.f32 %v3721, 1.0
    %v4058 = vadd.f32 %v3723, 1.0
    %v4059 = vadd.f32 %v3725, 1.0
    %v4060 = vadd.f32 %v3727, 1.0
    %v4061 = vadd.f32 %v3729, 1.0
    %v4062 = vadd.f32 %v3731, 1.0
    %v4063 = vadd.f32 %v3733, 1.0
    %v4064 = vadd.f32 %v3735, 1.0
    %v4065 = vadd.f32 %v3737, 1.0
    %v4066 = vadd.f32 %v3739, 1.0
    %v4067 = vadd.f32 %v3741, 1.0
    %v4068 = vadd.f32 %v3743, 1.0
    %v4069 = vadd.f32 %v3745, 1.0
    %v4070 = vadd.f32 %v3747, 1.0
    %v4071 = vadd.f32 %v3749, 1.0
    %v4072 = vadd.f32 %v3751, 1.0
    %v4073 = vadd.f32 %v3753, 1.0
    %v4074 = vadd.f32 %v3755, 1.0
    %v4075 = vadd.f32 %v3757, 1.0
    %v4076 = vadd.f32 %v3759, 1.0
    %v4077 = vadd.f32 %v3761, 1.0
    %v4078 = vadd.f32 %v3763, 1.0
    %v4079 = vadd.f32 %v3765, 1.0
    %v4080 = vadd.f32 %v3767, 1.0
    %v4081 = vadd.f32 %v3769, 1.0
    %v4082 = vadd.f32 %v3771, 1.0
    %v4083 = vadd.f32 %v3773, 1.0
    %v4084 = vadd.f32 %v3775, 1.0
    %v4085 = vadd.f32 %v3777, 1.0
    %v4086 = vadd.f32 %v3779, 1.0
    %v4087 = vadd.f32 %v3781, 1.0
    %v4088 = vadd.f32 %v3783, 1.0
    %v4089 = vadd.f32 %v3785, 1.0
    %v4090 = vadd.f32 %v3787, 1.0
    %v4091 = vadd.f32 %v3789, 1.0
    %v4092 = vadd.f32 %v3791, 1.0
    %v4093 = vadd.f32 %v3793, 1.0
    %v4094 = vadd.f32 %v3795, 1.0
    %v4095 = vadd.f32 %v3797, 1.0
    %v4096 = vadd.f32 %v3799, 1.0
    %v4097 = vadd.f32 %v3801, 1.0
    %v4098 = vadd.f32 %v3803, 1.0
    %v4099 = vadd.f32 %v3805, 1.0
    %v4100 = vadd.f32 %v3807, 1.0
    %v4101 = vadd.f32 %v3809, 1.0
    %v4102 = vadd.f32 %v3811, 1.0
    %v4103 = vadd.f32 %v3813, 1.0
    %v4104 = vadd.f32 %v3815, 1.0
    %v4105 = vadd.f32 %v3817, 1.0
    %v4106 = vadd.f32 %v3819, 1.0
    %v4107 = vadd.f32 %v3821, 1.0
    %v4108 = vadd.f32 %v3823, 1.0
    %v4109 = vadd.f32 %v3825, 1.0
    %v4110 = vadd.f32 %v3827, 1.0
    %v4111 = vadd.f32 %v3829, 1.0
    %v4112 = vadd.f32 %v3831, 1.0
    %v4113 = vadd.f32 %v3833, 1.0
    %v4114 = vadd.f32 %v3835, 1.0
    %v4115 = vadd.f32 %v3837, 1.0
    %v4116 = vadd.f32 %v3839, 1.0
    %v4117 = vadd.f32 %v3841, 1.0
    %v4118 = vadd.f32 %v3843, 1.0
    %v4119 = vadd.f32 %v3845, 1.0
    %v4120 = vadd.f32 %v3847, 1.0
    %v4121 = vadd.f32 %v3849, 1.0
    %v4122 = vadd.f32 %v3851, 1.0
    %v4123 = vadd.f32 %v3853, 1.0
    %v4124 = vadd.f32 %v3855, 1.0
    %v4125 = vadd.f32 %v3857, 1.0
    %v4126 = vadd.f32 %v3859, 1.0
    %v4127 = vadd.f32 %v3861, 1.0
    %v4128 = vadd.f32 %v3863, 1.0
    %v4129 = vadd.f32 %v3865, 1.0
    %v4130 = vadd.f32 %v3867, 1.0
    %v4131 = vadd.f32 %v3869, 1.0
    %v4132 = vadd.f32 %v3871, 1.0
    %v4133 = vadd.f32 %v3873, 1.0
    %v4134 = vadd.f32 %v3875, 1.0
    %v4135 = vadd.f32 %v3877, 1.0
    %v4136 = vadd.f32 %v3879, 1.0
    %v4137 = vadd.f32 %v3881, 1.0
    %v4138 = vadd.f32 %v3883, 1.0
    %v4139 = vadd.f32 %v3885, 1.0
    %v4140 = vadd.f32 %v3887, 1.0
    %v4141 = vadd.f32 %v3889, 1.0
    %v4142 = vadd.f32 %v3891, 1.0
    %v4143 = vadd.f32 %v3893, 1.0
    %v4144 = vadd.f32 %v3895, 1.0
    %v4145 = vadd.f32 %v3897, 1.0
    %v4146 = vadd.f32 %v3899, 1.0
    %v4147 = vadd.f32 %v3901, 1.0
    %v4148 = vadd.f32 %v3903, 1.0
    %v4149 = vadd.f32 %v3905, 1.0
    %v4150 = vadd.f32 %v3907, 1.0
    %v4151 = vadd.f32 %v3909, 1.0
    %v4152 = vadd.f32 %v3911, 1.0
    %v4153 = vadd.f32 %v3913, 1.0
    %v4154 = vadd.f32 %v3915, 1.0
    %v4155 = vadd.f32 %v3917, 1.0
    %v4156 = vadd.f32 %v3919, 1.0
    %v4157 = vadd.f32 %v3921, 1.0
    %v4158 = vadd.f32 %v3923, 1.0
    %v4159 = vadd.f32 %v3925, 1.0
    %v4160 = vadd.f32 %v3927, 1.0
    %v4161 = vadd.f32 %v3929, 1.0
    %v4162 = vadd.f32 %v3931, 1.0
    %v4163 = vadd.f32 %v3933, 1.0
    %v4164 = vadd.f32 %v3935, 1.0
    %v4165 = vadd.f32 %v3937, 1.0
    %v4166 = vadd.f32 %v3939, 1.0
    %v4167 = vadd.f32 %v3941, 1.0
    %v4168 = vadd.f32 %v3943, 1.0
    %v4169 = vadd.f32 %v3945, 1.0
    %v4170 = vrcp.pop %v3946
    %v4171 = vmul.f32 1.0, %v4170
    %v4172 = vrcp.pop %v3947
    %v4173 = vmul.f32 1.0, %v4172
    %v4174 = vrcp.pop %v3948
    %v4175 = vmul.f32 1.0, %v4174
    %v4176 = vrcp.pop %v3949
    %v4177 = vmul.f32 1.0, %v4176
    %v4178 = vrcp.pop %v3950
    %v4179 = vmul.f32 1.0, %v4178
    %v4180 = vrcp.pop %v3951
    %v4181 = vmul.f32 1.0, %v4180
    %v4182 = vrcp.pop %v3952
    %v4183 = vmul.f32 1.0, %v4182
    %v4184 = vrcp.pop %v3953
    %v4185 = vmul.f32 1.0, %v4184
    %v4186 = vrcp.pop %v3954
    %v4187 = vmul.f32 1.0, %v4186
    %v4188 = vrcp.pop %v3955
    %v4189 = vmul.f32 1.0, %v4188
    %v4190 = vrcp.pop %v3956
    %v4191 = vmul.f32 1.0, %v4190
    %v4192 = vrcp.pop %v3957
    %v4193 = vmul.f32 1.0, %v4192
    %v4194 = vrcp.pop %v3958
    %v4195 = vmul.f32 1.0, %v4194
    %v4196 = vrcp.pop %v3959
    %v4197 = vmul.f32 1.0, %v4196
    %v4198 = vrcp.pop %v3960
    %v4199 = vmul.f32 1.0, %v4198
    %v4200 = vrcp.pop %v3961
    %v4201 = vmul.f32 1.0, %v4200
    %v4202 = vrcp.pop %v3962
    %v4203 = vmul.f32 1.0, %v4202
    %v4204 = vrcp.pop %v3963
    %v4205 = vmul.f32 1.0, %v4204
    %v4206 = vrcp.pop %v3964
    %v4207 = vmul.f32 1.0, %v4206
    %v4208 = vrcp.pop %v3965
    %v4209 = vmul.f32 1.0, %v4208
    %v4210 = vrcp.pop %v3966
    %v4211 = vmul.f32 1.0, %v4210
    %v4212 = vrcp.pop %v3967
    %v4213 = vmul.f32 1.0, %v4212
    %v4214 = vrcp.pop %v3968
    %v4215 = vmul.f32 1.0, %v4214
    %v4216 = vrcp.pop %v3969
    %v4217 = vmul.f32 1.0, %v4216
    %v4218 = vrcp.pop %v3970
    %v4219 = vmul.f32 1.0, %v4218
    %v4220 = vrcp.pop %v3971
    %v4221 = vmul.f32 1.0, %v4220
    %v4222 = vrcp.pop %v3972
    %v4223 = vmul.f32 1.0, %v4222
    %v4224 = vrcp.pop %v3973
    %v4225 = vmul.f32 1.0, %v4224
    %v4226 = vrcp.pop %v3974
    %v4227 = vmul.f32 1.0, %v4226
    %v4228 = vrcp.pop %v3975
    %v4229 = vmul.f32 1.0, %v4228
    %v4230 = vrcp.pop %v3976
    %v4231 = vmul.f32 1.0, %v4230
    %v4232 = vrcp.pop %v3977
    %v4233 = vmul.f32 1.0, %v4232
    %v4234 = vrcp.pop %v3978
    %v4235 = vmul.f32 1.0, %v4234
    %v4236 = vrcp.pop %v3979
    %v4237 = vmul.f32 1.0, %v4236
    %v4238 = vrcp.pop %v3980
    %v4239 = vmul.f32 1.0, %v4238
    %v4240 = vrcp.pop %v3981
    %v4241 = vmul.f32 1.0, %v4240
    %v4242 = vrcp.pop %v3982
    %v4243 = vmul.f32 1.0, %v4242
    %v4244 = vrcp.pop %v3983
    %v4245 = vmul.f32 1.0, %v4244
    %v4246 = vrcp.pop %v3984
    %v4247 = vmul.f32 1.0, %v4246
    %v4248 = vrcp.pop %v3985
    %v4249 = vmul.f32 1.0, %v4248
    %v4250 = vrcp.pop %v3986
    %v4251 = vmul.f32 1.0, %v4250
    %v4252 = vrcp.pop %v3987
    %v4253 = vmul.f32 1.0, %v4252
    %v4254 = vrcp.pop %v3988
    %v4255 = vmul.f32 1.0, %v4254
    %v4256 = vrcp.pop %v3989
    %v4257 = vmul.f32 1.0, %v4256
    %v4258 = vrcp.pop %v3990
    %v4259 = vmul.f32 1.0, %v4258
    %v4260 = vrcp.pop %v3991
    %v4261 = vmul.f32 1.0, %v4260
    %v4262 = vrcp.pop %v3992
    %v4263 = vmul.f32 1.0, %v4262
    %v4264 = vrcp.pop %v3993
    %v4265 = vmul.f32 1.0, %v4264
    %v4266 = vrcp.pop %v3994
    %v4267 = vmul.f32 1.0, %v4266
    %v4268 = vrcp.pop %v3995
    %v4269 = vmul.f32 1.0, %v4268
    %v4270 = vrcp.pop %v3996
    %v4271 = vmul.f32 1.0, %v4270
    %v4272 = vrcp.pop %v3997
    %v4273 = vmul.f32 1.0, %v4272
    %v4274 = vrcp.pop %v3998
    %v4275 = vmul.f32 1.0, %v4274
    %v4276 = vrcp.pop %v3999
    %v4277 = vmul.f32 1.0, %v4276
    %v4278 = vrcp.pop %v4000
    %v4279 = vmul.f32 1.0, %v4278
    %v4280 = vrcp.pop %v4001
    %v4281 = vmul.f32 1.0, %v4280
    %v4282 = vrcp.pop %v4002
    %v4283 = vmul.f32 1.0, %v4282
    %v4284 = vrcp.pop %v4003
    %v4285 = vmul.f32 1.0, %v4284
    %v4286 = vrcp.pop %v4004
    %v4287 = vmul.f32 1.0, %v4286
    %v4288 = vrcp.pop %v4005
    %v4289 = vmul.f32 1.0, %v4288
    %v4290 = vrcp.pop %v4006
    %v4291 = vmul.f32 1.0, %v4290
    %v4292 = vrcp.pop %v4007
    %v4293 = vmul.f32 1.0, %v4292
    %v4294 = vrcp.pop %v4008
    %v4295 = vmul.f32 1.0, %v4294
    %v4296 = vrcp.pop %v4009
    %v4297 = vmul.f32 1.0, %v4296
    %v4298 = vrcp.pop %v4010
    %v4299 = vmul.f32 1.0, %v4298
    %v4300 = vrcp.pop %v4011
    %v4301 = vmul.f32 1.0, %v4300
    %v4302 = vrcp.pop %v4012
    %v4303 = vmul.f32 1.0, %v4302
    %v4304 = vrcp.pop %v4013
    %v4305 = vmul.f32 1.0, %v4304
    %v4306 = vrcp.pop %v4014
    %v4307 = vmul.f32 1.0, %v4306
    %v4308 = vrcp.pop %v4015
    %v4309 = vmul.f32 1.0, %v4308
    %v4310 = vrcp.pop %v4016
    %v4311 = vmul.f32 1.0, %v4310
    %v4312 = vrcp.pop %v4017
    %v4313 = vmul.f32 1.0, %v4312
    %v4314 = vrcp.pop %v4018
    %v4315 = vmul.f32 1.0, %v4314
    %v4316 = vrcp.pop %v4019
    %v4317 = vmul.f32 1.0, %v4316
    %v4318 = vrcp.pop %v4020
    %v4319 = vmul.f32 1.0, %v4318
    %v4320 = vrcp.pop %v4021
    %v4321 = vmul.f32 1.0, %v4320
    %v4322 = vrcp.pop %v4022
    %v4323 = vmul.f32 1.0, %v4322
    %v4324 = vrcp.pop %v4023
    %v4325 = vmul.f32 1.0, %v4324
    %v4326 = vrcp.pop %v4024
    %v4327 = vmul.f32 1.0, %v4326
    %v4328 = vrcp.pop %v4025
    %v4329 = vmul.f32 1.0, %v4328
    %v4330 = vrcp.pop %v4026
    %v4331 = vmul.f32 1.0, %v4330
    %v4332 = vrcp.pop %v4027
    %v4333 = vmul.f32 1.0, %v4332
    %v4334 = vrcp.pop %v4028
    %v4335 = vmul.f32 1.0, %v4334
    %v4336 = vrcp.pop %v4029
    %v4337 = vmul.f32 1.0, %v4336
    %v4338 = vrcp.pop %v4030
    %v4339 = vmul.f32 1.0, %v4338
    %v4340 = vrcp.pop %v4031
    %v4341 = vmul.f32 1.0, %v4340
    %v4342 = vrcp.pop %v4032
    %v4343 = vmul.f32 1.0, %v4342
    %v4344 = vrcp.pop %v4033
    %v4345 = vmul.f32 1.0, %v4344
    %v4346 = vrcp.pop %v4034
    %v4347 = vmul.f32 1.0, %v4346
    %v4348 = vrcp.pop %v4035
    %v4349 = vmul.f32 1.0, %v4348
    %v4350 = vrcp.pop %v4036
    %v4351 = vmul.f32 1.0, %v4350
    %v4352 = vrcp.pop %v4037
    %v4353 = vmul.f32 1.0, %v4352
    %v4354 = vrcp.pop %v4038
    %v4355 = vmul.f32 1.0, %v4354
    %v4356 = vrcp.pop %v4039
    %v4357 = vmul.f32 1.0, %v4356
    %v4358 = vrcp.pop %v4040
    %v4359 = vmul.f32 1.0, %v4358
    %v4360 = vrcp.pop %v4041
    %v4361 = vmul.f32 1.0, %v4360
    %v4362 = vrcp.pop %v4042
    %v4363 = vmul.f32 1.0, %v4362
    %v4364 = vrcp.pop %v4043
    %v4365 = vmul.f32 1.0, %v4364
    %v4366 = vrcp.pop %v4044
    %v4367 = vmul.f32 1.0, %v4366
    %v4368 = vrcp.pop %v4045
    %v4369 = vmul.f32 1.0, %v4368
    %v4370 = vrcp.pop %v4046
    %v4371 = vmul.f32 1.0, %v4370
    %v4372 = vrcp.pop %v4047
    %v4373 = vmul.f32 1.0, %v4372
    %v4374 = vrcp.pop %v4048
    %v4375 = vmul.f32 1.0, %v4374
    %v4376 = vrcp.pop %v4049
    %v4377 = vmul.f32 1.0, %v4376
    %v4378 = vrcp.pop %v4050
    %v4379 = vmul.f32 1.0, %v4378
    %v4380 = vrcp.pop %v4051
    %v4381 = vmul.f32 1.0, %v4380
    %v4382 = vrcp.pop %v4052
    %v4383 = vmul.f32 1.0, %v4382
    %v4384 = vrcp.pop %v4053
    %v4385 = vmul.f32 1.0, %v4384
    %v4386 = vrcp.pop %v4054
    %v4387 = vmul.f32 1.0, %v4386
    %v4388 = vrcp.pop %v4055
    %v4389 = vmul.f32 1.0, %v4388
    %v4390 = vrcp.pop %v4056
    %v4391 = vmul.f32 1.0, %v4390
    %v4392 = vrcp.pop %v4057
    %v4393 = vmul.f32 1.0, %v4392
    %v4394 = vrcp.pop %v4058
    %v4395 = vmul.f32 1.0, %v4394
    %v4396 = vrcp.pop %v4059
    %v4397 = vmul.f32 1.0, %v4396
    %v4398 = vrcp.pop %v4060
    %v4399 = vmul.f32 1.0, %v4398
    %v4400 = vrcp.pop %v4061
    %v4401 = vmul.f32 1.0, %v4400
    %v4402 = vrcp.pop %v4062
    %v4403 = vmul.f32 1.0, %v4402
    %v4404 = vrcp.pop %v4063
    %v4405 = vmul.f32 1.0, %v4404
    %v4406 = vrcp.pop %v4064
    %v4407 = vmul.f32 1.0, %v4406
    %v4408 = vrcp.pop %v4065
    %v4409 = vmul.f32 1.0, %v4408
    %v4410 = vrcp.pop %v4066
    %v4411 = vmul.f32 1.0, %v4410
    %v4412 = vrcp.pop %v4067
    %v4413 = vmul.f32 1.0, %v4412
    %v4414 = vrcp.pop %v4068
    %v4415 = vmul.f32 1.0, %v4414
    %v4416 = vrcp.pop %v4069
    %v4417 = vmul.f32 1.0, %v4416
    %v4418 = vrcp.pop %v4070
    %v4419 = vmul.f32 1.0, %v4418
    %v4420 = vrcp.pop %v4071
    %v4421 = vmul.f32 1.0, %v4420
    %v4422 = vrcp.pop %v4072
    %v4423 = vmul.f32 1.0, %v4422
    %v4424 = vrcp.pop %v4073
    %v4425 = vmul.f32 1.0, %v4424
    %v4426 = vrcp.pop %v4074
    %v4427 = vmul.f32 1.0, %v4426
    %v4428 = vrcp.pop %v4075
    %v4429 = vmul.f32 1.0, %v4428
    %v4430 = vrcp.pop %v4076
    %v4431 = vmul.f32 1.0, %v4430
    %v4432 = vrcp.pop %v4077
    %v4433 = vmul.f32 1.0, %v4432
    %v4434 = vrcp.pop %v4078
    %v4435 = vmul.f32 1.0, %v4434
    %v4436 = vrcp.pop %v4079
    %v4437 = vmul.f32 1.0, %v4436
    %v4438 = vrcp.pop %v4080
    %v4439 = vmul.f32 1.0, %v4438
    %v4440 = vrcp.pop %v4081
    %v4441 = vmul.f32 1.0, %v4440
    %v4442 = vrcp.pop %v4082
    %v4443 = vmul.f32 1.0, %v4442
    %v4444 = vrcp.pop %v4083
    %v4445 = vmul.f32 1.0, %v4444
    %v4446 = vrcp.pop %v4084
    %v4447 = vmul.f32 1.0, %v4446
    %v4448 = vrcp.pop %v4085
    %v4449 = vmul.f32 1.0, %v4448
    %v4450 = vrcp.pop %v4086
    %v4451 = vmul.f32 1.0, %v4450
    %v4452 = vrcp.pop %v4087
    %v4453 = vmul.f32 1.0, %v4452
    %v4454 = vrcp.pop %v4088
    %v4455 = vmul.f32 1.0, %v4454
    %v4456 = vrcp.pop %v4089
    %v4457 = vmul.f32 1.0, %v4456
    %v4458 = vrcp.pop %v4090
    %v4459 = vmul.f32 1.0, %v4458
    %v4460 = vrcp.pop %v4091
    %v4461 = vmul.f32 1.0, %v4460
    %v4462 = vrcp.pop %v4092
    %v4463 = vmul.f32 1.0, %v4462
    %v4464 = vrcp.pop %v4093
    %v4465 = vmul.f32 1.0, %v4464
    %v4466 = vrcp.pop %v4094
    %v4467 = vmul.f32 1.0, %v4466
    %v4468 = vrcp.pop %v4095
    %v4469 = vmul.f32 1.0, %v4468
    %v4470 = vrcp.pop %v4096
    %v4471 = vmul.f32 1.0, %v4470
    %v4472 = vrcp.pop %v4097
    %v4473 = vmul.f32 1.0, %v4472
    %v4474 = vrcp.pop %v4098
    %v4475 = vmul.f32 1.0, %v4474
    %v4476 = vrcp.pop %v4099
    %v4477 = vmul.f32 1.0, %v4476
    %v4478 = vrcp.pop %v4100
    %v4479 = vmul.f32 1.0, %v4478
    %v4480 = vrcp.pop %v4101
    %v4481 = vmul.f32 1.0, %v4480
    %v4482 = vrcp.pop %v4102
    %v4483 = vmul.f32 1.0, %v4482
    %v4484 = vrcp.pop %v4103
    %v4485 = vmul.f32 1.0, %v4484
    %v4486 = vrcp.pop %v4104
    %v4487 = vmul.f32 1.0, %v4486
    %v4488 = vrcp.pop %v4105
    %v4489 = vmul.f32 1.0, %v4488
    %v4490 = vrcp.pop %v4106
    %v4491 = vmul.f32 1.0, %v4490
    %v4492 = vrcp.pop %v4107
    %v4493 = vmul.f32 1.0, %v4492
    %v4494 = vrcp.pop %v4108
    %v4495 = vmul.f32 1.0, %v4494
    %v4496 = vrcp.pop %v4109
    %v4497 = vmul.f32 1.0, %v4496
    %v4498 = vrcp.pop %v4110
    %v4499 = vmul.f32 1.0, %v4498
    %v4500 = vrcp.pop %v4111
    %v4501 = vmul.f32 1.0, %v4500
    %v4502 = vrcp.pop %v4112
    %v4503 = vmul.f32 1.0, %v4502
    %v4504 = vrcp.pop %v4113
    %v4505 = vmul.f32 1.0, %v4504
    %v4506 = vrcp.pop %v4114
    %v4507 = vmul.f32 1.0, %v4506
    %v4508 = vrcp.pop %v4115
    %v4509 = vmul.f32 1.0, %v4508
    %v4510 = vrcp.pop %v4116
    %v4511 = vmul.f32 1.0, %v4510
    %v4512 = vrcp.pop %v4117
    %v4513 = vmul.f32 1.0, %v4512
    %v4514 = vrcp.pop %v4118
    %v4515 = vmul.f32 1.0, %v4514
    %v4516 = vrcp.pop %v4119
    %v4517 = vmul.f32 1.0, %v4516
    %v4518 = vrcp.pop %v4120
    %v4519 = vmul.f32 1.0, %v4518
    %v4520 = vrcp.pop %v4121
    %v4521 = vmul.f32 1.0, %v4520
    %v4522 = vrcp.pop %v4122
    %v4523 = vmul.f32 1.0, %v4522
    %v4524 = vrcp.pop %v4123
    %v4525 = vmul.f32 1.0, %v4524
    %v4526 = vrcp.pop %v4124
    %v4527 = vmul.f32 1.0, %v4526
    %v4528 = vrcp.pop %v4125
    %v4529 = vmul.f32 1.0, %v4528
    %v4530 = vrcp.pop %v4126
    %v4531 = vmul.f32 1.0, %v4530
    %v4532 = vrcp.pop %v4127
    %v4533 = vmul.f32 1.0, %v4532
    %v4534 = vrcp.pop %v4128
    %v4535 = vmul.f32 1.0, %v4534
    %v4536 = vrcp.pop %v4129
    %v4537 = vmul.f32 1.0, %v4536
    %v4538 = vrcp.pop %v4130
    %v4539 = vmul.f32 1.0, %v4538
    %v4540 = vrcp.pop %v4131
    %v4541 = vmul.f32 1.0, %v4540
    %v4542 = vrcp.pop %v4132
    %v4543 = vmul.f32 1.0, %v4542
    %v4544 = vrcp.pop %v4133
    %v4545 = vmul.f32 1.0, %v4544
    %v4546 = vrcp.pop %v4134
    %v4547 = vmul.f32 1.0, %v4546
    %v4548 = vrcp.pop %v4135
    %v4549 = vmul.f32 1.0, %v4548
    %v4550 = vrcp.pop %v4136
    %v4551 = vmul.f32 1.0, %v4550
    %v4552 = vrcp.pop %v4137
    %v4553 = vmul.f32 1.0, %v4552
    %v4554 = vrcp.pop %v4138
    %v4555 = vmul.f32 1.0, %v4554
    %v4556 = vrcp.pop %v4139
    %v4557 = vmul.f32 1.0, %v4556
    %v4558 = vrcp.pop %v4140
    %v4559 = vmul.f32 1.0, %v4558
    %v4560 = vrcp.pop %v4141
    %v4561 = vmul.f32 1.0, %v4560
    %v4562 = vrcp.pop %v4142
    %v4563 = vmul.f32 1.0, %v4562
    %v4564 = vrcp.pop %v4143
    %v4565 = vmul.f32 1.0, %v4564
    %v4566 = vrcp.pop %v4144
    %v4567 = vmul.f32 1.0, %v4566
    %v4568 = vrcp.pop %v4145
    %v4569 = vmul.f32 1.0, %v4568
    %v4570 = vrcp.pop %v4146
    %v4571 = vmul.f32 1.0, %v4570
    %v4572 = vrcp.pop %v4147
    %v4573 = vmul.f32 1.0, %v4572
    %v4574 = vrcp.pop %v4148
    %v4575 = vmul.f32 1.0, %v4574
    %v4576 = vrcp.pop %v4149
    %v4577 = vmul.f32 1.0, %v4576
    %v4578 = vrcp.pop %v4150
    %v4579 = vmul.f32 1.0, %v4578
    %v4580 = vrcp.pop %v4151
    %v4581 = vmul.f32 1.0, %v4580
    %v4582 = vrcp.pop %v4152
    %v4583 = vmul.f32 1.0, %v4582
    %v4584 = vrcp.pop %v4153
    %v4585 = vmul.f32 1.0, %v4584
    %v4586 = vrcp.pop %v4154
    %v4587 = vmul.f32 1.0, %v4586
    %v4588 = vrcp.pop %v4155
    %v4589 = vmul.f32 1.0, %v4588
    %v4590 = vrcp.pop %v4156
    %v4591 = vmul.f32 1.0, %v4590
    %v4592 = vrcp.pop %v4157
    %v4593 = vmul.f32 1.0, %v4592
    %v4594 = vrcp.pop %v4158
    %v4595 = vmul.f32 1.0, %v4594
    %v4596 = vrcp.pop %v4159
    %v4597 = vmul.f32 1.0, %v4596
    %v4598 = vrcp.pop %v4160
    %v4599 = vmul.f32 1.0, %v4598
    %v4600 = vrcp.pop %v4161
    %v4601 = vmul.f32 1.0, %v4600
    %v4602 = vrcp.pop %v4162
    %v4603 = vmul.f32 1.0, %v4602
    %v4604 = vrcp.pop %v4163
    %v4605 = vmul.f32 1.0, %v4604
    %v4606 = vrcp.pop %v4164
    %v4607 = vmul.f32 1.0, %v4606
    %v4608 = vrcp.pop %v4165
    %v4609 = vmul.f32 1.0, %v4608
    %v4610 = vrcp.pop %v4166
    %v4611 = vmul.f32 1.0, %v4610
    %v4612 = vrcp.pop %v4167
    %v4613 = vmul.f32 1.0, %v4612
    %v4614 = vrcp.pop %v4168
    %v4615 = vmul.f32 1.0, %v4614
    %v4616 = vrcp.pop %v4169
    %v4617 = vmul.f32 1.0, %v4616
    %4618 = vst [vmem:[#allocation11] sm:$0xff] %v4171
    %4619 = vst [vmem:[#allocation11 + $0x8] sm:$0xff] %v4173
    %4620 = vst [vmem:[#allocation11 + $0x10] sm:$0xff] %v4175
    %4621 = vst [vmem:[#allocation11 + $0x18] sm:$0xff] %v4177
    %4622 = vst [vmem:[#allocation11 + $0x20] sm:$0xff] %v4179
    %4623 = vst [vmem:[#allocation11 + $0x28] sm:$0xff] %v4181
    %4624 = vst [vmem:[#allocation11 + $0x30] sm:$0xff] %v4183
    %4625 = vst [vmem:[#allocation11 + $0x38] sm:$0xff] %v4185
    %4626 = vst [vmem:[#allocation11 + $0x40] sm:$0xff] %v4187
    %4627 = vst [vmem:[#allocation11 + $0x48] sm:$0xff] %v4189
    %4628 = vst [vmem:[#allocation11 + $0x50] sm:$0xff] %v4191
    %4629 = vst [vmem:[#allocation11 + $0x58] sm:$0xff] %v4193
    %4630 = vst [vmem:[#allocation11 + $0x60] sm:$0xff] %v4195
    %4631 = vst [vmem:[#allocation11 + $0x68] sm:$0xff] %v4197
    %4632 = vst [vmem:[#allocation11 + $0x70] sm:$0xff] %v4199
    %4633 = vst [vmem:[#allocation11 + $0x78] sm:$0xff] %v4201
    %4634 = vst [vmem:[#allocation11 + $0x80] sm:$0xff] %v4203
    %4635 = vst [vmem:[#allocation11 + $0x88] sm:$0xff] %v4205
    %4636 = vst [vmem:[#allocation11 + $0x90] sm:$0xff] %v4207
    %4637 = vst [vmem:[#allocation11 + $0x98] sm:$0xff] %v4209
    %4638 = vst [vmem:[#allocation11 + $0xa0] sm:$0xff] %v4211
    %4639 = vst [vmem:[#allocation11 + $0xa8] sm:$0xff] %v4213
    %4640 = vst [vmem:[#allocation11 + $0xb0] sm:$0xff] %v4215
    %4641 = vst [vmem:[#allocation11 + $0xb8] sm:$0xff] %v4217
    %4642 = vst [vmem:[#allocation11 + $0xc0] sm:$0xff] %v4219
    %4643 = vst [vmem:[#allocation11 + $0xc8] sm:$0xff] %v4221
    %4644 = vst [vmem:[#allocation11 + $0xd0] sm:$0xff] %v4223
    %4645 = vst [vmem:[#allocation11 + $0xd8] sm:$0xff] %v4225
    %4646 = vst [vmem:[#allocation11 + $0xe0] sm:$0xff] %v4227
    %4647 = vst [vmem:[#allocation11 + $0xe8] sm:$0xff] %v4229
    %4648 = vst [vmem:[#allocation11 + $0xf0] sm:$0xff] %v4231
    %4649 = vst [vmem:[#allocation11 + $0xf8] sm:$0xff] %v4233
    %4650 = vst [vmem:[#allocation11 + $0x100] sm:$0xff] %v4235
    %4651 = vst [vmem:[#allocation11 + $0x108] sm:$0xff] %v4237
    %4652 = vst [vmem:[#allocation11 + $0x110] sm:$0xff] %v4239
    %4653 = vst [vmem:[#allocation11 + $0x118] sm:$0xff] %v4241
    %4654 = vst [vmem:[#allocation11 + $0x120] sm:$0xff] %v4243
    %4655 = vst [vmem:[#allocation11 + $0x128] sm:$0xff] %v4245
    %4656 = vst [vmem:[#allocation11 + $0x130] sm:$0xff] %v4247
    %4657 = vst [vmem:[#allocation11 + $0x138] sm:$0xff] %v4249
    %4658 = vst [vmem:[#allocation11 + $0x140] sm:$0xff] %v4251
    %4659 = vst [vmem:[#allocation11 + $0x148] sm:$0xff] %v4253
    %4660 = vst [vmem:[#allocation11 + $0x150] sm:$0xff] %v4255
    %4661 = vst [vmem:[#allocation11 + $0x158] sm:$0xff] %v4257
    %4662 = vst [vmem:[#allocation11 + $0x160] sm:$0xff] %v4259
    %4663 = vst [vmem:[#allocation11 + $0x168] sm:$0xff] %v4261
    %4664 = vst [vmem:[#allocation11 + $0x170] sm:$0xff] %v4263
    %4665 = vst [vmem:[#allocation11 + $0x178] sm:$0xff] %v4265
    %4666 = vst [vmem:[#allocation11 + $0x180] sm:$0xff] %v4267
    %4667 = vst [vmem:[#allocation11 + $0x188] sm:$0xff] %v4269
    %4668 = vst [vmem:[#allocation11 + $0x190] sm:$0xff] %v4271
    %4669 = vst [vmem:[#allocation11 + $0x198] sm:$0xff] %v4273
    %4670 = vst [vmem:[#allocation11 + $0x1a0] sm:$0xff] %v4275
    %4671 = vst [vmem:[#allocation11 + $0x1a8] sm:$0xff] %v4277
    %4672 = vst [vmem:[#allocation11 + $0x1b0] sm:$0xff] %v4279
    %4673 = vst [vmem:[#allocation11 + $0x1b8] sm:$0xff] %v4281
    %4674 = vst [vmem:[#allocation11 + $0x1c0] sm:$0xff] %v4283
    %4675 = vst [vmem:[#allocation11 + $0x1c8] sm:$0xff] %v4285
    %4676 = vst [vmem:[#allocation11 + $0x1d0] sm:$0xff] %v4287
    %4677 = vst [vmem:[#allocation11 + $0x1d8] sm:$0xff] %v4289
    %4678 = vst [vmem:[#allocation11 + $0x1e0] sm:$0xff] %v4291
    %4679 = vst [vmem:[#allocation11 + $0x1e8] sm:$0xff] %v4293
    %4680 = vst [vmem:[#allocation11 + $0x1f0] sm:$0xff] %v4295
    %4681 = vst [vmem:[#allocation11 + $0x1f8] sm:$0xff] %v4297
    %4682 = vst [vmem:[#allocation11 + $0x200] sm:$0xff] %v4299
    %4683 = vst [vmem:[#allocation11 + $0x208] sm:$0xff] %v4301
    %4684 = vst [vmem:[#allocation11 + $0x210] sm:$0xff] %v4303
    %4685 = vst [vmem:[#allocation11 + $0x218] sm:$0xff] %v4305
    %4686 = vst [vmem:[#allocation11 + $0x220] sm:$0xff] %v4307
    %4687 = vst [vmem:[#allocation11 + $0x228] sm:$0xff] %v4309
    %4688 = vst [vmem:[#allocation11 + $0x230] sm:$0xff] %v4311
    %4689 = vst [vmem:[#allocation11 + $0x238] sm:$0xff] %v4313
    %4690 = vst [vmem:[#allocation11 + $0x240] sm:$0xff] %v4315
    %4691 = vst [vmem:[#allocation11 + $0x248] sm:$0xff] %v4317
    %4692 = vst [vmem:[#allocation11 + $0x250] sm:$0xff] %v4319
    %4693 = vst [vmem:[#allocation11 + $0x258] sm:$0xff] %v4321
    %4694 = vst [vmem:[#allocation11 + $0x260] sm:$0xff] %v4323
    %4695 = vst [vmem:[#allocation11 + $0x268] sm:$0xff] %v4325
    %4696 = vst [vmem:[#allocation11 + $0x270] sm:$0xff] %v4327
    %4697 = vst [vmem:[#allocation11 + $0x278] sm:$0xff] %v4329
    %4698 = vst [vmem:[#allocation11 + $0x280] sm:$0xff] %v4331
    %4699 = vst [vmem:[#allocation11 + $0x288] sm:$0xff] %v4333
    %4700 = vst [vmem:[#allocation11 + $0x290] sm:$0xff] %v4335
    %4701 = vst [vmem:[#allocation11 + $0x298] sm:$0xff] %v4337
    %4702 = vst [vmem:[#allocation11 + $0x2a0] sm:$0xff] %v4339
    %4703 = vst [vmem:[#allocation11 + $0x2a8] sm:$0xff] %v4341
    %4704 = vst [vmem:[#allocation11 + $0x2b0] sm:$0xff] %v4343
    %4705 = vst [vmem:[#allocation11 + $0x2b8] sm:$0xff] %v4345
    %4706 = vst [vmem:[#allocation11 + $0x2c0] sm:$0xff] %v4347
    %4707 = vst [vmem:[#allocation11 + $0x2c8] sm:$0xff] %v4349
    %4708 = vst [vmem:[#allocation11 + $0x2d0] sm:$0xff] %v4351
    %4709 = vst [vmem:[#allocation11 + $0x2d8] sm:$0xff] %v4353
    %4710 = vst [vmem:[#allocation11 + $0x2e0] sm:$0xff] %v4355
    %4711 = vst [vmem:[#allocation11 + $0x2e8] sm:$0xff] %v4357
    %4712 = vst [vmem:[#allocation11 + $0x2f0] sm:$0xff] %v4359
    %4713 = vst [vmem:[#allocation11 + $0x2f8] sm:$0xff] %v4361
    %4714 = vst [vmem:[#allocation11 + $0x300] sm:$0xff] %v4363
    %4715 = vst [vmem:[#allocation11 + $0x308] sm:$0xff] %v4365
    %4716 = vst [vmem:[#allocation11 + $0x310] sm:$0xff] %v4367
    %4717 = vst [vmem:[#allocation11 + $0x318] sm:$0xff] %v4369
    %4718 = vst [vmem:[#allocation11 + $0x320] sm:$0xff] %v4371
    %4719 = vst [vmem:[#allocation11 + $0x328] sm:$0xff] %v4373
    %4720 = vst [vmem:[#allocation11 + $0x330] sm:$0xff] %v4375
    %4721 = vst [vmem:[#allocation11 + $0x338] sm:$0xff] %v4377
    %4722 = vst [vmem:[#allocation11 + $0x340] sm:$0xff] %v4379
    %4723 = vst [vmem:[#allocation11 + $0x348] sm:$0xff] %v4381
    %4724 = vst [vmem:[#allocation11 + $0x350] sm:$0xff] %v4383
    %4725 = vst [vmem:[#allocation11 + $0x358] sm:$0xff] %v4385
    %4726 = vst [vmem:[#allocation11 + $0x360] sm:$0xff] %v4387
    %4727 = vst [vmem:[#allocation11 + $0x368] sm:$0xff] %v4389
    %4728 = vst [vmem:[#allocation11 + $0x370] sm:$0xff] %v4391
    %4729 = vst [vmem:[#allocation11 + $0x378] sm:$0xff] %v4393
    %4730 = vst [vmem:[#allocation11 + $0x380] sm:$0xff] %v4395
    %4731 = vst [vmem:[#allocation11 + $0x388] sm:$0xff] %v4397
    %4732 = vst [vmem:[#allocation11 + $0x390] sm:$0xff] %v4399
    %4733 = vst [vmem:[#allocation11 + $0x398] sm:$0xff] %v4401
    %4734 = vst [vmem:[#allocation11 + $0x3a0] sm:$0xff] %v4403
    %4735 = vst [vmem:[#allocation11 + $0x3a8] sm:$0xff] %v4405
    %4736 = vst [vmem:[#allocation11 + $0x3b0] sm:$0xff] %v4407
    %4737 = vst [vmem:[#allocation11 + $0x3b8] sm:$0xff] %v4409
    %4738 = vst [vmem:[#allocation11 + $0x3c0] sm:$0xff] %v4411
    %4739 = vst [vmem:[#allocation11 + $0x3c8] sm:$0xff] %v4413
    %4740 = vst [vmem:[#allocation11 + $0x3d0] sm:$0xff] %v4415
    %4741 = vst [vmem:[#allocation11 + $0x3d8] sm:$0xff] %v4417
    %4742 = vst [vmem:[#allocation11 + $0x3e0] sm:$0xff] %v4419
    %4743 = vst [vmem:[#allocation11 + $0x3e8] sm:$0xff] %v4421
    %4744 = vst [vmem:[#allocation11 + $0x3f0] sm:$0xff] %v4423
    %4745 = vst [vmem:[#allocation11 + $0x3f8] sm:$0xff] %v4425
    %4746 = vst [vmem:[#allocation11 + $0x400] sm:$0xff] %v4427
    %4747 = vst [vmem:[#allocation11 + $0x408] sm:$0xff] %v4429
    %4748 = vst [vmem:[#allocation11 + $0x410] sm:$0xff] %v4431
    %4749 = vst [vmem:[#allocation11 + $0x418] sm:$0xff] %v4433
    %4750 = vst [vmem:[#allocation11 + $0x420] sm:$0xff] %v4435
    %4751 = vst [vmem:[#allocation11 + $0x428] sm:$0xff] %v4437
    %4752 = vst [vmem:[#allocation11 + $0x430] sm:$0xff] %v4439
    %4753 = vst [vmem:[#allocation11 + $0x438] sm:$0xff] %v4441
    %4754 = vst [vmem:[#allocation11 + $0x440] sm:$0xff] %v4443
    %4755 = vst [vmem:[#allocation11 + $0x448] sm:$0xff] %v4445
    %4756 = vst [vmem:[#allocation11 + $0x450] sm:$0xff] %v4447
    %4757 = vst [vmem:[#allocation11 + $0x458] sm:$0xff] %v4449
    %4758 = vst [vmem:[#allocation11 + $0x460] sm:$0xff] %v4451
    %4759 = vst [vmem:[#allocation11 + $0x468] sm:$0xff] %v4453
    %4760 = vst [vmem:[#allocation11 + $0x470] sm:$0xff] %v4455
    %4761 = vst [vmem:[#allocation11 + $0x478] sm:$0xff] %v4457
    %4762 = vst [vmem:[#allocation11 + $0x480] sm:$0xff] %v4459
    %4763 = vst [vmem:[#allocation11 + $0x488] sm:$0xff] %v4461
    %4764 = vst [vmem:[#allocation11 + $0x490] sm:$0xff] %v4463
    %4765 = vst [vmem:[#allocation11 + $0x498] sm:$0xff] %v4465
    %4766 = vst [vmem:[#allocation11 + $0x4a0] sm:$0xff] %v4467
    %4767 = vst [vmem:[#allocation11 + $0x4a8] sm:$0xff] %v4469
    %4768 = vst [vmem:[#allocation11 + $0x4b0] sm:$0xff] %v4471
    %4769 = vst [vmem:[#allocation11 + $0x4b8] sm:$0xff] %v4473
    %4770 = vst [vmem:[#allocation11 + $0x4c0] sm:$0xff] %v4475
    %4771 = vst [vmem:[#allocation11 + $0x4c8] sm:$0xff] %v4477
    %4772 = vst [vmem:[#allocation11 + $0x4d0] sm:$0xff] %v4479
    %4773 = vst [vmem:[#allocation11 + $0x4d8] sm:$0xff] %v4481
    %4774 = vst [vmem:[#allocation11 + $0x4e0] sm:$0xff] %v4483
    %4775 = vst [vmem:[#allocation11 + $0x4e8] sm:$0xff] %v4485
    %4776 = vst [vmem:[#allocation11 + $0x4f0] sm:$0xff] %v4487
    %4777 = vst [vmem:[#allocation11 + $0x4f8] sm:$0xff] %v4489
    %4778 = vst [vmem:[#allocation11 + $0x500] sm:$0xff] %v4491
    %4779 = vst [vmem:[#allocation11 + $0x508] sm:$0xff] %v4493
    %4780 = vst [vmem:[#allocation11 + $0x510] sm:$0xff] %v4495
    %4781 = vst [vmem:[#allocation11 + $0x518] sm:$0xff] %v4497
    %4782 = vst [vmem:[#allocation11 + $0x520] sm:$0xff] %v4499
    %4783 = vst [vmem:[#allocation11 + $0x528] sm:$0xff] %v4501
    %4784 = vst [vmem:[#allocation11 + $0x530] sm:$0xff] %v4503
    %4785 = vst [vmem:[#allocation11 + $0x538] sm:$0xff] %v4505
    %4786 = vst [vmem:[#allocation11 + $0x540] sm:$0xff] %v4507
    %4787 = vst [vmem:[#allocation11 + $0x548] sm:$0xff] %v4509
    %4788 = vst [vmem:[#allocation11 + $0x550] sm:$0xff] %v4511
    %4789 = vst [vmem:[#allocation11 + $0x558] sm:$0xff] %v4513
    %4790 = vst [vmem:[#allocation11 + $0x560] sm:$0xff] %v4515
    %4791 = vst [vmem:[#allocation11 + $0x568] sm:$0xff] %v4517
    %4792 = vst [vmem:[#allocation11 + $0x570] sm:$0xff] %v4519
    %4793 = vst [vmem:[#allocation11 + $0x578] sm:$0xff] %v4521
    %4794 = vst [vmem:[#allocation11 + $0x580] sm:$0xff] %v4523
    %4795 = vst [vmem:[#allocation11 + $0x588] sm:$0xff] %v4525
    %4796 = vst [vmem:[#allocation11 + $0x590] sm:$0xff] %v4527
    %4797 = vst [vmem:[#allocation11 + $0x598] sm:$0xff] %v4529
    %4798 = vst [vmem:[#allocation11 + $0x5a0] sm:$0xff] %v4531
    %4799 = vst [vmem:[#allocation11 + $0x5a8] sm:$0xff] %v4533
    %4800 = vst [vmem:[#allocation11 + $0x5b0] sm:$0xff] %v4535
    %4801 = vst [vmem:[#allocation11 + $0x5b8] sm:$0xff] %v4537
    %4802 = vst [vmem:[#allocation11 + $0x5c0] sm:$0xff] %v4539
    %4803 = vst [vmem:[#allocation11 + $0x5c8] sm:$0xff] %v4541
    %4804 = vst [vmem:[#allocation11 + $0x5d0] sm:$0xff] %v4543
    %4805 = vst [vmem:[#allocation11 + $0x5d8] sm:$0xff] %v4545
    %4806 = vst [vmem:[#allocation11 + $0x5e0] sm:$0xff] %v4547
    %4807 = vst [vmem:[#allocation11 + $0x5e8] sm:$0xff] %v4549
    %4808 = vst [vmem:[#allocation11 + $0x5f0] sm:$0xff] %v4551
    %4809 = vst [vmem:[#allocation11 + $0x5f8] sm:$0xff] %v4553
    %4810 = vst [vmem:[#allocation11 + $0x600] sm:$0xff] %v4555
    %4811 = vst [vmem:[#allocation11 + $0x608] sm:$0xff] %v4557
    %4812 = vst [vmem:[#allocation11 + $0x610] sm:$0xff] %v4559
    %4813 = vst [vmem:[#allocation11 + $0x618] sm:$0xff] %v4561
    %4814 = vst [vmem:[#allocation11 + $0x620] sm:$0xff] %v4563
    %4815 = vst [vmem:[#allocation11 + $0x628] sm:$0xff] %v4565
    %4816 = vst [vmem:[#allocation11 + $0x630] sm:$0xff] %v4567
    %4817 = vst [vmem:[#allocation11 + $0x638] sm:$0xff] %v4569
    %4818 = vst [vmem:[#allocation11 + $0x640] sm:$0xff] %v4571
    %4819 = vst [vmem:[#allocation11 + $0x648] sm:$0xff] %v4573
    %4820 = vst [vmem:[#allocation11 + $0x650] sm:$0xff] %v4575
    %4821 = vst [vmem:[#allocation11 + $0x658] sm:$0xff] %v4577
    %4822 = vst [vmem:[#allocation11 + $0x660] sm:$0xff] %v4579
    %4823 = vst [vmem:[#allocation11 + $0x668] sm:$0xff] %v4581
    %4824 = vst [vmem:[#allocation11 + $0x670] sm:$0xff] %v4583
    %4825 = vst [vmem:[#allocation11 + $0x678] sm:$0xff] %v4585
    %4826 = vst [vmem:[#allocation11 + $0x680] sm:$0xff] %v4587
    %4827 = vst [vmem:[#allocation11 + $0x688] sm:$0xff] %v4589
    %4828 = vst [vmem:[#allocation11 + $0x690] sm:$0xff] %v4591
    %4829 = vst [vmem:[#allocation11 + $0x698] sm:$0xff] %v4593
    %4830 = vst [vmem:[#allocation11 + $0x6a0] sm:$0xff] %v4595
    %4831 = vst [vmem:[#allocation11 + $0x6a8] sm:$0xff] %v4597
    %4832 = vst [vmem:[#allocation11 + $0x6b0] sm:$0xff] %v4599
    %4833 = vst [vmem:[#allocation11 + $0x6b8] sm:$0xff] %v4601
    %4834 = vst [vmem:[#allocation11 + $0x6c0] sm:$0xff] %v4603
    %4835 = vst [vmem:[#allocation11 + $0x6c8] sm:$0xff] %v4605
    %4836 = vst [vmem:[#allocation11 + $0x6d0] sm:$0xff] %v4607
    %4837 = vst [vmem:[#allocation11 + $0x6d8] sm:$0xff] %v4609
    %4838 = vst [vmem:[#allocation11 + $0x6e0] sm:$0xff] %v4611
    %4839 = vst [vmem:[#allocation11 + $0x6e8] sm:$0xff] %v4613
    %4840 = vst [vmem:[#allocation11 + $0x6f0] sm:$0xff] %v4615
    %4841 = vst [vmem:[#allocation11 + $0x6f8] sm:$0xff] %v4617
    // Predicated region
    $region58: #{tpu_custom_call.1} parent=1 // pred_check
      _
    $region59: #{tpu_custom_call.1} parent=1 // pred_check_branch
      %4843 = sbr.rel (0) target = $region61
    $region60: #{tpu_custom_call.1} parent=1 // pred_region
      %s4845 = ssub.s32 28672, 28672
      %4846 = vsyncadd [#allocation4], %s4845
      %s4847 = sshll.u32 [#allocation11], 4
      %s4848 = int_to_ptr.vmem [resolvable:$true] %s4847
      %4853 = dma.vmem_to_hbm [thread:$0]  %s4848, 28672, %s9, [#allocation4], 896, 896, 56
    $region61: #{tpu_custom_call.1} parent=1 // pred_fallthru
      _
    // Predicated region
    $region62: #{tpu_custom_call.1} parent=1 // pred_check
      _
    $region63: #{tpu_custom_call.1} parent=1 // pred_check_branch
      %4855 = sbr.rel (0) target = $region65
    $region64: #{tpu_custom_call.1} parent=1 // pred_region
      %4856 = dma.done [#allocation4], 28672
    $region65: #{tpu_custom_call.1} parent=1 // pred_fallthru
      _
    %4857 = vsyncpa [#allocation3], 1
    %4858 = vsyncpa [#allocation6], 1
    %4859 = vsyncpa [#allocation9], 1
    %4860 = vsyncpa [#allocation4], 1

</llo_original>
